<compile_context>
chip_gen: v5e
topology: v5e:2x2
jax: 0.10.0
libtpu: 0.0.40
codegen_flags: <defaults>
</compile_context>

<pallas_src>
import jax
import jax.numpy as jnp
from jax.experimental import pallas as pl
from jax.experimental.pallas import tpu as pltpu

# Layer dims of the AE module: 784 -> 512 -> 256 -> 32 -> 256 -> 512 -> 784
DIMS_ENC = [(784, 512), (512, 256), (256, 32)]
DIMS_DEC = [(32, 256), (256, 512), (512, 784)]

IN_DIM = 28 * 28          # 784
IN_DIM_PAD = 896          # 7 * 128, lane-dense feature width
LATENT = 32
LATENT_PAD = 128          # lane-dense latent width


def ae_kernel(x_ref,
              w1, b1, w2, b2, w3, b3,          # encoder params (w: bf16, b: f32)
              w4, b4, w5, b5, w6, b6,          # decoder params
              enc_ref, dec_ref):
    """One batch tile: full encoder+decoder on the MXU, f32 accumulation."""
    bf16 = jnp.bfloat16

    def lin(h, w, b):
        # h is bf16 already for the first layer (astype is then a no-op).
        return jnp.dot(h.astype(bf16), w[...],
                       preferred_element_type=jnp.float32) + b[...]

    x = x_ref[...]                                   # (TILE_B, 896) bf16

    # ---- encoder: Linear(784,512)+ReLU, Linear(512,256)+ReLU, Linear(256,32*)
    h = jnp.maximum(lin(x, w1, b1), 0.0)
    h = jnp.maximum(lin(h, w2, b2), 0.0)
    enc = lin(h, w3, b3)                             # (TILE_B, 128), cols 32: are 0
    enc_ref[...] = enc.astype(enc_ref.dtype)

    # ---- decoder: Linear(32*,256)+ReLU, Linear(256,512)+ReLU, Linear(512,784*)
    h = jnp.maximum(lin(enc, w4, b4), 0.0)
    h = jnp.maximum(lin(h, w5, b5), 0.0)
    dec = lin(h, w6, b6)                             # (TILE_B, 896), cols 784: are 0
    dec_ref[...] = dec.astype(dec_ref.dtype)


def _prepare_params(params):
    """Pad latent 32->128 and features 784->896, cast weights bf16 (biases f32)."""
    w1, b1, w2, b2, w3, b3, w4, b4, w5, b5, w6, b6 = params
    lpad = LATENT_PAD - LATENT
    dpad = IN_DIM_PAD - IN_DIM
    w1p = jnp.pad(w1, ((0, dpad), (0, 0)))           # (896, 512), zero rows
    w3p = jnp.pad(w3, ((0, 0), (0, lpad)))           # (256, 128), zero cols
    b3p = jnp.pad(b3, ((0, 0), (0, lpad)))           # (1, 128)
    w4p = jnp.pad(w4, ((0, lpad), (0, 0)))           # (128, 256), zero rows
    w6p = jnp.pad(w6, ((0, 0), (0, dpad)))           # (512, 896), zero cols
    b6p = jnp.pad(b6, ((0, 0), (0, dpad)))           # (1, 896)
    ws = [w1p, w2, w3p, w4p, w5, w6p]
    bs = [b1, b2, b3p, b4, b5, b6p]
    out = []
    for w, b in zip(ws, bs):
        out.append(w.astype(jnp.bfloat16))
        out.append(b.astype(jnp.float32))
    return out


def _round_up(n, m):
    return ((n + m - 1) // m) * m


def _resident_spec(shape):
    """Constant-index weight/bias block: fetched once; single-buffer in VMEM."""
    try:
        return pl.BlockSpec(shape, lambda i: (0, 0), pipeline_mode=pl.Buffered(1))
    except Exception:
        # Fallback for jax versions without pipeline_mode / Buffered(1) support.
        return pl.BlockSpec(shape, lambda i: (0, 0))


def ae_forward(x, params, tile_b=512):
    """x: (B, 784) float32.  params: flat list [w1,b1,...,w6,b6] with
    w_i shaped (in, out) f32 and b_i shaped (1, out) f32.  Returns (enc, dec)
    with enc (B, 32) f32 and dec (B, 784) f32."""
    B, D = x.shape
    assert D == IN_DIM
    kparams = _prepare_params(params)

    # ---- batch tile selection ------------------------------------------------
    b8 = _round_up(B, 8)
    if b8 >= 2 * tile_b:
        tile = tile_b                                # large batch: big MXU tiles
    elif b8 >= 256:
        tile = _round_up(-(-b8 // 2), 8)             # >= 2 tiles -> v7x megacore
    else:
        tile = b8                                    # tiny batch: no wasted rows
    b_pad = _round_up(b8, tile)
    grid = (b_pad // tile,)

    # ---- input: cast to bf16, pad features 784->896 and batch ----------------
    x = x.astype(jnp.bfloat16)
    x = jnp.pad(x, ((0, b_pad - B), (0, IN_DIM_PAD - IN_DIM)))

    # Activations tiled over batch; weights/biases VMEM-resident, single-buffered.
    in_specs = [pl.BlockSpec((tile, IN_DIM_PAD), lambda i: (i, 0))]
    for p in kparams:
        in_specs.append(_resident_spec(p.shape))
    out_specs = (pl.BlockSpec((tile, LATENT_PAD), lambda i: (i, 0)),
                 pl.BlockSpec((tile, IN_DIM_PAD), lambda i: (i, 0)))
    out_shape = (jax.ShapeDtypeStruct((b_pad, LATENT_PAD), jnp.float32),
                 jax.ShapeDtypeStruct((b_pad, IN_DIM_PAD), jnp.float32))

    flops = 2 * b_pad * sum(w.shape[0] * w.shape[1] for w in kparams[0::2])
    bytes_accessed = (sum(p.size * p.dtype.itemsize for p in kparams)
                      + x.size * x.dtype.itemsize
                      + b_pad * (LATENT_PAD + IN_DIM_PAD) * 4)

    enc, dec = pl.pallas_call(
        ae_kernel,
        grid=grid,
        in_specs=in_specs,
        out_specs=out_specs,
        out_shape=out_shape,
        compiler_params=pltpu.CompilerParams(
            dimension_semantics=("parallel",),     # megacore on v7x
            vmem_limit_bytes=32 << 20,             # headroom under v7x 64 MiB
        ),
        cost_estimate=pl.CostEstimate(flops=flops,
                                      transcendentals=0,
                                      bytes_accessed=bytes_accessed),
    )(x, *kparams)

    return enc[:B, :LATENT], dec[:B, :IN_DIM]


def init_params(key):
    """Deterministic PyTorch-style (uniform +/- 1/sqrt(fan_in)) init, f32."""
    params = []
    for (fan_in, fan_out) in DIMS_ENC + DIMS_DEC:
        key, kw, kb = jax.random.split(key, 3)
        bound = 1.0 / jnp.sqrt(float(fan_in))
        w = jax.random.uniform(kw, (fan_in, fan_out), jnp.float32, -bound, bound)
        b = jax.random.uniform(kb, (1, fan_out), jnp.float32, -bound, bound)
        params += [w, b]
    return params


def ae_reference(x, params):
    """Pure-JAX reference using the same bf16 inputs/weights, f32 accumulation."""
    w1, b1, w2, b2, w3, b3, w4, b4, w5, b5, w6, b6 = params

    def lin(h, w, b):
        return jnp.dot(h.astype(jnp.bfloat16), w.astype(jnp.bfloat16),
                       preferred_element_type=jnp.float32) + b

    h = jnp.maximum(lin(x, w1, b1), 0.0)
    h = jnp.maximum(lin(h, w2, b2), 0.0)
    enc = lin(h, w3, b3)
    h = jnp.maximum(lin(enc, w4, b4), 0.0)
    h = jnp.maximum(lin(h, w5, b5), 0.0)
    dec = lin(h, w6, b6)
    return enc, dec


if __name__ == "__main__":
    key = jax.random.PRNGKey(0)
    key, kx = jax.random.split(key)
    B = 8
    x = jax.random.uniform(kx, (B, IN_DIM), jnp.float32)   # MNIST-flattened input

    params = init_params(key)

    enc, dec = ae_forward(x, params)
    enc = jax.block_until_ready(enc)
    dec = jax.block_until_ready(dec)

    enc_ref, dec_ref = ae_reference(x, params)
    assert enc.shape == (B, LATENT) and dec.shape == (B, IN_DIM)
    assert jnp.allclose(enc, enc_ref, atol=2e-3, rtol=2e-3)
    assert jnp.allclose(dec, dec_ref, atol=2e-3, rtol=2e-3)

    print("KERNEL_OK")
</pallas_src>

<mosaic_0001>
module attributes {stable_mosaic.version = 11 : i64} {
  func.func @ae_kernel(%arg0: i32, %arg1: memref<8x896xbf16, #tpu.memory_space<vmem>>, %arg2: memref<896x512xbf16, #tpu.memory_space<vmem>>, %arg3: memref<1x512xf32, #tpu.memory_space<vmem>>, %arg4: memref<512x256xbf16, #tpu.memory_space<vmem>>, %arg5: memref<1x256xf32, #tpu.memory_space<vmem>>, %arg6: memref<256x128xbf16, #tpu.memory_space<vmem>>, %arg7: memref<1x128xf32, #tpu.memory_space<vmem>>, %arg8: memref<128x256xbf16, #tpu.memory_space<vmem>>, %arg9: memref<1x256xf32, #tpu.memory_space<vmem>>, %arg10: memref<256x512xbf16, #tpu.memory_space<vmem>>, %arg11: memref<1x512xf32, #tpu.memory_space<vmem>>, %arg12: memref<512x896xbf16, #tpu.memory_space<vmem>>, %arg13: memref<1x896xf32, #tpu.memory_space<vmem>>, %arg14: memref<8x128xf32, #tpu.memory_space<vmem>>, %arg15: memref<8x896xf32, #tpu.memory_space<vmem>>) attributes {dimension_semantics = [#tpu.dimension_semantics<parallel>], iteration_bounds = array<i64: 1>, scalar_prefetch = 0 : i64, scratch_operands = 0 : i64, tpu.core_type = #tpu.core_type<tc>, window_params = [{transform_indices = @transform_0, window_bounds = array<i64: 8, 896>}, {pipeline_mode = #tpu.pipeline_mode<synchronous>, transform_indices = @transform_1, window_bounds = array<i64: 896, 512>}, {pipeline_mode = #tpu.pipeline_mode<synchronous>, transform_indices = @transform_2, window_bounds = array<i64: 1, 512>}, {pipeline_mode = #tpu.pipeline_mode<synchronous>, transform_indices = @transform_3, window_bounds = array<i64: 512, 256>}, {pipeline_mode = #tpu.pipeline_mode<synchronous>, transform_indices = @transform_4, window_bounds = array<i64: 1, 256>}, {pipeline_mode = #tpu.pipeline_mode<synchronous>, transform_indices = @transform_5, window_bounds = array<i64: 256, 128>}, {pipeline_mode = #tpu.pipeline_mode<synchronous>, transform_indices = @transform_6, window_bounds = array<i64: 1, 128>}, {pipeline_mode = #tpu.pipeline_mode<synchronous>, transform_indices = @transform_7, window_bounds = array<i64: 128, 256>}, {pipeline_mode = #tpu.pipeline_mode<synchronous>, transform_indices = @transform_8, window_bounds = array<i64: 1, 256>}, {pipeline_mode = #tpu.pipeline_mode<synchronous>, transform_indices = @transform_9, window_bounds = array<i64: 256, 512>}, {pipeline_mode = #tpu.pipeline_mode<synchronous>, transform_indices = @transform_10, window_bounds = array<i64: 1, 512>}, {pipeline_mode = #tpu.pipeline_mode<synchronous>, transform_indices = @transform_11, window_bounds = array<i64: 512, 896>}, {pipeline_mode = #tpu.pipeline_mode<synchronous>, transform_indices = @transform_12, window_bounds = array<i64: 1, 896>}, {transform_indices = @transform_13, window_bounds = array<i64: 8, 128>}, {transform_indices = @transform_14, window_bounds = array<i64: 8, 896>}]} {
    %c0 = arith.constant 0 : index
    %c0_0 = arith.constant 0 : index
    %0 = vector.load %arg1[%c0, %c0_0] : memref<8x896xbf16, #tpu.memory_space<vmem>>, vector<8x896xbf16>
    %c0_1 = arith.constant 0 : index
    %c0_2 = arith.constant 0 : index
    %1 = vector.load %arg2[%c0_1, %c0_2] : memref<896x512xbf16, #tpu.memory_space<vmem>>, vector<896x512xbf16>
    %cst = arith.constant dense<0.000000e+00> : vector<8x512xf32>
    %2 = tpu.matmul %0, %1, %cst {dimension_numbers = #tpu.dot_dimension_numbers<[1], [0], [0], [1], [0, 0, 1, 1], [], []>} : vector<8x896xbf16>, vector<896x512xbf16>, vector<8x512xf32> -> vector<8x512xf32>
    %c0_3 = arith.constant 0 : index
    %c0_4 = arith.constant 0 : index
    %3 = vector.load %arg3[%c0_3, %c0_4] : memref<1x512xf32, #tpu.memory_space<vmem>>, vector<1x512xf32>
    %4 = vector.broadcast %3 : vector<1x512xf32> to vector<8x512xf32>
    %5 = arith.addf %2, %4 : vector<8x512xf32>
    %cst_5 = arith.constant 0.000000e+00 : f32
    %6 = vector.broadcast %cst_5 : f32 to vector<8x512xf32>
    %7 = arith.maximumf %5, %6 : vector<8x512xf32>
    %8 = arith.truncf %7 : vector<8x512xf32> to vector<8x512xbf16>
    %c0_6 = arith.constant 0 : index
    %c0_7 = arith.constant 0 : index
    %9 = vector.load %arg4[%c0_6, %c0_7] : memref<512x256xbf16, #tpu.memory_space<vmem>>, vector<512x256xbf16>
    %cst_8 = arith.constant dense<0.000000e+00> : vector<8x256xf32>
    %10 = tpu.matmul %8, %9, %cst_8 {dimension_numbers = #tpu.dot_dimension_numbers<[1], [0], [0], [1], [0, 0, 1, 1], [], []>} : vector<8x512xbf16>, vector<512x256xbf16>, vector<8x256xf32> -> vector<8x256xf32>
    %c0_9 = arith.constant 0 : index
    %c0_10 = arith.constant 0 : index
    %11 = vector.load %arg5[%c0_9, %c0_10] : memref<1x256xf32, #tpu.memory_space<vmem>>, vector<1x256xf32>
    %12 = vector.broadcast %11 : vector<1x256xf32> to vector<8x256xf32>
    %13 = arith.addf %10, %12 : vector<8x256xf32>
    %cst_11 = arith.constant 0.000000e+00 : f32
    %14 = vector.broadcast %cst_11 : f32 to vector<8x256xf32>
    %15 = arith.maximumf %13, %14 : vector<8x256xf32>
    %16 = arith.truncf %15 : vector<8x256xf32> to vector<8x256xbf16>
    %c0_12 = arith.constant 0 : index
    %c0_13 = arith.constant 0 : index
    %17 = vector.load %arg6[%c0_12, %c0_13] : memref<256x128xbf16, #tpu.memory_space<vmem>>, vector<256x128xbf16>
    %cst_14 = arith.constant dense<0.000000e+00> : vector<8x128xf32>
    %18 = tpu.matmul %16, %17, %cst_14 {dimension_numbers = #tpu.dot_dimension_numbers<[1], [0], [0], [1], [0, 0, 1, 1], [], []>} : vector<8x256xbf16>, vector<256x128xbf16>, vector<8x128xf32> -> vector<8x128xf32>
    %c0_15 = arith.constant 0 : index
    %c0_16 = arith.constant 0 : index
    %19 = vector.load %arg7[%c0_15, %c0_16] : memref<1x128xf32, #tpu.memory_space<vmem>>, vector<1x128xf32>
    %20 = vector.broadcast %19 : vector<1x128xf32> to vector<8x128xf32>
    %21 = arith.addf %18, %20 : vector<8x128xf32>
    %c0_17 = arith.constant 0 : index
    %c0_18 = arith.constant 0 : index
    %22 = vector.load %arg14[%c0_17, %c0_18] : memref<8x128xf32, #tpu.memory_space<vmem>>, vector<8x128xf32>
    tpu.vector_store %arg14[%c0_17, %c0_18], %21 {strides = array<i32>} : memref<8x128xf32, #tpu.memory_space<vmem>>, vector<8x128xf32>,
    %23 = arith.truncf %21 : vector<8x128xf32> to vector<8x128xbf16>
    %c0_19 = arith.constant 0 : index
    %c0_20 = arith.constant 0 : index
    %24 = vector.load %arg8[%c0_19, %c0_20] : memref<128x256xbf16, #tpu.memory_space<vmem>>, vector<128x256xbf16>
    %cst_21 = arith.constant dense<0.000000e+00> : vector<8x256xf32>
    %25 = tpu.matmul %23, %24, %cst_21 {dimension_numbers = #tpu.dot_dimension_numbers<[1], [0], [0], [1], [0, 0, 1, 1], [], []>} : vector<8x128xbf16>, vector<128x256xbf16>, vector<8x256xf32> -> vector<8x256xf32>
    %c0_22 = arith.constant 0 : index
    %c0_23 = arith.constant 0 : index
    %26 = vector.load %arg9[%c0_22, %c0_23] : memref<1x256xf32, #tpu.memory_space<vmem>>, vector<1x256xf32>
    %27 = vector.broadcast %26 : vector<1x256xf32> to vector<8x256xf32>
    %28 = arith.addf %25, %27 : vector<8x256xf32>
    %cst_24 = arith.constant 0.000000e+00 : f32
    %29 = vector.broadcast %cst_24 : f32 to vector<8x256xf32>
    %30 = arith.maximumf %28, %29 : vector<8x256xf32>
    %31 = arith.truncf %30 : vector<8x256xf32> to vector<8x256xbf16>
    %c0_25 = arith.constant 0 : index
    %c0_26 = arith.constant 0 : index
    %32 = vector.load %arg10[%c0_25, %c0_26] : memref<256x512xbf16, #tpu.memory_space<vmem>>, vector<256x512xbf16>
    %cst_27 = arith.constant dense<0.000000e+00> : vector<8x512xf32>
    %33 = tpu.matmul %31, %32, %cst_27 {dimension_numbers = #tpu.dot_dimension_numbers<[1], [0], [0], [1], [0, 0, 1, 1], [], []>} : vector<8x256xbf16>, vector<256x512xbf16>, vector<8x512xf32> -> vector<8x512xf32>
    %c0_28 = arith.constant 0 : index
    %c0_29 = arith.constant 0 : index
    %34 = vector.load %arg11[%c0_28, %c0_29] : memref<1x512xf32, #tpu.memory_space<vmem>>, vector<1x512xf32>
    %35 = vector.broadcast %34 : vector<1x512xf32> to vector<8x512xf32>
    %36 = arith.addf %33, %35 : vector<8x512xf32>
    %cst_30 = arith.constant 0.000000e+00 : f32
    %37 = vector.broadcast %cst_30 : f32 to vector<8x512xf32>
    %38 = arith.maximumf %36, %37 : vector<8x512xf32>
    %39 = arith.truncf %38 : vector<8x512xf32> to vector<8x512xbf16>
    %c0_31 = arith.constant 0 : index
    %c0_32 = arith.constant 0 : index
    %40 = vector.load %arg12[%c0_31, %c0_32] : memref<512x896xbf16, #tpu.memory_space<vmem>>, vector<512x896xbf16>
    %cst_33 = arith.constant dense<0.000000e+00> : vector<8x896xf32>
    %41 = tpu.matmul %39, %40, %cst_33 {dimension_numbers = #tpu.dot_dimension_numbers<[1], [0], [0], [1], [0, 0, 1, 1], [], []>} : vector<8x512xbf16>, vector<512x896xbf16>, vector<8x896xf32> -> vector<8x896xf32>
    %c0_34 = arith.constant 0 : index
    %c0_35 = arith.constant 0 : index
    %42 = vector.load %arg13[%c0_34, %c0_35] : memref<1x896xf32, #tpu.memory_space<vmem>>, vector<1x896xf32>
    %43 = vector.broadcast %42 : vector<1x896xf32> to vector<8x896xf32>
    %44 = arith.addf %41, %43 : vector<8x896xf32>
    %c0_36 = arith.constant 0 : index
    %c0_37 = arith.constant 0 : index
    %45 = vector.load %arg15[%c0_36, %c0_37] : memref<8x896xf32, #tpu.memory_space<vmem>>, vector<8x896xf32>
    tpu.vector_store %arg15[%c0_36, %c0_37], %44 {strides = array<i32>} : memref<8x896xf32, #tpu.memory_space<vmem>>, vector<8x896xf32>,
    return
  }
  func.func @transform_0(%arg0: i32) -> (i32, i32) {
    %c0_i32 = arith.constant 0 : i32
    %c0_i32_0 = arith.constant 0 : i32
    return %arg0, %c0_i32 : i32, i32
  }
  func.func @transform_1(%arg0: i32) -> (i32, i32) {
    %c0_i32 = arith.constant 0 : i32
    %c0_i32_0 = arith.constant 0 : i32
    %c0_i32_1 = arith.constant 0 : i32
    return %c0_i32, %c0_i32_0 : i32, i32
  }
  func.func @transform_2(%arg0: i32) -> (i32, i32) {
    %c0_i32 = arith.constant 0 : i32
    %c0_i32_0 = arith.constant 0 : i32
    %c0_i32_1 = arith.constant 0 : i32
    return %c0_i32, %c0_i32_0 : i32, i32
  }
  func.func @transform_3(%arg0: i32) -> (i32, i32) {
    %c0_i32 = arith.constant 0 : i32
    %c0_i32_0 = arith.constant 0 : i32
    %c0_i32_1 = arith.constant 0 : i32
    return %c0_i32, %c0_i32_0 : i32, i32
  }
  func.func @transform_4(%arg0: i32) -> (i32, i32) {
    %c0_i32 = arith.constant 0 : i32
    %c0_i32_0 = arith.constant 0 : i32
    %c0_i32_1 = arith.constant 0 : i32
    return %c0_i32, %c0_i32_0 : i32, i32
  }
  func.func @transform_5(%arg0: i32) -> (i32, i32) {
    %c0_i32 = arith.constant 0 : i32
    %c0_i32_0 = arith.constant 0 : i32
    %c0_i32_1 = arith.constant 0 : i32
    return %c0_i32, %c0_i32_0 : i32, i32
  }
  func.func @transform_6(%arg0: i32) -> (i32, i32) {
    %c0_i32 = arith.constant 0 : i32
    %c0_i32_0 = arith.constant 0 : i32
    %c0_i32_1 = arith.constant 0 : i32
    return %c0_i32, %c0_i32_0 : i32, i32
  }
  func.func @transform_7(%arg0: i32) -> (i32, i32) {
    %c0_i32 = arith.constant 0 : i32
    %c0_i32_0 = arith.constant 0 : i32
    %c0_i32_1 = arith.constant 0 : i32
    return %c0_i32, %c0_i32_0 : i32, i32
  }
  func.func @transform_8(%arg0: i32) -> (i32, i32) {
    %c0_i32 = arith.constant 0 : i32
    %c0_i32_0 = arith.constant 0 : i32
    %c0_i32_1 = arith.constant 0 : i32
    return %c0_i32, %c0_i32_0 : i32, i32
  }
  func.func @transform_9(%arg0: i32) -> (i32, i32) {
    %c0_i32 = arith.constant 0 : i32
    %c0_i32_0 = arith.constant 0 : i32
    %c0_i32_1 = arith.constant 0 : i32
    return %c0_i32, %c0_i32_0 : i32, i32
  }
  func.func @transform_10(%arg0: i32) -> (i32, i32) {
    %c0_i32 = arith.constant 0 : i32
    %c0_i32_0 = arith.constant 0 : i32
    %c0_i32_1 = arith.constant 0 : i32
    return %c0_i32, %c0_i32_0 : i32, i32
  }
  func.func @transform_11(%arg0: i32) -> (i32, i32) {
    %c0_i32 = arith.constant 0 : i32
    %c0_i32_0 = arith.constant 0 : i32
    %c0_i32_1 = arith.constant 0 : i32
    return %c0_i32, %c0_i32_0 : i32, i32
  }
  func.func @transform_12(%arg0: i32) -> (i32, i32) {
    %c0_i32 = arith.constant 0 : i32
    %c0_i32_0 = arith.constant 0 : i32
    %c0_i32_1 = arith.constant 0 : i32
    return %c0_i32, %c0_i32_0 : i32, i32
  }
  func.func @transform_13(%arg0: i32) -> (i32, i32) {
    %c0_i32 = arith.constant 0 : i32
    %c0_i32_0 = arith.constant 0 : i32
    return %arg0, %c0_i32 : i32, i32
  }
  func.func @transform_14(%arg0: i32) -> (i32, i32) {
    %c0_i32 = arith.constant 0 : i32
    %c0_i32_0 = arith.constant 0 : i32
    return %arg0, %c0_i32 : i32, i32
  }
}

</mosaic_0001>

<llo_original>
// kernel: tpu_custom_call.1
$region0: #{tpu_custom_call.1}
  #allocation0 [shape = 'u32[]', space=smem, size = 0x4, offset = 0x4, fixed_abs, tag = 'smem constant byte address 0x4 - core index']
  #allocation1 [shape = 'u32[72,128]{1,0:T(1,128)}', space=vmem, size = 0x9000, scoped, tag = 'internal scratch']
  %s0 = inlined_call_operand.hbm [shape: bf16[8,896], index: 0, kind: input, shape index: {}]
  %s1 = inlined_call_operand.hbm [shape: bf16[896,512], index: 1, kind: input, shape index: {}]
  %s2 = inlined_call_operand.hbm [shape: f32[1,512], index: 2, kind: input, shape index: {}]
  %s3 = inlined_call_operand.hbm [shape: bf16[512,256], index: 3, kind: input, shape index: {}]
  %s4 = inlined_call_operand.hbm [shape: f32[1,256], index: 4, kind: input, shape index: {}]
  %s5 = inlined_call_operand.hbm [shape: bf16[256,128], index: 5, kind: input, shape index: {}]
  %s6 = inlined_call_operand.hbm [shape: f32[1,128], index: 6, kind: input, shape index: {}]
  %s7 = inlined_call_operand.hbm [shape: bf16[128,256], index: 7, kind: input, shape index: {}]
  %s8 = inlined_call_operand.hbm [shape: f32[1,256], index: 8, kind: input, shape index: {}]
  %s9 = inlined_call_operand.hbm [shape: bf16[256,512], index: 9, kind: input, shape index: {}]
  %s10 = inlined_call_operand.vmem [shape: f32[1,512], index: 10, kind: input, shape index: {}]
  %s11 = inlined_call_operand.hbm [shape: bf16[512,896], index: 11, kind: input, shape index: {}]
  %s12 = inlined_call_operand.vmem [shape: f32[1,896], index: 12, kind: input, shape index: {}]
  %s13 = inlined_call_operand.hbm [shape: f32[8,128], index: 13, kind: output, shape index: {0}]
  %s14 = inlined_call_operand.hbm [shape: f32[8,896], index: 14, kind: output, shape index: {1}]
  %15 = xla_tuple %s13, %s14
  %s16 = sld [smem:[#allocation0]]
  $region114: #{tpu_custom_call.1} parent=0
    _
  %s18 = ssub.s32 1, %s16
  %s19 = scalar_select 0, %s18, %s16
  $region1: #{tpu_custom_call.1} parent=0
    #allocation2 [shape = 'u8[14336]{0}', space=vmem, size = 0x3800, scoped, tag = 'input window, operand 0, single buffered']
    #allocation3 [shape = 's32[1]{0}', space=sflag, size = 0x4, scoped, tag = 'scoped memory for tpu_custom_call.1']
    #allocation4 [shape = 's32[1]{0}', space=sflag, size = 0x4, scoped, tag = 'scoped memory for tpu_custom_call.1']
    #allocation5 [shape = 'u8[917504]{0}', space=vmem, size = 0xe0000, scoped, tag = 'input window, operand 1, single buffered']
    #allocation6 [shape = 's32[1]{0}', space=sflag, size = 0x4, scoped, tag = 'scoped memory for tpu_custom_call.1']
    #allocation7 [shape = 'u8[2048]{0}', space=vmem, size = 0x800, scoped, tag = 'input window, operand 2, single buffered']
    #allocation8 [shape = 'u8[262144]{0}', space=vmem, size = 0x40000, scoped, tag = 'input window, operand 3, single buffered']
    #allocation9 [shape = 's32[1]{0}', space=sflag, size = 0x4, scoped, tag = 'scoped memory for tpu_custom_call.1']
    #allocation10 [shape = 'u8[1024]{0}', space=vmem, size = 0x400, scoped, tag = 'input window, operand 4, single buffered']
    #allocation11 [shape = 'u8[65536]{0}', space=vmem, size = 0x10000, scoped, tag = 'input window, operand 5, single buffered']
    #allocation12 [shape = 's32[1]{0}', space=sflag, size = 0x4, scoped, tag = 'scoped memory for tpu_custom_call.1']
    #allocation13 [shape = 'u8[512]{0}', space=vmem, size = 0x400, scoped, tag = 'input window, operand 6, single buffered']
    #allocation14 [shape = 'u8[65536]{0}', space=vmem, size = 0x10000, scoped, tag = 'input window, operand 7, single buffered']
    #allocation15 [shape = 's32[1]{0}', space=sflag, size = 0x4, scoped, tag = 'scoped memory for tpu_custom_call.1']
    #allocation16 [shape = 'u8[1024]{0}', space=vmem, size = 0x400, scoped, tag = 'input window, operand 8, single buffered']
    #allocation17 [shape = 'u8[262144]{0}', space=vmem, size = 0x40000, scoped, tag = 'input window, operand 9, single buffered']
    #allocation18 [shape = 's32[1]{0}', space=sflag, size = 0x4, scoped, tag = 'scoped memory for tpu_custom_call.1']
    #allocation19 [shape = 'u8[917504]{0}', space=vmem, size = 0xe0000, scoped, tag = 'input window, operand 11, single buffered']
    #allocation20 [shape = 'u8[4096]{0}', space=vmem, size = 0x1000, scoped, tag = 'output window, operand 0, single buffered']
    #allocation21 [shape = 'u8[28672]{0}', space=vmem, size = 0x7000, scoped, tag = 'output window, operand 1, single buffered']
    #allocation22 [shape = 's32[1]{0}', space=sflag, size = 0x4, scoped, tag = 'scoped memory for tpu_custom_call.1']
    %20 = vsyncpa [#allocation3], 0
    %21 = vsyncpa [#allocation6], 0
    %22 = vsyncpa [#allocation9], 0
    %23 = vsyncpa [#allocation12], 0
    %24 = vsyncpa [#allocation15], 0
    %25 = vsyncpa [#allocation18], 0
    %26 = vsyncpa [#allocation4], 0
    %27 = vsyncpa [#allocation22], 0
    // Predicated region
    $region2: #{tpu_custom_call.1} parent=1 // pred_check
      _
    $region3: #{tpu_custom_call.1} parent=1 // pred_check_branch
      %29 = sbr.rel (0) target = $region5
    $region4: #{tpu_custom_call.1} parent=1 // pred_region
      %31 = vsyncadd [#allocation3], 0
      %s33 = sshll.u32 %s0, 4
      %s34 = int_to_ptr.hbm [resolvable:$true] %s33
      %s35 = sshll.u32 [#allocation2], 4
      %s36 = int_to_ptr.vmem [resolvable:$true] %s35
      %38 = dma.hbm_to_vmem [thread:$0]  %s34, 448, %s36, [#allocation3]
    $region5: #{tpu_custom_call.1} parent=1 // pred_fallthru
      _
    // Predicated region
    $region6: #{tpu_custom_call.1} parent=1 // pred_check
      _
    $region7: #{tpu_custom_call.1} parent=1 // pred_check_branch
      %40 = sbr.rel (0) target = $region9
    $region8: #{tpu_custom_call.1} parent=1 // pred_region
      %42 = vsyncadd [#allocation6], 0
      %s43 = sshll.u32 %s1, 4
      %s44 = int_to_ptr.hbm [resolvable:$true] %s43
      %s45 = sshll.u32 [#allocation5], 4
      %s46 = int_to_ptr.vmem [resolvable:$true] %s45
      %51 = dma.hbm_to_vmem [thread:$0]  %s44, 28672, %s46, [#allocation6], 256, 256, 16
    $region9: #{tpu_custom_call.1} parent=1 // pred_fallthru
      _
    // Predicated region
    $region10: #{tpu_custom_call.1} parent=1 // pred_check
      _
    $region11: #{tpu_custom_call.1} parent=1 // pred_check_branch
      %53 = sbr.rel (0) target = $region13
    $region12: #{tpu_custom_call.1} parent=1 // pred_region
      %55 = vsyncadd [#allocation6], 0
      %s57 = sshll.u32 %s2, 4
      %s58 = int_to_ptr.hbm [resolvable:$true] %s57
      %s59 = sshll.u32 [#allocation7], 4
      %s60 = int_to_ptr.vmem [resolvable:$true] %s59
      %62 = dma.hbm_to_vmem [thread:$0]  %s58, 64, %s60, [#allocation6]
    $region13: #{tpu_custom_call.1} parent=1 // pred_fallthru
      _
    // Predicated region
    $region14: #{tpu_custom_call.1} parent=1 // pred_check
      _
    $region15: #{tpu_custom_call.1} parent=1 // pred_check_branch
      %64 = sbr.rel (0) target = $region17
    $region16: #{tpu_custom_call.1} parent=1 // pred_region
      %66 = vsyncadd [#allocation9], 0
      %s67 = sshll.u32 %s3, 4
      %s68 = int_to_ptr.hbm [resolvable:$true] %s67
      %s69 = sshll.u32 [#allocation8], 4
      %s70 = int_to_ptr.vmem [resolvable:$true] %s69
      %75 = dma.hbm_to_vmem [thread:$0]  %s68, 8192, %s70, [#allocation9], 128, 128, 8
    $region17: #{tpu_custom_call.1} parent=1 // pred_fallthru
      _
    // Predicated region
    $region18: #{tpu_custom_call.1} parent=1 // pred_check
      _
    $region19: #{tpu_custom_call.1} parent=1 // pred_check_branch
      %77 = sbr.rel (0) target = $region21
    $region20: #{tpu_custom_call.1} parent=1 // pred_region
      %79 = vsyncadd [#allocation9], 0
      %s81 = sshll.u32 %s4, 4
      %s82 = int_to_ptr.hbm [resolvable:$true] %s81
      %s83 = sshll.u32 [#allocation10], 4
      %s84 = int_to_ptr.vmem [resolvable:$true] %s83
      %86 = dma.hbm_to_vmem [thread:$0]  %s82, 32, %s84, [#allocation9]
    $region21: #{tpu_custom_call.1} parent=1 // pred_fallthru
      _
    // Predicated region
    $region22: #{tpu_custom_call.1} parent=1 // pred_check
      _
    $region23: #{tpu_custom_call.1} parent=1 // pred_check_branch
      %88 = sbr.rel (0) target = $region25
    $region24: #{tpu_custom_call.1} parent=1 // pred_region
      %90 = vsyncadd [#allocation12], 0
      %s91 = sshll.u32 %s5, 4
      %s92 = int_to_ptr.hbm [resolvable:$true] %s91
      %s93 = sshll.u32 [#allocation11], 4
      %s94 = int_to_ptr.vmem [resolvable:$true] %s93
      %99 = dma.hbm_to_vmem [thread:$0]  %s92, 2048, %s94, [#allocation12], 64, 64, 4
    $region25: #{tpu_custom_call.1} parent=1 // pred_fallthru
      _
    // Predicated region
    $region26: #{tpu_custom_call.1} parent=1 // pred_check
      _
    $region27: #{tpu_custom_call.1} parent=1 // pred_check_branch
      %101 = sbr.rel (0) target = $region29
    $region28: #{tpu_custom_call.1} parent=1 // pred_region
      %103 = vsyncadd [#allocation12], 0
      %s105 = sshll.u32 %s6, 4
      %s106 = int_to_ptr.hbm [resolvable:$true] %s105
      %s107 = sshll.u32 [#allocation13], 4
      %s108 = int_to_ptr.vmem [resolvable:$true] %s107
      %110 = dma.hbm_to_vmem [thread:$0]  %s106, 16, %s108, [#allocation12]
    $region29: #{tpu_custom_call.1} parent=1 // pred_fallthru
      _
    // Predicated region
    $region30: #{tpu_custom_call.1} parent=1 // pred_check
      _
    $region31: #{tpu_custom_call.1} parent=1 // pred_check_branch
      %112 = sbr.rel (0) target = $region33
    $region32: #{tpu_custom_call.1} parent=1 // pred_region
      %114 = vsyncadd [#allocation15], 0
      %s115 = sshll.u32 %s7, 4
      %s116 = int_to_ptr.hbm [resolvable:$true] %s115
      %s117 = sshll.u32 [#allocation14], 4
      %s118 = int_to_ptr.vmem [resolvable:$true] %s117
      %123 = dma.hbm_to_vmem [thread:$0]  %s116, 2048, %s118, [#allocation15], 128, 128, 8
    $region33: #{tpu_custom_call.1} parent=1 // pred_fallthru
      _
    // Predicated region
    $region34: #{tpu_custom_call.1} parent=1 // pred_check
      _
    $region35: #{tpu_custom_call.1} parent=1 // pred_check_branch
      %125 = sbr.rel (0) target = $region37
    $region36: #{tpu_custom_call.1} parent=1 // pred_region
      %127 = vsyncadd [#allocation15], 0
      %s129 = sshll.u32 %s8, 4
      %s130 = int_to_ptr.hbm [resolvable:$true] %s129
      %s131 = sshll.u32 [#allocation16], 4
      %s132 = int_to_ptr.vmem [resolvable:$true] %s131
      %134 = dma.hbm_to_vmem [thread:$0]  %s130, 32, %s132, [#allocation15]
    $region37: #{tpu_custom_call.1} parent=1 // pred_fallthru
      _
    // Predicated region
    $region38: #{tpu_custom_call.1} parent=1 // pred_check
      _
    $region39: #{tpu_custom_call.1} parent=1 // pred_check_branch
      %136 = sbr.rel (0) target = $region41
    $region40: #{tpu_custom_call.1} parent=1 // pred_region
      %138 = vsyncadd [#allocation18], 0
      %s139 = sshll.u32 %s9, 4
      %s140 = int_to_ptr.hbm [resolvable:$true] %s139
      %s141 = sshll.u32 [#allocation17], 4
      %s142 = int_to_ptr.vmem [resolvable:$true] %s141
      %147 = dma.hbm_to_vmem [thread:$0]  %s140, 8192, %s142, [#allocation18], 256, 256, 16
    $region41: #{tpu_custom_call.1} parent=1 // pred_fallthru
      _
    // Predicated region
    $region42: #{tpu_custom_call.1} parent=1 // pred_check
      _
    $region43: #{tpu_custom_call.1} parent=1 // pred_check_branch
      %149 = sbr.rel (0) target = $region45
    $region44: #{tpu_custom_call.1} parent=1 // pred_region
      _
    $region45: #{tpu_custom_call.1} parent=1 // pred_fallthru
      _
    // Predicated region
    $region46: #{tpu_custom_call.1} parent=1 // pred_check
      _
    $region47: #{tpu_custom_call.1} parent=1 // pred_check_branch
      %151 = sbr.rel (0) target = $region49
    $region48: #{tpu_custom_call.1} parent=1 // pred_region
      %153 = vsyncadd [#allocation18], 0
      %s154 = sshll.u32 %s11, 4
      %s155 = int_to_ptr.hbm [resolvable:$true] %s154
      %s156 = sshll.u32 [#allocation19], 4
      %s157 = int_to_ptr.vmem [resolvable:$true] %s156
      %162 = dma.hbm_to_vmem [thread:$0]  %s155, 28672, %s157, [#allocation18], 448, 448, 28
    $region49: #{tpu_custom_call.1} parent=1 // pred_fallthru
      _
    // Predicated region
    $region50: #{tpu_custom_call.1} parent=1 // pred_check
      _
    $region51: #{tpu_custom_call.1} parent=1 // pred_check_branch
      %164 = sbr.rel (0) target = $region53
    $region52: #{tpu_custom_call.1} parent=1 // pred_region
      _
    $region53: #{tpu_custom_call.1} parent=1 // pred_fallthru
      _
    // Predicated region
    $region54: #{tpu_custom_call.1} parent=1 // pred_check
      _
    $region55: #{tpu_custom_call.1} parent=1 // pred_check_branch
      %166 = sbr.rel (0) target = $region57
    $region56: #{tpu_custom_call.1} parent=1 // pred_region
      %168 = dma.done [#allocation3], 448
    $region57: #{tpu_custom_call.1} parent=1 // pred_fallthru
      _
    // Predicated region
    $region58: #{tpu_custom_call.1} parent=1 // pred_check
      _
    $region59: #{tpu_custom_call.1} parent=1 // pred_check_branch
      %170 = sbr.rel (0) target = $region61
    $region60: #{tpu_custom_call.1} parent=1 // pred_region
      %172 = dma.done [#allocation6], 28672
    $region61: #{tpu_custom_call.1} parent=1 // pred_fallthru
      _
    // Predicated region
    $region62: #{tpu_custom_call.1} parent=1 // pred_check
      _
    $region63: #{tpu_custom_call.1} parent=1 // pred_check_branch
      %174 = sbr.rel (0) target = $region65
    $region64: #{tpu_custom_call.1} parent=1 // pred_region
      %176 = dma.done [#allocation6], 64
    $region65: #{tpu_custom_call.1} parent=1 // pred_fallthru
      _
    // Predicated region
    $region66: #{tpu_custom_call.1} parent=1 // pred_check
      _
    $region67: #{tpu_custom_call.1} parent=1 // pred_check_branch
      %178 = sbr.rel (0) target = $region69
    $region68: #{tpu_custom_call.1} parent=1 // pred_region
      %180 = dma.done [#allocation9], 8192
    $region69: #{tpu_custom_call.1} parent=1 // pred_fallthru
      _
    // Predicated region
    $region70: #{tpu_custom_call.1} parent=1 // pred_check
      _
    $region71: #{tpu_custom_call.1} parent=1 // pred_check_branch
      %182 = sbr.rel (0) target = $region73
    $region72: #{tpu_custom_call.1} parent=1 // pred_region
      %184 = dma.done [#allocation9], 32
    $region73: #{tpu_custom_call.1} parent=1 // pred_fallthru
      _
    // Predicated region
    $region74: #{tpu_custom_call.1} parent=1 // pred_check
      _
    $region75: #{tpu_custom_call.1} parent=1 // pred_check_branch
      %186 = sbr.rel (0) target = $region77
    $region76: #{tpu_custom_call.1} parent=1 // pred_region
      %188 = dma.done [#allocation12], 2048
    $region77: #{tpu_custom_call.1} parent=1 // pred_fallthru
      _
    // Predicated region
    $region78: #{tpu_custom_call.1} parent=1 // pred_check
      _
    $region79: #{tpu_custom_call.1} parent=1 // pred_check_branch
      %190 = sbr.rel (0) target = $region81
    $region80: #{tpu_custom_call.1} parent=1 // pred_region
      %192 = dma.done [#allocation12], 16
    $region81: #{tpu_custom_call.1} parent=1 // pred_fallthru
      _
    // Predicated region
    $region82: #{tpu_custom_call.1} parent=1 // pred_check
      _
    $region83: #{tpu_custom_call.1} parent=1 // pred_check_branch
      %194 = sbr.rel (0) target = $region85
    $region84: #{tpu_custom_call.1} parent=1 // pred_region
      %196 = dma.done [#allocation15], 2048
    $region85: #{tpu_custom_call.1} parent=1 // pred_fallthru
      _
    // Predicated region
    $region86: #{tpu_custom_call.1} parent=1 // pred_check
      _
    $region87: #{tpu_custom_call.1} parent=1 // pred_check_branch
      %198 = sbr.rel (0) target = $region89
    $region88: #{tpu_custom_call.1} parent=1 // pred_region
      %200 = dma.done [#allocation15], 32
    $region89: #{tpu_custom_call.1} parent=1 // pred_fallthru
      _
    // Predicated region
    $region90: #{tpu_custom_call.1} parent=1 // pred_check
      _
    $region91: #{tpu_custom_call.1} parent=1 // pred_check_branch
      %202 = sbr.rel (0) target = $region93
    $region92: #{tpu_custom_call.1} parent=1 // pred_region
      %204 = dma.done [#allocation18], 8192
    $region93: #{tpu_custom_call.1} parent=1 // pred_fallthru
      _
    // Predicated region
    $region94: #{tpu_custom_call.1} parent=1 // pred_check
      _
    $region95: #{tpu_custom_call.1} parent=1 // pred_check_branch
      %206 = sbr.rel (0) target = $region97
    $region96: #{tpu_custom_call.1} parent=1 // pred_region
      %208 = dma.done [#allocation18], 28672
    $region97: #{tpu_custom_call.1} parent=1 // pred_fallthru
      _
    %v209 = vld [vmem:[#allocation2] sm:$0xff]
    %v210 = vld [vmem:[#allocation2 + $0x8] sm:$0xff]
    %v211 = vld [vmem:[#allocation2 + $0x10] sm:$0xff]
    %v212 = vld [vmem:[#allocation2 + $0x18] sm:$0xf]
    %v213 = vld [vmem:[#allocation5] sm:$0xff]
    %v214 = vld [vmem:[#allocation5 + $0x8] sm:$0xff]
    %v215 = vld [vmem:[#allocation5 + $0x10] sm:$0xff]
    %v216 = vld [vmem:[#allocation5 + $0x18] sm:$0xff]
    %v217 = vld [vmem:[#allocation5 + $0x20] sm:$0xff]
    %v218 = vld [vmem:[#allocation5 + $0x28] sm:$0xff]
    %v219 = vld [vmem:[#allocation5 + $0x30] sm:$0xff]
    %v220 = vld [vmem:[#allocation5 + $0x38] sm:$0xff]
    %v221 = vld [vmem:[#allocation5 + $0x40] sm:$0xff]
    %v222 = vld [vmem:[#allocation5 + $0x48] sm:$0xff]
    %v223 = vld [vmem:[#allocation5 + $0x50] sm:$0xff]
    %v224 = vld [vmem:[#allocation5 + $0x58] sm:$0xff]
    %v225 = vld [vmem:[#allocation5 + $0x60] sm:$0xff]
    %v226 = vld [vmem:[#allocation5 + $0x68] sm:$0xff]
    %v227 = vld [vmem:[#allocation5 + $0x70] sm:$0xff]
    %v228 = vld [vmem:[#allocation5 + $0x78] sm:$0xff]
    %v229 = vld [vmem:[#allocation5 + $0x80] sm:$0xff]
    %v230 = vld [vmem:[#allocation5 + $0x88] sm:$0xff]
    %v231 = vld [vmem:[#allocation5 + $0x90] sm:$0xff]
    %v232 = vld [vmem:[#allocation5 + $0x98] sm:$0xff]
    %v233 = vld [vmem:[#allocation5 + $0xa0] sm:$0xff]
    %v234 = vld [vmem:[#allocation5 + $0xa8] sm:$0xff]
    %v235 = vld [vmem:[#allocation5 + $0xb0] sm:$0xff]
    %v236 = vld [vmem:[#allocation5 + $0xb8] sm:$0xff]
    %v237 = vld [vmem:[#allocation5 + $0xc0] sm:$0xff]
    %v238 = vld [vmem:[#allocation5 + $0xc8] sm:$0xff]
    %v239 = vld [vmem:[#allocation5 + $0xd0] sm:$0xff]
    %v240 = vld [vmem:[#allocation5 + $0xd8] sm:$0xff]
    %v241 = vld [vmem:[#allocation5 + $0xe0] sm:$0xff]
    %v242 = vld [vmem:[#allocation5 + $0xe8] sm:$0xff]
    %v243 = vld [vmem:[#allocation5 + $0xf0] sm:$0xff]
    %v244 = vld [vmem:[#allocation5 + $0xf8] sm:$0xff]
    %v245 = vld [vmem:[#allocation5 + $0x100] sm:$0xff]
    %v246 = vld [vmem:[#allocation5 + $0x108] sm:$0xff]
    %v247 = vld [vmem:[#allocation5 + $0x110] sm:$0xff]
    %v248 = vld [vmem:[#allocation5 + $0x118] sm:$0xff]
    %v249 = vld [vmem:[#allocation5 + $0x120] sm:$0xff]
    %v250 = vld [vmem:[#allocation5 + $0x128] sm:$0xff]
    %v251 = vld [vmem:[#allocation5 + $0x130] sm:$0xff]
    %v252 = vld [vmem:[#allocation5 + $0x138] sm:$0xff]
    %v253 = vld [vmem:[#allocation5 + $0x140] sm:$0xff]
    %v254 = vld [vmem:[#allocation5 + $0x148] sm:$0xff]
    %v255 = vld [vmem:[#allocation5 + $0x150] sm:$0xff]
    %v256 = vld [vmem:[#allocation5 + $0x158] sm:$0xff]
    %v257 = vld [vmem:[#allocation5 + $0x160] sm:$0xff]
    %v258 = vld [vmem:[#allocation5 + $0x168] sm:$0xff]
    %v259 = vld [vmem:[#allocation5 + $0x170] sm:$0xff]
    %v260 = vld [vmem:[#allocation5 + $0x178] sm:$0xff]
    %v261 = vld [vmem:[#allocation5 + $0x180] sm:$0xff]
    %v262 = vld [vmem:[#allocation5 + $0x188] sm:$0xff]
    %v263 = vld [vmem:[#allocation5 + $0x190] sm:$0xff]
    %v264 = vld [vmem:[#allocation5 + $0x198] sm:$0xff]
    %v265 = vld [vmem:[#allocation5 + $0x1a0] sm:$0xff]
    %v266 = vld [vmem:[#allocation5 + $0x1a8] sm:$0xff]
    %v267 = vld [vmem:[#allocation5 + $0x1b0] sm:$0xff]
    %v268 = vld [vmem:[#allocation5 + $0x1b8] sm:$0xff]
    %v269 = vld [vmem:[#allocation5 + $0x1c0] sm:$0xff]
    %v270 = vld [vmem:[#allocation5 + $0x1c8] sm:$0xff]
    %v271 = vld [vmem:[#allocation5 + $0x1d0] sm:$0xff]
    %v272 = vld [vmem:[#allocation5 + $0x1d8] sm:$0xff]
    %v273 = vld [vmem:[#allocation5 + $0x1e0] sm:$0xff]
    %v274 = vld [vmem:[#allocation5 + $0x1e8] sm:$0xff]
    %v275 = vld [vmem:[#allocation5 + $0x1f0] sm:$0xff]
    %v276 = vld [vmem:[#allocation5 + $0x1f8] sm:$0xff]
    %v277 = vld [vmem:[#allocation5 + $0x200] sm:$0xff]
    %v278 = vld [vmem:[#allocation5 + $0x208] sm:$0xff]
    %v279 = vld [vmem:[#allocation5 + $0x210] sm:$0xff]
    %v280 = vld [vmem:[#allocation5 + $0x218] sm:$0xff]
    %v281 = vld [vmem:[#allocation5 + $0x220] sm:$0xff]
    %v282 = vld [vmem:[#allocation5 + $0x228] sm:$0xff]
    %v283 = vld [vmem:[#allocation5 + $0x230] sm:$0xff]
    %v284 = vld [vmem:[#allocation5 + $0x238] sm:$0xff]
    %v285 = vld [vmem:[#allocation5 + $0x240] sm:$0xff]
    %v286 = vld [vmem:[#allocation5 + $0x248] sm:$0xff]
    %v287 = vld [vmem:[#allocation5 + $0x250] sm:$0xff]
    %v288 = vld [vmem:[#allocation5 + $0x258] sm:$0xff]
    %v289 = vld [vmem:[#allocation5 + $0x260] sm:$0xff]
    %v290 = vld [vmem:[#allocation5 + $0x268] sm:$0xff]
    %v291 = vld [vmem:[#allocation5 + $0x270] sm:$0xff]
    %v292 = vld [vmem:[#allocation5 + $0x278] sm:$0xff]
    %v293 = vld [vmem:[#allocation5 + $0x280] sm:$0xff]
    %v294 = vld [vmem:[#allocation5 + $0x288] sm:$0xff]
    %v295 = vld [vmem:[#allocation5 + $0x290] sm:$0xff]
    %v296 = vld [vmem:[#allocation5 + $0x298] sm:$0xff]
    %v297 = vld [vmem:[#allocation5 + $0x2a0] sm:$0xff]
    %v298 = vld [vmem:[#allocation5 + $0x2a8] sm:$0xff]
    %v299 = vld [vmem:[#allocation5 + $0x2b0] sm:$0xff]
    %v300 = vld [vmem:[#allocation5 + $0x2b8] sm:$0xff]
    %v301 = vld [vmem:[#allocation5 + $0x2c0] sm:$0xff]
    %v302 = vld [vmem:[#allocation5 + $0x2c8] sm:$0xff]
    %v303 = vld [vmem:[#allocation5 + $0x2d0] sm:$0xff]
    %v304 = vld [vmem:[#allocation5 + $0x2d8] sm:$0xff]
    %v305 = vld [vmem:[#allocation5 + $0x2e0] sm:$0xff]
    %v306 = vld [vmem:[#allocation5 + $0x2e8] sm:$0xff]
    %v307 = vld [vmem:[#allocation5 + $0x2f0] sm:$0xff]
    %v308 = vld [vmem:[#allocation5 + $0x2f8] sm:$0xff]
    %v309 = vld [vmem:[#allocation5 + $0x300] sm:$0xff]
    %v310 = vld [vmem:[#allocation5 + $0x308] sm:$0xff]
    %v311 = vld [vmem:[#allocation5 + $0x310] sm:$0xff]
    %v312 = vld [vmem:[#allocation5 + $0x318] sm:$0xff]
    %v313 = vld [vmem:[#allocation5 + $0x320] sm:$0xff]
    %v314 = vld [vmem:[#allocation5 + $0x328] sm:$0xff]
    %v315 = vld [vmem:[#allocation5 + $0x330] sm:$0xff]
    %v316 = vld [vmem:[#allocation5 + $0x338] sm:$0xff]
    %v317 = vld [vmem:[#allocation5 + $0x340] sm:$0xff]
    %v318 = vld [vmem:[#allocation5 + $0x348] sm:$0xff]
    %v319 = vld [vmem:[#allocation5 + $0x350] sm:$0xff]
    %v320 = vld [vmem:[#allocation5 + $0x358] sm:$0xff]
    %v321 = vld [vmem:[#allocation5 + $0x360] sm:$0xff]
    %v322 = vld [vmem:[#allocation5 + $0x368] sm:$0xff]
    %v323 = vld [vmem:[#allocation5 + $0x370] sm:$0xff]
    %v324 = vld [vmem:[#allocation5 + $0x378] sm:$0xff]
    %v325 = vld [vmem:[#allocation5 + $0x380] sm:$0xff]
    %v326 = vld [vmem:[#allocation5 + $0x388] sm:$0xff]
    %v327 = vld [vmem:[#allocation5 + $0x390] sm:$0xff]
    %v328 = vld [vmem:[#allocation5 + $0x398] sm:$0xff]
    %v329 = vld [vmem:[#allocation5 + $0x3a0] sm:$0xff]
    %v330 = vld [vmem:[#allocation5 + $0x3a8] sm:$0xff]
    %v331 = vld [vmem:[#allocation5 + $0x3b0] sm:$0xff]
    %v332 = vld [vmem:[#allocation5 + $0x3b8] sm:$0xff]
    %v333 = vld [vmem:[#allocation5 + $0x3c0] sm:$0xff]
    %v334 = vld [vmem:[#allocation5 + $0x3c8] sm:$0xff]
    %v335 = vld [vmem:[#allocation5 + $0x3d0] sm:$0xff]
    %v336 = vld [vmem:[#allocation5 + $0x3d8] sm:$0xff]
    %v337 = vld [vmem:[#allocation5 + $0x3e0] sm:$0xff]
    %v338 = vld [vmem:[#allocation5 + $0x3e8] sm:$0xff]
    %v339 = vld [vmem:[#allocation5 + $0x3f0] sm:$0xff]
    %v340 = vld [vmem:[#allocation5 + $0x3f8] sm:$0xff]
    %v341 = vld [vmem:[#allocation5 + $0x400] sm:$0xff]
    %v342 = vld [vmem:[#allocation5 + $0x408] sm:$0xff]
    %v343 = vld [vmem:[#allocation5 + $0x410] sm:$0xff]
    %v344 = vld [vmem:[#allocation5 + $0x418] sm:$0xff]
    %v345 = vld [vmem:[#allocation5 + $0x420] sm:$0xff]
    %v346 = vld [vmem:[#allocation5 + $0x428] sm:$0xff]
    %v347 = vld [vmem:[#allocation5 + $0x430] sm:$0xff]
    %v348 = vld [vmem:[#allocation5 + $0x438] sm:$0xff]
    %v349 = vld [vmem:[#allocation5 + $0x440] sm:$0xff]
    %v350 = vld [vmem:[#allocation5 + $0x448] sm:$0xff]
    %v351 = vld [vmem:[#allocation5 + $0x450] sm:$0xff]
    %v352 = vld [vmem:[#allocation5 + $0x458] sm:$0xff]
    %v353 = vld [vmem:[#allocation5 + $0x460] sm:$0xff]
    %v354 = vld [vmem:[#allocation5 + $0x468] sm:$0xff]
    %v355 = vld [vmem:[#allocation5 + $0x470] sm:$0xff]
    %v356 = vld [vmem:[#allocation5 + $0x478] sm:$0xff]
    %v357 = vld [vmem:[#allocation5 + $0x480] sm:$0xff]
    %v358 = vld [vmem:[#allocation5 + $0x488] sm:$0xff]
    %v359 = vld [vmem:[#allocation5 + $0x490] sm:$0xff]
    %v360 = vld [vmem:[#allocation5 + $0x498] sm:$0xff]
    %v361 = vld [vmem:[#allocation5 + $0x4a0] sm:$0xff]
    %v362 = vld [vmem:[#allocation5 + $0x4a8] sm:$0xff]
    %v363 = vld [vmem:[#allocation5 + $0x4b0] sm:$0xff]
    %v364 = vld [vmem:[#allocation5 + $0x4b8] sm:$0xff]
    %v365 = vld [vmem:[#allocation5 + $0x4c0] sm:$0xff]
    %v366 = vld [vmem:[#allocation5 + $0x4c8] sm:$0xff]
    %v367 = vld [vmem:[#allocation5 + $0x4d0] sm:$0xff]
    %v368 = vld [vmem:[#allocation5 + $0x4d8] sm:$0xff]
    %v369 = vld [vmem:[#allocation5 + $0x4e0] sm:$0xff]
    %v370 = vld [vmem:[#allocation5 + $0x4e8] sm:$0xff]
    %v371 = vld [vmem:[#allocation5 + $0x4f0] sm:$0xff]
    %v372 = vld [vmem:[#allocation5 + $0x4f8] sm:$0xff]
    %v373 = vld [vmem:[#allocation5 + $0x500] sm:$0xff]
    %v374 = vld [vmem:[#allocation5 + $0x508] sm:$0xff]
    %v375 = vld [vmem:[#allocation5 + $0x510] sm:$0xff]
    %v376 = vld [vmem:[#allocation5 + $0x518] sm:$0xff]
    %v377 = vld [vmem:[#allocation5 + $0x520] sm:$0xff]
    %v378 = vld [vmem:[#allocation5 + $0x528] sm:$0xff]
    %v379 = vld [vmem:[#allocation5 + $0x530] sm:$0xff]
    %v380 = vld [vmem:[#allocation5 + $0x538] sm:$0xff]
    %v381 = vld [vmem:[#allocation5 + $0x540] sm:$0xff]
    %v382 = vld [vmem:[#allocation5 + $0x548] sm:$0xff]
    %v383 = vld [vmem:[#allocation5 + $0x550] sm:$0xff]
    %v384 = vld [vmem:[#allocation5 + $0x558] sm:$0xff]
    %v385 = vld [vmem:[#allocation5 + $0x560] sm:$0xff]
    %v386 = vld [vmem:[#allocation5 + $0x568] sm:$0xff]
    %v387 = vld [vmem:[#allocation5 + $0x570] sm:$0xff]
    %v388 = vld [vmem:[#allocation5 + $0x578] sm:$0xff]
    %v389 = vld [vmem:[#allocation5 + $0x580] sm:$0xff]
    %v390 = vld [vmem:[#allocation5 + $0x588] sm:$0xff]
    %v391 = vld [vmem:[#allocation5 + $0x590] sm:$0xff]
    %v392 = vld [vmem:[#allocation5 + $0x598] sm:$0xff]
    %v393 = vld [vmem:[#allocation5 + $0x5a0] sm:$0xff]
    %v394 = vld [vmem:[#allocation5 + $0x5a8] sm:$0xff]
    %v395 = vld [vmem:[#allocation5 + $0x5b0] sm:$0xff]
    %v396 = vld [vmem:[#allocation5 + $0x5b8] sm:$0xff]
    %v397 = vld [vmem:[#allocation5 + $0x5c0] sm:$0xff]
    %v398 = vld [vmem:[#allocation5 + $0x5c8] sm:$0xff]
    %v399 = vld [vmem:[#allocation5 + $0x5d0] sm:$0xff]
    %v400 = vld [vmem:[#allocation5 + $0x5d8] sm:$0xff]
    %v401 = vld [vmem:[#allocation5 + $0x5e0] sm:$0xff]
    %v402 = vld [vmem:[#allocation5 + $0x5e8] sm:$0xff]
    %v403 = vld [vmem:[#allocation5 + $0x5f0] sm:$0xff]
    %v404 = vld [vmem:[#allocation5 + $0x5f8] sm:$0xff]
    %v405 = vld [vmem:[#allocation5 + $0x600] sm:$0xff]
    %v406 = vld [vmem:[#allocation5 + $0x608] sm:$0xff]
    %v407 = vld [vmem:[#allocation5 + $0x610] sm:$0xff]
    %v408 = vld [vmem:[#allocation5 + $0x618] sm:$0xff]
    %v409 = vld [vmem:[#allocation5 + $0x620] sm:$0xff]
    %v410 = vld [vmem:[#allocation5 + $0x628] sm:$0xff]
    %v411 = vld [vmem:[#allocation5 + $0x630] sm:$0xff]
    %v412 = vld [vmem:[#allocation5 + $0x638] sm:$0xff]
    %v413 = vld [vmem:[#allocation5 + $0x640] sm:$0xff]
    %v414 = vld [vmem:[#allocation5 + $0x648] sm:$0xff]
    %v415 = vld [vmem:[#allocation5 + $0x650] sm:$0xff]
    %v416 = vld [vmem:[#allocation5 + $0x658] sm:$0xff]
    %v417 = vld [vmem:[#allocation5 + $0x660] sm:$0xff]
    %v418 = vld [vmem:[#allocation5 + $0x668] sm:$0xff]
    %v419 = vld [vmem:[#allocation5 + $0x670] sm:$0xff]
    %v420 = vld [vmem:[#allocation5 + $0x678] sm:$0xff]
    %v421 = vld [vmem:[#allocation5 + $0x680] sm:$0xff]
    %v422 = vld [vmem:[#allocation5 + $0x688] sm:$0xff]
    %v423 = vld [vmem:[#allocation5 + $0x690] sm:$0xff]
    %v424 = vld [vmem:[#allocation5 + $0x698] sm:$0xff]
    %v425 = vld [vmem:[#allocation5 + $0x6a0] sm:$0xff]
    %v426 = vld [vmem:[#allocation5 + $0x6a8] sm:$0xff]
    %v427 = vld [vmem:[#allocation5 + $0x6b0] sm:$0xff]
    %v428 = vld [vmem:[#allocation5 + $0x6b8] sm:$0xff]
    %v429 = vld [vmem:[#allocation5 + $0x6c0] sm:$0xff]
    %v430 = vld [vmem:[#allocation5 + $0x6c8] sm:$0xff]
    %v431 = vld [vmem:[#allocation5 + $0x6d0] sm:$0xff]
    %v432 = vld [vmem:[#allocation5 + $0x6d8] sm:$0xff]
    %v433 = vld [vmem:[#allocation5 + $0x6e0] sm:$0xff]
    %v434 = vld [vmem:[#allocation5 + $0x6e8] sm:$0xff]
    %v435 = vld [vmem:[#allocation5 + $0x6f0] sm:$0xff]
    %v436 = vld [vmem:[#allocation5 + $0x6f8] sm:$0xff]
    %v437 = vld [vmem:[#allocation7] sm:$0xf]
    %v439 = vperm.slane %v437, 0
    %v440 = vperm.slane %v437, 1
    %v441 = vperm.slane %v437, 2
    %v442 = vperm.slane %v437, 3
    %v451 = vunpack.c.l.b16 %v209
    %v452 = vunpack.c.h.b16 %v209
    %v453 = vunpack.c.l.b16 %v210
    %v454 = vunpack.c.h.b16 %v210
    %v455 = vunpack.c.l.b16 %v211
    %v456 = vunpack.c.h.b16 %v211
    %v457 = vunpack.c.l.b16 %v212
    %v458 = vpack.c.b16 %v451, %v451
    %v459 = vpack.c.b16 %v452, %v452
    %v460 = vpack.c.b16 %v453, %v453
    %v461 = vpack.c.b16 %v454, %v454
    %v462 = vpack.c.b16 %v455, %v455
    %v463 = vpack.c.b16 %v456, %v456
    %v464 = vpack.c.b16 %v457, %v457
    %v696 = vunpack.c.l.b16 %v213
    %v697 = vunpack.c.h.b16 %v213
    %v698 = vunpack.c.l.b16 %v214
    %v699 = vunpack.c.h.b16 %v214
    %v700 = vunpack.c.l.b16 %v215
    %v701 = vunpack.c.h.b16 %v215
    %v702 = vunpack.c.l.b16 %v216
    %v703 = vunpack.c.h.b16 %v216
    %v704 = vunpack.c.l.b16 %v217
    %v705 = vunpack.c.h.b16 %v217
    %v706 = vunpack.c.l.b16 %v218
    %v707 = vunpack.c.h.b16 %v218
    %v708 = vunpack.c.l.b16 %v219
    %v709 = vunpack.c.h.b16 %v219
    %v710 = vunpack.c.l.b16 %v220
    %v711 = vunpack.c.h.b16 %v220
    %v712 = vunpack.c.l.b16 %v221
    %v713 = vunpack.c.h.b16 %v221
    %v714 = vunpack.c.l.b16 %v222
    %v715 = vunpack.c.h.b16 %v222
    %v716 = vunpack.c.l.b16 %v223
    %v717 = vunpack.c.h.b16 %v223
    %v718 = vunpack.c.l.b16 %v224
    %v719 = vunpack.c.h.b16 %v224
    %v720 = vunpack.c.l.b16 %v225
    %v721 = vunpack.c.h.b16 %v225
    %v722 = vunpack.c.l.b16 %v226
    %v723 = vunpack.c.h.b16 %v226
    %v724 = vunpack.c.l.b16 %v227
    %v725 = vunpack.c.h.b16 %v227
    %v726 = vunpack.c.l.b16 %v228
    %v727 = vunpack.c.h.b16 %v228
    %v728 = vunpack.c.l.b16 %v229
    %v729 = vunpack.c.h.b16 %v229
    %v730 = vunpack.c.l.b16 %v230
    %v731 = vunpack.c.h.b16 %v230
    %v732 = vunpack.c.l.b16 %v231
    %v733 = vunpack.c.h.b16 %v231
    %v734 = vunpack.c.l.b16 %v232
    %v735 = vunpack.c.h.b16 %v232
    %v736 = vunpack.c.l.b16 %v233
    %v737 = vunpack.c.h.b16 %v233
    %v738 = vunpack.c.l.b16 %v234
    %v739 = vunpack.c.h.b16 %v234
    %v740 = vunpack.c.l.b16 %v235
    %v741 = vunpack.c.h.b16 %v235
    %v742 = vunpack.c.l.b16 %v236
    %v743 = vunpack.c.h.b16 %v236
    %v744 = vunpack.c.l.b16 %v237
    %v745 = vunpack.c.h.b16 %v237
    %v746 = vunpack.c.l.b16 %v238
    %v747 = vunpack.c.h.b16 %v238
    %v748 = vunpack.c.l.b16 %v239
    %v749 = vunpack.c.h.b16 %v239
    %v750 = vunpack.c.l.b16 %v240
    %v751 = vunpack.c.h.b16 %v240
    %v752 = vunpack.c.l.b16 %v241
    %v753 = vunpack.c.h.b16 %v241
    %v754 = vunpack.c.l.b16 %v242
    %v755 = vunpack.c.h.b16 %v242
    %v756 = vunpack.c.l.b16 %v243
    %v757 = vunpack.c.h.b16 %v243
    %v758 = vunpack.c.l.b16 %v244
    %v759 = vunpack.c.h.b16 %v244
    %v760 = vunpack.c.l.b16 %v245
    %v761 = vunpack.c.h.b16 %v245
    %v762 = vunpack.c.l.b16 %v246
    %v763 = vunpack.c.h.b16 %v246
    %v764 = vunpack.c.l.b16 %v247
    %v765 = vunpack.c.h.b16 %v247
    %v766 = vunpack.c.l.b16 %v248
    %v767 = vunpack.c.h.b16 %v248
    %v768 = vunpack.c.l.b16 %v249
    %v769 = vunpack.c.h.b16 %v249
    %v770 = vunpack.c.l.b16 %v250
    %v771 = vunpack.c.h.b16 %v250
    %v772 = vunpack.c.l.b16 %v251
    %v773 = vunpack.c.h.b16 %v251
    %v774 = vunpack.c.l.b16 %v252
    %v775 = vunpack.c.h.b16 %v252
    %v776 = vunpack.c.l.b16 %v253
    %v777 = vunpack.c.h.b16 %v253
    %v778 = vunpack.c.l.b16 %v254
    %v779 = vunpack.c.h.b16 %v254
    %v780 = vunpack.c.l.b16 %v255
    %v781 = vunpack.c.h.b16 %v255
    %v782 = vunpack.c.l.b16 %v256
    %v783 = vunpack.c.h.b16 %v256
    %v784 = vunpack.c.l.b16 %v257
    %v785 = vunpack.c.h.b16 %v257
    %v786 = vunpack.c.l.b16 %v258
    %v787 = vunpack.c.h.b16 %v258
    %v788 = vunpack.c.l.b16 %v259
    %v789 = vunpack.c.h.b16 %v259
    %v790 = vunpack.c.l.b16 %v260
    %v791 = vunpack.c.h.b16 %v260
    %v792 = vunpack.c.l.b16 %v261
    %v793 = vunpack.c.h.b16 %v261
    %v794 = vunpack.c.l.b16 %v262
    %v795 = vunpack.c.h.b16 %v262
    %v796 = vunpack.c.l.b16 %v263
    %v797 = vunpack.c.h.b16 %v263
    %v798 = vunpack.c.l.b16 %v264
    %v799 = vunpack.c.h.b16 %v264
    %v800 = vunpack.c.l.b16 %v265
    %v801 = vunpack.c.h.b16 %v265
    %v802 = vunpack.c.l.b16 %v266
    %v803 = vunpack.c.h.b16 %v266
    %v804 = vunpack.c.l.b16 %v267
    %v805 = vunpack.c.h.b16 %v267
    %v806 = vunpack.c.l.b16 %v268
    %v807 = vunpack.c.h.b16 %v268
    %v808 = vunpack.c.l.b16 %v269
    %v809 = vunpack.c.h.b16 %v269
    %v810 = vunpack.c.l.b16 %v270
    %v811 = vunpack.c.h.b16 %v270
    %v812 = vunpack.c.l.b16 %v271
    %v813 = vunpack.c.h.b16 %v271
    %v814 = vunpack.c.l.b16 %v272
    %v815 = vunpack.c.h.b16 %v272
    %v816 = vunpack.c.l.b16 %v273
    %v817 = vunpack.c.h.b16 %v273
    %v818 = vunpack.c.l.b16 %v274
    %v819 = vunpack.c.h.b16 %v274
    %v820 = vunpack.c.l.b16 %v275
    %v821 = vunpack.c.h.b16 %v275
    %v822 = vunpack.c.l.b16 %v276
    %v823 = vunpack.c.h.b16 %v276
    %v824 = vunpack.c.l.b16 %v277
    %v825 = vunpack.c.h.b16 %v277
    %v826 = vunpack.c.l.b16 %v278
    %v827 = vunpack.c.h.b16 %v278
    %v828 = vunpack.c.l.b16 %v279
    %v829 = vunpack.c.h.b16 %v279
    %v830 = vunpack.c.l.b16 %v280
    %v831 = vunpack.c.h.b16 %v280
    %v832 = vunpack.c.l.b16 %v281
    %v833 = vunpack.c.h.b16 %v281
    %v834 = vunpack.c.l.b16 %v282
    %v835 = vunpack.c.h.b16 %v282
    %v836 = vunpack.c.l.b16 %v283
    %v837 = vunpack.c.h.b16 %v283
    %v838 = vunpack.c.l.b16 %v284
    %v839 = vunpack.c.h.b16 %v284
    %v840 = vunpack.c.l.b16 %v285
    %v841 = vunpack.c.h.b16 %v285
    %v842 = vunpack.c.l.b16 %v286
    %v843 = vunpack.c.h.b16 %v286
    %v844 = vunpack.c.l.b16 %v287
    %v845 = vunpack.c.h.b16 %v287
    %v846 = vunpack.c.l.b16 %v288
    %v847 = vunpack.c.h.b16 %v288
    %v848 = vunpack.c.l.b16 %v289
    %v849 = vunpack.c.h.b16 %v289
    %v850 = vunpack.c.l.b16 %v290
    %v851 = vunpack.c.h.b16 %v290
    %v852 = vunpack.c.l.b16 %v291
    %v853 = vunpack.c.h.b16 %v291
    %v854 = vunpack.c.l.b16 %v292
    %v855 = vunpack.c.h.b16 %v292
    %v856 = vunpack.c.l.b16 %v293
    %v857 = vunpack.c.h.b16 %v293
    %v858 = vunpack.c.l.b16 %v294
    %v859 = vunpack.c.h.b16 %v294
    %v860 = vunpack.c.l.b16 %v295
    %v861 = vunpack.c.h.b16 %v295
    %v862 = vunpack.c.l.b16 %v296
    %v863 = vunpack.c.h.b16 %v296
    %v864 = vunpack.c.l.b16 %v297
    %v865 = vunpack.c.h.b16 %v297
    %v866 = vunpack.c.l.b16 %v298
    %v867 = vunpack.c.h.b16 %v298
    %v868 = vunpack.c.l.b16 %v299
    %v869 = vunpack.c.h.b16 %v299
    %v870 = vunpack.c.l.b16 %v300
    %v871 = vunpack.c.h.b16 %v300
    %v872 = vunpack.c.l.b16 %v301
    %v873 = vunpack.c.h.b16 %v301
    %v874 = vunpack.c.l.b16 %v302
    %v875 = vunpack.c.h.b16 %v302
    %v876 = vunpack.c.l.b16 %v303
    %v877 = vunpack.c.h.b16 %v303
    %v878 = vunpack.c.l.b16 %v304
    %v879 = vunpack.c.h.b16 %v304
    %v880 = vunpack.c.l.b16 %v305
    %v881 = vunpack.c.h.b16 %v305
    %v882 = vunpack.c.l.b16 %v306
    %v883 = vunpack.c.h.b16 %v306
    %v884 = vunpack.c.l.b16 %v307
    %v885 = vunpack.c.h.b16 %v307
    %v886 = vunpack.c.l.b16 %v308
    %v887 = vunpack.c.h.b16 %v308
    %v888 = vunpack.c.l.b16 %v309
    %v889 = vunpack.c.h.b16 %v309
    %v890 = vunpack.c.l.b16 %v310
    %v891 = vunpack.c.h.b16 %v310
    %v892 = vunpack.c.l.b16 %v311
    %v893 = vunpack.c.h.b16 %v311
    %v894 = vunpack.c.l.b16 %v312
    %v895 = vunpack.c.h.b16 %v312
    %v896 = vunpack.c.l.b16 %v313
    %v897 = vunpack.c.h.b16 %v313
    %v898 = vunpack.c.l.b16 %v314
    %v899 = vunpack.c.h.b16 %v314
    %v900 = vunpack.c.l.b16 %v315
    %v901 = vunpack.c.h.b16 %v315
    %v902 = vunpack.c.l.b16 %v316
    %v903 = vunpack.c.h.b16 %v316
    %v904 = vunpack.c.l.b16 %v317
    %v905 = vunpack.c.h.b16 %v317
    %v906 = vunpack.c.l.b16 %v318
    %v907 = vunpack.c.h.b16 %v318
    %v908 = vunpack.c.l.b16 %v319
    %v909 = vunpack.c.h.b16 %v319
    %v910 = vunpack.c.l.b16 %v320
    %v911 = vunpack.c.h.b16 %v320
    %v912 = vunpack.c.l.b16 %v321
    %v913 = vunpack.c.h.b16 %v321
    %v914 = vunpack.c.l.b16 %v322
    %v915 = vunpack.c.h.b16 %v322
    %v916 = vunpack.c.l.b16 %v323
    %v917 = vunpack.c.h.b16 %v323
    %v918 = vunpack.c.l.b16 %v324
    %v919 = vunpack.c.h.b16 %v324
    %v920 = vunpack.c.l.b16 %v325
    %v921 = vunpack.c.h.b16 %v325
    %v922 = vunpack.c.l.b16 %v326
    %v923 = vunpack.c.h.b16 %v326
    %v924 = vunpack.c.l.b16 %v327
    %v925 = vunpack.c.h.b16 %v327
    %v926 = vunpack.c.l.b16 %v328
    %v927 = vunpack.c.h.b16 %v328
    %v928 = vunpack.c.l.b16 %v329
    %v929 = vunpack.c.h.b16 %v329
    %v930 = vunpack.c.l.b16 %v330
    %v931 = vunpack.c.h.b16 %v330
    %v932 = vunpack.c.l.b16 %v331
    %v933 = vunpack.c.h.b16 %v331
    %v934 = vunpack.c.l.b16 %v332
    %v935 = vunpack.c.h.b16 %v332
    %v936 = vunpack.c.l.b16 %v333
    %v937 = vunpack.c.h.b16 %v333
    %v938 = vunpack.c.l.b16 %v334
    %v939 = vunpack.c.h.b16 %v334
    %v940 = vunpack.c.l.b16 %v335
    %v941 = vunpack.c.h.b16 %v335
    %v942 = vunpack.c.l.b16 %v336
    %v943 = vunpack.c.h.b16 %v336
    %v944 = vunpack.c.l.b16 %v337
    %v945 = vunpack.c.h.b16 %v337
    %v946 = vunpack.c.l.b16 %v338
    %v947 = vunpack.c.h.b16 %v338
    %v948 = vunpack.c.l.b16 %v339
    %v949 = vunpack.c.h.b16 %v339
    %v950 = vunpack.c.l.b16 %v340
    %v951 = vunpack.c.h.b16 %v340
    %v952 = vunpack.c.l.b16 %v341
    %v953 = vunpack.c.h.b16 %v341
    %v954 = vunpack.c.l.b16 %v342
    %v955 = vunpack.c.h.b16 %v342
    %v956 = vunpack.c.l.b16 %v343
    %v957 = vunpack.c.h.b16 %v343
    %v958 = vunpack.c.l.b16 %v344
    %v959 = vunpack.c.h.b16 %v344
    %v960 = vunpack.c.l.b16 %v345
    %v961 = vunpack.c.h.b16 %v345
    %v962 = vunpack.c.l.b16 %v346
    %v963 = vunpack.c.h.b16 %v346
    %v964 = vunpack.c.l.b16 %v347
    %v965 = vunpack.c.h.b16 %v347
    %v966 = vunpack.c.l.b16 %v348
    %v967 = vunpack.c.h.b16 %v348
    %v968 = vunpack.c.l.b16 %v349
    %v969 = vunpack.c.h.b16 %v349
    %v970 = vunpack.c.l.b16 %v350
    %v971 = vunpack.c.h.b16 %v350
    %v972 = vunpack.c.l.b16 %v351
    %v973 = vunpack.c.h.b16 %v351
    %v974 = vunpack.c.l.b16 %v352
    %v975 = vunpack.c.h.b16 %v352
    %v976 = vunpack.c.l.b16 %v353
    %v977 = vunpack.c.h.b16 %v353
    %v978 = vunpack.c.l.b16 %v354
    %v979 = vunpack.c.h.b16 %v354
    %v980 = vunpack.c.l.b16 %v355
    %v981 = vunpack.c.h.b16 %v355
    %v982 = vunpack.c.l.b16 %v356
    %v983 = vunpack.c.h.b16 %v356
    %v984 = vunpack.c.l.b16 %v357
    %v985 = vunpack.c.h.b16 %v357
    %v986 = vunpack.c.l.b16 %v358
    %v987 = vunpack.c.h.b16 %v358
    %v988 = vunpack.c.l.b16 %v359
    %v989 = vunpack.c.h.b16 %v359
    %v990 = vunpack.c.l.b16 %v360
    %v991 = vunpack.c.h.b16 %v360
    %v992 = vunpack.c.l.b16 %v361
    %v993 = vunpack.c.h.b16 %v361
    %v994 = vunpack.c.l.b16 %v362
    %v995 = vunpack.c.h.b16 %v362
    %v996 = vunpack.c.l.b16 %v363
    %v997 = vunpack.c.h.b16 %v363
    %v998 = vunpack.c.l.b16 %v364
    %v999 = vunpack.c.h.b16 %v364
    %v1000 = vunpack.c.l.b16 %v365
    %v1001 = vunpack.c.h.b16 %v365
    %v1002 = vunpack.c.l.b16 %v366
    %v1003 = vunpack.c.h.b16 %v366
    %v1004 = vunpack.c.l.b16 %v367
    %v1005 = vunpack.c.h.b16 %v367
    %v1006 = vunpack.c.l.b16 %v368
    %v1007 = vunpack.c.h.b16 %v368
    %v1008 = vunpack.c.l.b16 %v369
    %v1009 = vunpack.c.h.b16 %v369
    %v1010 = vunpack.c.l.b16 %v370
    %v1011 = vunpack.c.h.b16 %v370
    %v1012 = vunpack.c.l.b16 %v371
    %v1013 = vunpack.c.h.b16 %v371
    %v1014 = vunpack.c.l.b16 %v372
    %v1015 = vunpack.c.h.b16 %v372
    %v1016 = vunpack.c.l.b16 %v373
    %v1017 = vunpack.c.h.b16 %v373
    %v1018 = vunpack.c.l.b16 %v374
    %v1019 = vunpack.c.h.b16 %v374
    %v1020 = vunpack.c.l.b16 %v375
    %v1021 = vunpack.c.h.b16 %v375
    %v1022 = vunpack.c.l.b16 %v376
    %v1023 = vunpack.c.h.b16 %v376
    %v1024 = vunpack.c.l.b16 %v377
    %v1025 = vunpack.c.h.b16 %v377
    %v1026 = vunpack.c.l.b16 %v378
    %v1027 = vunpack.c.h.b16 %v378
    %v1028 = vunpack.c.l.b16 %v379
    %v1029 = vunpack.c.h.b16 %v379
    %v1030 = vunpack.c.l.b16 %v380
    %v1031 = vunpack.c.h.b16 %v380
    %v1032 = vunpack.c.l.b16 %v381
    %v1033 = vunpack.c.h.b16 %v381
    %v1034 = vunpack.c.l.b16 %v382
    %v1035 = vunpack.c.h.b16 %v382
    %v1036 = vunpack.c.l.b16 %v383
    %v1037 = vunpack.c.h.b16 %v383
    %v1038 = vunpack.c.l.b16 %v384
    %v1039 = vunpack.c.h.b16 %v384
    %v1040 = vunpack.c.l.b16 %v385
    %v1041 = vunpack.c.h.b16 %v385
    %v1042 = vunpack.c.l.b16 %v386
    %v1043 = vunpack.c.h.b16 %v386
    %v1044 = vunpack.c.l.b16 %v387
    %v1045 = vunpack.c.h.b16 %v387
    %v1046 = vunpack.c.l.b16 %v388
    %v1047 = vunpack.c.h.b16 %v388
    %v1048 = vunpack.c.l.b16 %v389
    %v1049 = vunpack.c.h.b16 %v389
    %v1050 = vunpack.c.l.b16 %v390
    %v1051 = vunpack.c.h.b16 %v390
    %v1052 = vunpack.c.l.b16 %v391
    %v1053 = vunpack.c.h.b16 %v391
    %v1054 = vunpack.c.l.b16 %v392
    %v1055 = vunpack.c.h.b16 %v392
    %v1056 = vunpack.c.l.b16 %v393
    %v1057 = vunpack.c.h.b16 %v393
    %v1058 = vunpack.c.l.b16 %v394
    %v1059 = vunpack.c.h.b16 %v394
    %v1060 = vunpack.c.l.b16 %v395
    %v1061 = vunpack.c.h.b16 %v395
    %v1062 = vunpack.c.l.b16 %v396
    %v1063 = vunpack.c.h.b16 %v396
    %v1064 = vunpack.c.l.b16 %v397
    %v1065 = vunpack.c.h.b16 %v397
    %v1066 = vunpack.c.l.b16 %v398
    %v1067 = vunpack.c.h.b16 %v398
    %v1068 = vunpack.c.l.b16 %v399
    %v1069 = vunpack.c.h.b16 %v399
    %v1070 = vunpack.c.l.b16 %v400
    %v1071 = vunpack.c.h.b16 %v400
    %v1072 = vunpack.c.l.b16 %v401
    %v1073 = vunpack.c.h.b16 %v401
    %v1074 = vunpack.c.l.b16 %v402
    %v1075 = vunpack.c.h.b16 %v402
    %v1076 = vunpack.c.l.b16 %v403
    %v1077 = vunpack.c.h.b16 %v403
    %v1078 = vunpack.c.l.b16 %v404
    %v1079 = vunpack.c.h.b16 %v404
    %v1080 = vunpack.c.l.b16 %v405
    %v1081 = vunpack.c.h.b16 %v405
    %v1082 = vunpack.c.l.b16 %v406
    %v1083 = vunpack.c.h.b16 %v406
    %v1084 = vunpack.c.l.b16 %v407
    %v1085 = vunpack.c.h.b16 %v407
    %v1086 = vunpack.c.l.b16 %v408
    %v1087 = vunpack.c.h.b16 %v408
    %v1088 = vunpack.c.l.b16 %v409
    %v1089 = vunpack.c.h.b16 %v409
    %v1090 = vunpack.c.l.b16 %v410
    %v1091 = vunpack.c.h.b16 %v410
    %v1092 = vunpack.c.l.b16 %v411
    %v1093 = vunpack.c.h.b16 %v411
    %v1094 = vunpack.c.l.b16 %v412
    %v1095 = vunpack.c.h.b16 %v412
    %v1096 = vunpack.c.l.b16 %v413
    %v1097 = vunpack.c.h.b16 %v413
    %v1098 = vunpack.c.l.b16 %v414
    %v1099 = vunpack.c.h.b16 %v414
    %v1100 = vunpack.c.l.b16 %v415
    %v1101 = vunpack.c.h.b16 %v415
    %v1102 = vunpack.c.l.b16 %v416
    %v1103 = vunpack.c.h.b16 %v416
    %v1104 = vunpack.c.l.b16 %v417
    %v1105 = vunpack.c.h.b16 %v417
    %v1106 = vunpack.c.l.b16 %v418
    %v1107 = vunpack.c.h.b16 %v418
    %v1108 = vunpack.c.l.b16 %v419
    %v1109 = vunpack.c.h.b16 %v419
    %v1110 = vunpack.c.l.b16 %v420
    %v1111 = vunpack.c.h.b16 %v420
    %v1112 = vunpack.c.l.b16 %v421
    %v1113 = vunpack.c.h.b16 %v421
    %v1114 = vunpack.c.l.b16 %v422
    %v1115 = vunpack.c.h.b16 %v422
    %v1116 = vunpack.c.l.b16 %v423
    %v1117 = vunpack.c.h.b16 %v423
    %v1118 = vunpack.c.l.b16 %v424
    %v1119 = vunpack.c.h.b16 %v424
    %v1120 = vunpack.c.l.b16 %v425
    %v1121 = vunpack.c.h.b16 %v425
    %v1122 = vunpack.c.l.b16 %v426
    %v1123 = vunpack.c.h.b16 %v426
    %v1124 = vunpack.c.l.b16 %v427
    %v1125 = vunpack.c.h.b16 %v427
    %v1126 = vunpack.c.l.b16 %v428
    %v1127 = vunpack.c.h.b16 %v428
    %v1128 = vunpack.c.l.b16 %v429
    %v1129 = vunpack.c.h.b16 %v429
    %v1130 = vunpack.c.l.b16 %v430
    %v1131 = vunpack.c.h.b16 %v430
    %v1132 = vunpack.c.l.b16 %v431
    %v1133 = vunpack.c.h.b16 %v431
    %v1134 = vunpack.c.l.b16 %v432
    %v1135 = vunpack.c.h.b16 %v432
    %v1136 = vunpack.c.l.b16 %v433
    %v1137 = vunpack.c.h.b16 %v433
    %v1138 = vunpack.c.l.b16 %v434
    %v1139 = vunpack.c.h.b16 %v434
    %v1140 = vunpack.c.l.b16 %v435
    %v1141 = vunpack.c.h.b16 %v435
    %v1142 = vunpack.c.l.b16 %v436
    %v1143 = vunpack.c.h.b16 %v436
    %v1144 = vpack.c.b16 %v700, %v696
    %v1145 = vpack.c.b16 %v701, %v697
    %v1146 = vpack.c.b16 %v702, %v698
    %v1147 = vpack.c.b16 %v703, %v699
    %v1148 = vpack.c.b16 %v708, %v704
    %v1149 = vpack.c.b16 %v709, %v705
    %v1150 = vpack.c.b16 %v710, %v706
    %v1151 = vpack.c.b16 %v711, %v707
    %v1152 = vpack.c.b16 %v716, %v712
    %v1153 = vpack.c.b16 %v717, %v713
    %v1154 = vpack.c.b16 %v718, %v714
    %v1155 = vpack.c.b16 %v719, %v715
    %v1156 = vpack.c.b16 %v724, %v720
    %v1157 = vpack.c.b16 %v725, %v721
    %v1158 = vpack.c.b16 %v726, %v722
    %v1159 = vpack.c.b16 %v727, %v723
    %v1160 = vpack.c.b16 %v732, %v728
    %v1161 = vpack.c.b16 %v733, %v729
    %v1162 = vpack.c.b16 %v734, %v730
    %v1163 = vpack.c.b16 %v735, %v731
    %v1164 = vpack.c.b16 %v740, %v736
    %v1165 = vpack.c.b16 %v741, %v737
    %v1166 = vpack.c.b16 %v742, %v738
    %v1167 = vpack.c.b16 %v743, %v739
    %v1168 = vpack.c.b16 %v748, %v744
    %v1169 = vpack.c.b16 %v749, %v745
    %v1170 = vpack.c.b16 %v750, %v746
    %v1171 = vpack.c.b16 %v751, %v747
    %v1172 = vpack.c.b16 %v756, %v752
    %v1173 = vpack.c.b16 %v757, %v753
    %v1174 = vpack.c.b16 %v758, %v754
    %v1175 = vpack.c.b16 %v759, %v755
    %v1176 = vpack.c.b16 %v764, %v760
    %v1177 = vpack.c.b16 %v765, %v761
    %v1178 = vpack.c.b16 %v766, %v762
    %v1179 = vpack.c.b16 %v767, %v763
    %v1180 = vpack.c.b16 %v772, %v768
    %v1181 = vpack.c.b16 %v773, %v769
    %v1182 = vpack.c.b16 %v774, %v770
    %v1183 = vpack.c.b16 %v775, %v771
    %v1184 = vpack.c.b16 %v780, %v776
    %v1185 = vpack.c.b16 %v781, %v777
    %v1186 = vpack.c.b16 %v782, %v778
    %v1187 = vpack.c.b16 %v783, %v779
    %v1188 = vpack.c.b16 %v788, %v784
    %v1189 = vpack.c.b16 %v789, %v785
    %v1190 = vpack.c.b16 %v790, %v786
    %v1191 = vpack.c.b16 %v791, %v787
    %v1192 = vpack.c.b16 %v796, %v792
    %v1193 = vpack.c.b16 %v797, %v793
    %v1194 = vpack.c.b16 %v798, %v794
    %v1195 = vpack.c.b16 %v799, %v795
    %v1196 = vpack.c.b16 %v804, %v800
    %v1197 = vpack.c.b16 %v805, %v801
    %v1198 = vpack.c.b16 %v806, %v802
    %v1199 = vpack.c.b16 %v807, %v803
    %v1200 = vpack.c.b16 %v812, %v808
    %v1201 = vpack.c.b16 %v813, %v809
    %v1202 = vpack.c.b16 %v814, %v810
    %v1203 = vpack.c.b16 %v815, %v811
    %v1204 = vpack.c.b16 %v820, %v816
    %v1205 = vpack.c.b16 %v821, %v817
    %v1206 = vpack.c.b16 %v822, %v818
    %v1207 = vpack.c.b16 %v823, %v819
    %v1208 = vpack.c.b16 %v828, %v824
    %v1209 = vpack.c.b16 %v829, %v825
    %v1210 = vpack.c.b16 %v830, %v826
    %v1211 = vpack.c.b16 %v831, %v827
    %v1212 = vpack.c.b16 %v836, %v832
    %v1213 = vpack.c.b16 %v837, %v833
    %v1214 = vpack.c.b16 %v838, %v834
    %v1215 = vpack.c.b16 %v839, %v835
    %v1216 = vpack.c.b16 %v844, %v840
    %v1217 = vpack.c.b16 %v845, %v841
    %v1218 = vpack.c.b16 %v846, %v842
    %v1219 = vpack.c.b16 %v847, %v843
    %v1220 = vpack.c.b16 %v852, %v848
    %v1221 = vpack.c.b16 %v853, %v849
    %v1222 = vpack.c.b16 %v854, %v850
    %v1223 = vpack.c.b16 %v855, %v851
    %v1224 = vpack.c.b16 %v860, %v856
    %v1225 = vpack.c.b16 %v861, %v857
    %v1226 = vpack.c.b16 %v862, %v858
    %v1227 = vpack.c.b16 %v863, %v859
    %v1228 = vpack.c.b16 %v868, %v864
    %v1229 = vpack.c.b16 %v869, %v865
    %v1230 = vpack.c.b16 %v870, %v866
    %v1231 = vpack.c.b16 %v871, %v867
    %v1232 = vpack.c.b16 %v876, %v872
    %v1233 = vpack.c.b16 %v877, %v873
    %v1234 = vpack.c.b16 %v878, %v874
    %v1235 = vpack.c.b16 %v879, %v875
    %v1236 = vpack.c.b16 %v884, %v880
    %v1237 = vpack.c.b16 %v885, %v881
    %v1238 = vpack.c.b16 %v886, %v882
    %v1239 = vpack.c.b16 %v887, %v883
    %v1240 = vpack.c.b16 %v892, %v888
    %v1241 = vpack.c.b16 %v893, %v889
    %v1242 = vpack.c.b16 %v894, %v890
    %v1243 = vpack.c.b16 %v895, %v891
    %v1244 = vpack.c.b16 %v900, %v896
    %v1245 = vpack.c.b16 %v901, %v897
    %v1246 = vpack.c.b16 %v902, %v898
    %v1247 = vpack.c.b16 %v903, %v899
    %v1248 = vpack.c.b16 %v908, %v904
    %v1249 = vpack.c.b16 %v909, %v905
    %v1250 = vpack.c.b16 %v910, %v906
    %v1251 = vpack.c.b16 %v911, %v907
    %v1252 = vpack.c.b16 %v916, %v912
    %v1253 = vpack.c.b16 %v917, %v913
    %v1254 = vpack.c.b16 %v918, %v914
    %v1255 = vpack.c.b16 %v919, %v915
    %v1256 = vpack.c.b16 %v924, %v920
    %v1257 = vpack.c.b16 %v925, %v921
    %v1258 = vpack.c.b16 %v926, %v922
    %v1259 = vpack.c.b16 %v927, %v923
    %v1260 = vpack.c.b16 %v932, %v928
    %v1261 = vpack.c.b16 %v933, %v929
    %v1262 = vpack.c.b16 %v934, %v930
    %v1263 = vpack.c.b16 %v935, %v931
    %v1264 = vpack.c.b16 %v940, %v936
    %v1265 = vpack.c.b16 %v941, %v937
    %v1266 = vpack.c.b16 %v942, %v938
    %v1267 = vpack.c.b16 %v943, %v939
    %v1268 = vpack.c.b16 %v948, %v944
    %v1269 = vpack.c.b16 %v949, %v945
    %v1270 = vpack.c.b16 %v950, %v946
    %v1271 = vpack.c.b16 %v951, %v947
    %v1272 = vpack.c.b16 %v956, %v952
    %v1273 = vpack.c.b16 %v957, %v953
    %v1274 = vpack.c.b16 %v958, %v954
    %v1275 = vpack.c.b16 %v959, %v955
    %v1276 = vpack.c.b16 %v964, %v960
    %v1277 = vpack.c.b16 %v965, %v961
    %v1278 = vpack.c.b16 %v966, %v962
    %v1279 = vpack.c.b16 %v967, %v963
    %v1280 = vpack.c.b16 %v972, %v968
    %v1281 = vpack.c.b16 %v973, %v969
    %v1282 = vpack.c.b16 %v974, %v970
    %v1283 = vpack.c.b16 %v975, %v971
    %v1284 = vpack.c.b16 %v980, %v976
    %v1285 = vpack.c.b16 %v981, %v977
    %v1286 = vpack.c.b16 %v982, %v978
    %v1287 = vpack.c.b16 %v983, %v979
    %v1288 = vpack.c.b16 %v988, %v984
    %v1289 = vpack.c.b16 %v989, %v985
    %v1290 = vpack.c.b16 %v990, %v986
    %v1291 = vpack.c.b16 %v991, %v987
    %v1292 = vpack.c.b16 %v996, %v992
    %v1293 = vpack.c.b16 %v997, %v993
    %v1294 = vpack.c.b16 %v998, %v994
    %v1295 = vpack.c.b16 %v999, %v995
    %v1296 = vpack.c.b16 %v1004, %v1000
    %v1297 = vpack.c.b16 %v1005, %v1001
    %v1298 = vpack.c.b16 %v1006, %v1002
    %v1299 = vpack.c.b16 %v1007, %v1003
    %v1300 = vpack.c.b16 %v1012, %v1008
    %v1301 = vpack.c.b16 %v1013, %v1009
    %v1302 = vpack.c.b16 %v1014, %v1010
    %v1303 = vpack.c.b16 %v1015, %v1011
    %v1304 = vpack.c.b16 %v1020, %v1016
    %v1305 = vpack.c.b16 %v1021, %v1017
    %v1306 = vpack.c.b16 %v1022, %v1018
    %v1307 = vpack.c.b16 %v1023, %v1019
    %v1308 = vpack.c.b16 %v1028, %v1024
    %v1309 = vpack.c.b16 %v1029, %v1025
    %v1310 = vpack.c.b16 %v1030, %v1026
    %v1311 = vpack.c.b16 %v1031, %v1027
    %v1312 = vpack.c.b16 %v1036, %v1032
    %v1313 = vpack.c.b16 %v1037, %v1033
    %v1314 = vpack.c.b16 %v1038, %v1034
    %v1315 = vpack.c.b16 %v1039, %v1035
    %v1316 = vpack.c.b16 %v1044, %v1040
    %v1317 = vpack.c.b16 %v1045, %v1041
    %v1318 = vpack.c.b16 %v1046, %v1042
    %v1319 = vpack.c.b16 %v1047, %v1043
    %v1320 = vpack.c.b16 %v1052, %v1048
    %v1321 = vpack.c.b16 %v1053, %v1049
    %v1322 = vpack.c.b16 %v1054, %v1050
    %v1323 = vpack.c.b16 %v1055, %v1051
    %v1324 = vpack.c.b16 %v1060, %v1056
    %v1325 = vpack.c.b16 %v1061, %v1057
    %v1326 = vpack.c.b16 %v1062, %v1058
    %v1327 = vpack.c.b16 %v1063, %v1059
    %v1328 = vpack.c.b16 %v1068, %v1064
    %v1329 = vpack.c.b16 %v1069, %v1065
    %v1330 = vpack.c.b16 %v1070, %v1066
    %v1331 = vpack.c.b16 %v1071, %v1067
    %v1332 = vpack.c.b16 %v1076, %v1072
    %v1333 = vpack.c.b16 %v1077, %v1073
    %v1334 = vpack.c.b16 %v1078, %v1074
    %v1335 = vpack.c.b16 %v1079, %v1075
    %v1336 = vpack.c.b16 %v1084, %v1080
    %v1337 = vpack.c.b16 %v1085, %v1081
    %v1338 = vpack.c.b16 %v1086, %v1082
    %v1339 = vpack.c.b16 %v1087, %v1083
    %v1340 = vpack.c.b16 %v1092, %v1088
    %v1341 = vpack.c.b16 %v1093, %v1089
    %v1342 = vpack.c.b16 %v1094, %v1090
    %v1343 = vpack.c.b16 %v1095, %v1091
    %v1344 = vpack.c.b16 %v1100, %v1096
    %v1345 = vpack.c.b16 %v1101, %v1097
    %v1346 = vpack.c.b16 %v1102, %v1098
    %v1347 = vpack.c.b16 %v1103, %v1099
    %v1348 = vpack.c.b16 %v1108, %v1104
    %v1349 = vpack.c.b16 %v1109, %v1105
    %v1350 = vpack.c.b16 %v1110, %v1106
    %v1351 = vpack.c.b16 %v1111, %v1107
    %v1352 = vpack.c.b16 %v1116, %v1112
    %v1353 = vpack.c.b16 %v1117, %v1113
    %v1354 = vpack.c.b16 %v1118, %v1114
    %v1355 = vpack.c.b16 %v1119, %v1115
    %v1356 = vpack.c.b16 %v1124, %v1120
    %v1357 = vpack.c.b16 %v1125, %v1121
    %v1358 = vpack.c.b16 %v1126, %v1122
    %v1359 = vpack.c.b16 %v1127, %v1123
    %v1360 = vpack.c.b16 %v1132, %v1128
    %v1361 = vpack.c.b16 %v1133, %v1129
    %v1362 = vpack.c.b16 %v1134, %v1130
    %v1363 = vpack.c.b16 %v1135, %v1131
    %v1364 = vpack.c.b16 %v1140, %v1136
    %v1365 = vpack.c.b16 %v1141, %v1137
    %v1366 = vpack.c.b16 %v1142, %v1138
    %v1367 = vpack.c.b16 %v1143, %v1139
    %1592 = vmatpush.bf16.msra.mxu0 %v1172
    %1593 = vmatpush.bf16.msra.mxu0 %v1168
    %1594 = vmatpush.bf16.msra.mxu0 %v1164
    %1595 = vmatpush.bf16.msra.mxu0 %v1160
    %1596 = vmatpush.bf16.msra.mxu0 %v1156
    %1597 = vmatpush.bf16.msra.mxu0 %v1152
    %1598 = vmatpush.bf16.msra.mxu0 %v1148
    %1599 = vmatpush.bf16.msra.mxu0 %v1144
    %1600 = vmatmul.bf16.gmra.mxu0 %v458
    %v1601 = vpop.f32.mrf.mxu0
    %v1602 = vadd.f32 %v439, %v1601
    %v1603 = vpop.f32.mrf.mxu0
    %1604 = vdwg.mxu0
    %1605 = vmatpush.bf16.msra.mxu0 %v1204
    %1606 = vmatpush.bf16.msra.mxu0 %v1200
    %1607 = vmatpush.bf16.msra.mxu0 %v1196
    %1608 = vmatpush.bf16.msra.mxu0 %v1192
    %1609 = vmatpush.bf16.msra.mxu0 %v1188
    %1610 = vmatpush.bf16.msra.mxu0 %v1184
    %1611 = vmatpush.bf16.msra.mxu0 %v1180
    %1612 = vmatpush.bf16.msra.mxu0 %v1176
    %1613 = vmatmul.bf16.gmra.mxu0 %v459
    %v1614 = vpop.f32.mrf.mxu0
    %v1615 = vadd.f32 %v1602, %v1614
    %v1616 = vpop.f32.mrf.mxu0
    %1617 = vdwg.mxu0
    %1618 = vmatpush.bf16.msra.mxu0 %v1236
    %1619 = vmatpush.bf16.msra.mxu0 %v1232
    %1620 = vmatpush.bf16.msra.mxu0 %v1228
    %1621 = vmatpush.bf16.msra.mxu0 %v1224
    %1622 = vmatpush.bf16.msra.mxu0 %v1220
    %1623 = vmatpush.bf16.msra.mxu0 %v1216
    %1624 = vmatpush.bf16.msra.mxu0 %v1212
    %1625 = vmatpush.bf16.msra.mxu0 %v1208
    %1626 = vmatmul.bf16.gmra.mxu0 %v460
    %v1627 = vpop.f32.mrf.mxu0
    %v1628 = vadd.f32 %v1615, %v1627
    %v1629 = vpop.f32.mrf.mxu0
    %1630 = vdwg.mxu0
    %1631 = vmatpush.bf16.msra.mxu0 %v1268
    %1632 = vmatpush.bf16.msra.mxu0 %v1264
    %1633 = vmatpush.bf16.msra.mxu0 %v1260
    %1634 = vmatpush.bf16.msra.mxu0 %v1256
    %1635 = vmatpush.bf16.msra.mxu0 %v1252
    %1636 = vmatpush.bf16.msra.mxu0 %v1248
    %1637 = vmatpush.bf16.msra.mxu0 %v1244
    %1638 = vmatpush.bf16.msra.mxu0 %v1240
    %1639 = vmatmul.bf16.gmra.mxu0 %v461
    %v1640 = vpop.f32.mrf.mxu0
    %v1641 = vadd.f32 %v1628, %v1640
    %v1642 = vpop.f32.mrf.mxu0
    %1643 = vdwg.mxu0
    %1644 = vmatpush.bf16.msra.mxu0 %v1300
    %1645 = vmatpush.bf16.msra.mxu0 %v1296
    %1646 = vmatpush.bf16.msra.mxu0 %v1292
    %1647 = vmatpush.bf16.msra.mxu0 %v1288
    %1648 = vmatpush.bf16.msra.mxu0 %v1284
    %1649 = vmatpush.bf16.msra.mxu0 %v1280
    %1650 = vmatpush.bf16.msra.mxu0 %v1276
    %1651 = vmatpush.bf16.msra.mxu0 %v1272
    %1652 = vmatmul.bf16.gmra.mxu0 %v462
    %v1653 = vpop.f32.mrf.mxu0
    %v1654 = vadd.f32 %v1641, %v1653
    %v1655 = vpop.f32.mrf.mxu0
    %1656 = vdwg.mxu0
    %1657 = vmatpush.bf16.msra.mxu0 %v1332
    %1658 = vmatpush.bf16.msra.mxu0 %v1328
    %1659 = vmatpush.bf16.msra.mxu0 %v1324
    %1660 = vmatpush.bf16.msra.mxu0 %v1320
    %1661 = vmatpush.bf16.msra.mxu0 %v1316
    %1662 = vmatpush.bf16.msra.mxu0 %v1312
    %1663 = vmatpush.bf16.msra.mxu0 %v1308
    %1664 = vmatpush.bf16.msra.mxu0 %v1304
    %1665 = vmatmul.bf16.gmra.mxu0 %v463
    %v1666 = vpop.f32.mrf.mxu0
    %v1667 = vadd.f32 %v1654, %v1666
    %v1668 = vpop.f32.mrf.mxu0
    %1669 = vdwg.mxu0
    %1670 = vmatpush.bf16.msra.mxu0 %v1364
    %1671 = vmatpush.bf16.msra.mxu0 %v1360
    %1672 = vmatpush.bf16.msra.mxu0 %v1356
    %1673 = vmatpush.bf16.msra.mxu0 %v1352
    %1674 = vmatpush.bf16.msra.mxu0 %v1348
    %1675 = vmatpush.bf16.msra.mxu0 %v1344
    %1676 = vmatpush.bf16.msra.mxu0 %v1340
    %1677 = vmatpush.bf16.msra.mxu0 %v1336
    %1678 = vmatmul.bf16.gmra.mxu0 %v464
    %v1679 = vpop.f32.mrf.mxu0
    %v1680 = vadd.f32 %v1667, %v1679
    %v1681 = vpop.f32.mrf.mxu0
    %1682 = vdwg.mxu0
    %1683 = vmatpush.bf16.msra.mxu0 %v1173
    %1684 = vmatpush.bf16.msra.mxu0 %v1169
    %1685 = vmatpush.bf16.msra.mxu0 %v1165
    %1686 = vmatpush.bf16.msra.mxu0 %v1161
    %1687 = vmatpush.bf16.msra.mxu0 %v1157
    %1688 = vmatpush.bf16.msra.mxu0 %v1153
    %1689 = vmatpush.bf16.msra.mxu0 %v1149
    %1690 = vmatpush.bf16.msra.mxu0 %v1145
    %1691 = vmatmul.bf16.gmra.mxu0 %v458
    %v1692 = vpop.f32.mrf.mxu0
    %v1693 = vadd.f32 %v440, %v1692
    %v1694 = vpop.f32.mrf.mxu0
    %1695 = vdwg.mxu0
    %1696 = vmatpush.bf16.msra.mxu0 %v1205
    %1697 = vmatpush.bf16.msra.mxu0 %v1201
    %1698 = vmatpush.bf16.msra.mxu0 %v1197
    %1699 = vmatpush.bf16.msra.mxu0 %v1193
    %1700 = vmatpush.bf16.msra.mxu0 %v1189
    %1701 = vmatpush.bf16.msra.mxu0 %v1185
    %1702 = vmatpush.bf16.msra.mxu0 %v1181
    %1703 = vmatpush.bf16.msra.mxu0 %v1177
    %1704 = vmatmul.bf16.gmra.mxu0 %v459
    %v1705 = vpop.f32.mrf.mxu0
    %v1706 = vadd.f32 %v1693, %v1705
    %v1707 = vpop.f32.mrf.mxu0
    %1708 = vdwg.mxu0
    %1709 = vmatpush.bf16.msra.mxu0 %v1237
    %1710 = vmatpush.bf16.msra.mxu0 %v1233
    %1711 = vmatpush.bf16.msra.mxu0 %v1229
    %1712 = vmatpush.bf16.msra.mxu0 %v1225
    %1713 = vmatpush.bf16.msra.mxu0 %v1221
    %1714 = vmatpush.bf16.msra.mxu0 %v1217
    %1715 = vmatpush.bf16.msra.mxu0 %v1213
    %1716 = vmatpush.bf16.msra.mxu0 %v1209
    %1717 = vmatmul.bf16.gmra.mxu0 %v460
    %v1718 = vpop.f32.mrf.mxu0
    %v1719 = vadd.f32 %v1706, %v1718
    %v1720 = vpop.f32.mrf.mxu0
    %1721 = vdwg.mxu0
    %1722 = vmatpush.bf16.msra.mxu0 %v1269
    %1723 = vmatpush.bf16.msra.mxu0 %v1265
    %1724 = vmatpush.bf16.msra.mxu0 %v1261
    %1725 = vmatpush.bf16.msra.mxu0 %v1257
    %1726 = vmatpush.bf16.msra.mxu0 %v1253
    %1727 = vmatpush.bf16.msra.mxu0 %v1249
    %1728 = vmatpush.bf16.msra.mxu0 %v1245
    %1729 = vmatpush.bf16.msra.mxu0 %v1241
    %1730 = vmatmul.bf16.gmra.mxu0 %v461
    %v1731 = vpop.f32.mrf.mxu0
    %v1732 = vadd.f32 %v1719, %v1731
    %v1733 = vpop.f32.mrf.mxu0
    %1734 = vdwg.mxu0
    %1735 = vmatpush.bf16.msra.mxu0 %v1301
    %1736 = vmatpush.bf16.msra.mxu0 %v1297
    %1737 = vmatpush.bf16.msra.mxu0 %v1293
    %1738 = vmatpush.bf16.msra.mxu0 %v1289
    %1739 = vmatpush.bf16.msra.mxu0 %v1285
    %1740 = vmatpush.bf16.msra.mxu0 %v1281
    %1741 = vmatpush.bf16.msra.mxu0 %v1277
    %1742 = vmatpush.bf16.msra.mxu0 %v1273
    %1743 = vmatmul.bf16.gmra.mxu0 %v462
    %v1744 = vpop.f32.mrf.mxu0
    %v1745 = vadd.f32 %v1732, %v1744
    %v1746 = vpop.f32.mrf.mxu0
    %1747 = vdwg.mxu0
    %1748 = vmatpush.bf16.msra.mxu0 %v1333
    %1749 = vmatpush.bf16.msra.mxu0 %v1329
    %1750 = vmatpush.bf16.msra.mxu0 %v1325
    %1751 = vmatpush.bf16.msra.mxu0 %v1321
    %1752 = vmatpush.bf16.msra.mxu0 %v1317
    %1753 = vmatpush.bf16.msra.mxu0 %v1313
    %1754 = vmatpush.bf16.msra.mxu0 %v1309
    %1755 = vmatpush.bf16.msra.mxu0 %v1305
    %1756 = vmatmul.bf16.gmra.mxu0 %v463
    %v1757 = vpop.f32.mrf.mxu0
    %v1758 = vadd.f32 %v1745, %v1757
    %v1759 = vpop.f32.mrf.mxu0
    %1760 = vdwg.mxu0
    %1761 = vmatpush.bf16.msra.mxu0 %v1365
    %1762 = vmatpush.bf16.msra.mxu0 %v1361
    %1763 = vmatpush.bf16.msra.mxu0 %v1357
    %1764 = vmatpush.bf16.msra.mxu0 %v1353
    %1765 = vmatpush.bf16.msra.mxu0 %v1349
    %1766 = vmatpush.bf16.msra.mxu0 %v1345
    %1767 = vmatpush.bf16.msra.mxu0 %v1341
    %1768 = vmatpush.bf16.msra.mxu0 %v1337
    %1769 = vmatmul.bf16.gmra.mxu0 %v464
    %v1770 = vpop.f32.mrf.mxu0
    %v1771 = vadd.f32 %v1758, %v1770
    %v1772 = vpop.f32.mrf.mxu0
    %1773 = vdwg.mxu0
    %1774 = vmatpush.bf16.msra.mxu0 %v1174
    %1775 = vmatpush.bf16.msra.mxu0 %v1170
    %1776 = vmatpush.bf16.msra.mxu0 %v1166
    %1777 = vmatpush.bf16.msra.mxu0 %v1162
    %1778 = vmatpush.bf16.msra.mxu0 %v1158
    %1779 = vmatpush.bf16.msra.mxu0 %v1154
    %1780 = vmatpush.bf16.msra.mxu0 %v1150
    %1781 = vmatpush.bf16.msra.mxu0 %v1146
    %1782 = vmatmul.bf16.gmra.mxu0 %v458
    %v1783 = vpop.f32.mrf.mxu0
    %v1784 = vadd.f32 %v441, %v1783
    %v1785 = vpop.f32.mrf.mxu0
    %1786 = vdwg.mxu0
    %1787 = vmatpush.bf16.msra.mxu0 %v1206
    %1788 = vmatpush.bf16.msra.mxu0 %v1202
    %1789 = vmatpush.bf16.msra.mxu0 %v1198
    %1790 = vmatpush.bf16.msra.mxu0 %v1194
    %1791 = vmatpush.bf16.msra.mxu0 %v1190
    %1792 = vmatpush.bf16.msra.mxu0 %v1186
    %1793 = vmatpush.bf16.msra.mxu0 %v1182
    %1794 = vmatpush.bf16.msra.mxu0 %v1178
    %1795 = vmatmul.bf16.gmra.mxu0 %v459
    %v1796 = vpop.f32.mrf.mxu0
    %v1797 = vadd.f32 %v1784, %v1796
    %v1798 = vpop.f32.mrf.mxu0
    %1799 = vdwg.mxu0
    %1800 = vmatpush.bf16.msra.mxu0 %v1238
    %1801 = vmatpush.bf16.msra.mxu0 %v1234
    %1802 = vmatpush.bf16.msra.mxu0 %v1230
    %1803 = vmatpush.bf16.msra.mxu0 %v1226
    %1804 = vmatpush.bf16.msra.mxu0 %v1222
    %1805 = vmatpush.bf16.msra.mxu0 %v1218
    %1806 = vmatpush.bf16.msra.mxu0 %v1214
    %1807 = vmatpush.bf16.msra.mxu0 %v1210
    %1808 = vmatmul.bf16.gmra.mxu0 %v460
    %v1809 = vpop.f32.mrf.mxu0
    %v1810 = vadd.f32 %v1797, %v1809
    %v1811 = vpop.f32.mrf.mxu0
    %1812 = vdwg.mxu0
    %1813 = vmatpush.bf16.msra.mxu0 %v1270
    %1814 = vmatpush.bf16.msra.mxu0 %v1266
    %1815 = vmatpush.bf16.msra.mxu0 %v1262
    %1816 = vmatpush.bf16.msra.mxu0 %v1258
    %1817 = vmatpush.bf16.msra.mxu0 %v1254
    %1818 = vmatpush.bf16.msra.mxu0 %v1250
    %1819 = vmatpush.bf16.msra.mxu0 %v1246
    %1820 = vmatpush.bf16.msra.mxu0 %v1242
    %1821 = vmatmul.bf16.gmra.mxu0 %v461
    %v1822 = vpop.f32.mrf.mxu0
    %v1823 = vadd.f32 %v1810, %v1822
    %v1824 = vpop.f32.mrf.mxu0
    %1825 = vdwg.mxu0
    %1826 = vmatpush.bf16.msra.mxu0 %v1302
    %1827 = vmatpush.bf16.msra.mxu0 %v1298
    %1828 = vmatpush.bf16.msra.mxu0 %v1294
    %1829 = vmatpush.bf16.msra.mxu0 %v1290
    %1830 = vmatpush.bf16.msra.mxu0 %v1286
    %1831 = vmatpush.bf16.msra.mxu0 %v1282
    %1832 = vmatpush.bf16.msra.mxu0 %v1278
    %1833 = vmatpush.bf16.msra.mxu0 %v1274
    %1834 = vmatmul.bf16.gmra.mxu0 %v462
    %v1835 = vpop.f32.mrf.mxu0
    %v1836 = vadd.f32 %v1823, %v1835
    %v1837 = vpop.f32.mrf.mxu0
    %1838 = vdwg.mxu0
    %1839 = vmatpush.bf16.msra.mxu0 %v1334
    %1840 = vmatpush.bf16.msra.mxu0 %v1330
    %1841 = vmatpush.bf16.msra.mxu0 %v1326
    %1842 = vmatpush.bf16.msra.mxu0 %v1322
    %1843 = vmatpush.bf16.msra.mxu0 %v1318
    %1844 = vmatpush.bf16.msra.mxu0 %v1314
    %1845 = vmatpush.bf16.msra.mxu0 %v1310
    %1846 = vmatpush.bf16.msra.mxu0 %v1306
    %1847 = vmatmul.bf16.gmra.mxu0 %v463
    %v1848 = vpop.f32.mrf.mxu0
    %v1849 = vadd.f32 %v1836, %v1848
    %v1850 = vpop.f32.mrf.mxu0
    %1851 = vdwg.mxu0
    %1852 = vmatpush.bf16.msra.mxu0 %v1366
    %1853 = vmatpush.bf16.msra.mxu0 %v1362
    %1854 = vmatpush.bf16.msra.mxu0 %v1358
    %1855 = vmatpush.bf16.msra.mxu0 %v1354
    %1856 = vmatpush.bf16.msra.mxu0 %v1350
    %1857 = vmatpush.bf16.msra.mxu0 %v1346
    %1858 = vmatpush.bf16.msra.mxu0 %v1342
    %1859 = vmatpush.bf16.msra.mxu0 %v1338
    %1860 = vmatmul.bf16.gmra.mxu0 %v464
    %v1861 = vpop.f32.mrf.mxu0
    %v1862 = vadd.f32 %v1849, %v1861
    %v1863 = vpop.f32.mrf.mxu0
    %1864 = vdwg.mxu0
    %1865 = vmatpush.bf16.msra.mxu0 %v1175
    %1866 = vmatpush.bf16.msra.mxu0 %v1171
    %1867 = vmatpush.bf16.msra.mxu0 %v1167
    %1868 = vmatpush.bf16.msra.mxu0 %v1163
    %1869 = vmatpush.bf16.msra.mxu0 %v1159
    %1870 = vmatpush.bf16.msra.mxu0 %v1155
    %1871 = vmatpush.bf16.msra.mxu0 %v1151
    %1872 = vmatpush.bf16.msra.mxu0 %v1147
    %1873 = vmatmul.bf16.gmra.mxu0 %v458
    %v1874 = vpop.f32.mrf.mxu0
    %v1875 = vadd.f32 %v442, %v1874
    %v1876 = vpop.f32.mrf.mxu0
    %1877 = vdwg.mxu0
    %1878 = vmatpush.bf16.msra.mxu0 %v1207
    %1879 = vmatpush.bf16.msra.mxu0 %v1203
    %1880 = vmatpush.bf16.msra.mxu0 %v1199
    %1881 = vmatpush.bf16.msra.mxu0 %v1195
    %1882 = vmatpush.bf16.msra.mxu0 %v1191
    %1883 = vmatpush.bf16.msra.mxu0 %v1187
    %1884 = vmatpush.bf16.msra.mxu0 %v1183
    %1885 = vmatpush.bf16.msra.mxu0 %v1179
    %1886 = vmatmul.bf16.gmra.mxu0 %v459
    %v1887 = vpop.f32.mrf.mxu0
    %v1888 = vadd.f32 %v1875, %v1887
    %v1889 = vpop.f32.mrf.mxu0
    %1890 = vdwg.mxu0
    %1891 = vmatpush.bf16.msra.mxu0 %v1239
    %1892 = vmatpush.bf16.msra.mxu0 %v1235
    %1893 = vmatpush.bf16.msra.mxu0 %v1231
    %1894 = vmatpush.bf16.msra.mxu0 %v1227
    %1895 = vmatpush.bf16.msra.mxu0 %v1223
    %1896 = vmatpush.bf16.msra.mxu0 %v1219
    %1897 = vmatpush.bf16.msra.mxu0 %v1215
    %1898 = vmatpush.bf16.msra.mxu0 %v1211
    %1899 = vmatmul.bf16.gmra.mxu0 %v460
    %v1900 = vpop.f32.mrf.mxu0
    %v1901 = vadd.f32 %v1888, %v1900
    %v1902 = vpop.f32.mrf.mxu0
    %1903 = vdwg.mxu0
    %1904 = vmatpush.bf16.msra.mxu0 %v1271
    %1905 = vmatpush.bf16.msra.mxu0 %v1267
    %1906 = vmatpush.bf16.msra.mxu0 %v1263
    %1907 = vmatpush.bf16.msra.mxu0 %v1259
    %1908 = vmatpush.bf16.msra.mxu0 %v1255
    %1909 = vmatpush.bf16.msra.mxu0 %v1251
    %1910 = vmatpush.bf16.msra.mxu0 %v1247
    %1911 = vmatpush.bf16.msra.mxu0 %v1243
    %1912 = vmatmul.bf16.gmra.mxu0 %v461
    %v1913 = vpop.f32.mrf.mxu0
    %v1914 = vadd.f32 %v1901, %v1913
    %v1915 = vpop.f32.mrf.mxu0
    %1916 = vdwg.mxu0
    %1917 = vmatpush.bf16.msra.mxu0 %v1303
    %1918 = vmatpush.bf16.msra.mxu0 %v1299
    %1919 = vmatpush.bf16.msra.mxu0 %v1295
    %1920 = vmatpush.bf16.msra.mxu0 %v1291
    %1921 = vmatpush.bf16.msra.mxu0 %v1287
    %1922 = vmatpush.bf16.msra.mxu0 %v1283
    %1923 = vmatpush.bf16.msra.mxu0 %v1279
    %1924 = vmatpush.bf16.msra.mxu0 %v1275
    %1925 = vmatmul.bf16.gmra.mxu0 %v462
    %v1926 = vpop.f32.mrf.mxu0
    %v1927 = vadd.f32 %v1914, %v1926
    %v1928 = vpop.f32.mrf.mxu0
    %1929 = vdwg.mxu0
    %1930 = vmatpush.bf16.msra.mxu0 %v1335
    %1931 = vmatpush.bf16.msra.mxu0 %v1331
    %1932 = vmatpush.bf16.msra.mxu0 %v1327
    %1933 = vmatpush.bf16.msra.mxu0 %v1323
    %1934 = vmatpush.bf16.msra.mxu0 %v1319
    %1935 = vmatpush.bf16.msra.mxu0 %v1315
    %1936 = vmatpush.bf16.msra.mxu0 %v1311
    %1937 = vmatpush.bf16.msra.mxu0 %v1307
    %1938 = vmatmul.bf16.gmra.mxu0 %v463
    %v1939 = vpop.f32.mrf.mxu0
    %v1940 = vadd.f32 %v1927, %v1939
    %v1941 = vpop.f32.mrf.mxu0
    %1942 = vdwg.mxu0
    %1943 = vmatpush.bf16.msra.mxu0 %v1367
    %1944 = vmatpush.bf16.msra.mxu0 %v1363
    %1945 = vmatpush.bf16.msra.mxu0 %v1359
    %1946 = vmatpush.bf16.msra.mxu0 %v1355
    %1947 = vmatpush.bf16.msra.mxu0 %v1351
    %1948 = vmatpush.bf16.msra.mxu0 %v1347
    %1949 = vmatpush.bf16.msra.mxu0 %v1343
    %1950 = vmatpush.bf16.msra.mxu0 %v1339
    %1951 = vmatmul.bf16.gmra.mxu0 %v464
    %v1952 = vpop.f32.mrf.mxu0
    %v1953 = vadd.f32 %v1940, %v1952
    %v1954 = vpop.f32.mrf.mxu0
    %1955 = vdwg.mxu0
    %v1956 = vmax.f32 %v1680, 0.0
    %v1957 = vmax.f32 %v1771, 0.0
    %v1958 = vmax.f32 %v1862, 0.0
    %v1959 = vmax.f32 %v1953, 0.0
    %v1960 = vpack.c.bf16 %v1956, %v1956
    %v1961 = vpack.c.bf16 %v1957, %v1957
    %v1962 = vpack.c.bf16 %v1958, %v1958
    %v1963 = vpack.c.bf16 %v1959, %v1959
    %v1964 = vld [vmem:[#allocation8] sm:$0xff]
    %v1965 = vld [vmem:[#allocation8 + $0x8] sm:$0xff]
    %v1966 = vld [vmem:[#allocation8 + $0x10] sm:$0xff]
    %v1967 = vld [vmem:[#allocation8 + $0x18] sm:$0xff]
    %v1968 = vld [vmem:[#allocation8 + $0x20] sm:$0xff]
    %v1969 = vld [vmem:[#allocation8 + $0x28] sm:$0xff]
    %v1970 = vld [vmem:[#allocation8 + $0x30] sm:$0xff]
    %v1971 = vld [vmem:[#allocation8 + $0x38] sm:$0xff]
    %v1972 = vld [vmem:[#allocation8 + $0x40] sm:$0xff]
    %v1973 = vld [vmem:[#allocation8 + $0x48] sm:$0xff]
    %v1974 = vld [vmem:[#allocation8 + $0x50] sm:$0xff]
    %v1975 = vld [vmem:[#allocation8 + $0x58] sm:$0xff]
    %v1976 = vld [vmem:[#allocation8 + $0x60] sm:$0xff]
    %v1977 = vld [vmem:[#allocation8 + $0x68] sm:$0xff]
    %v1978 = vld [vmem:[#allocation8 + $0x70] sm:$0xff]
    %v1979 = vld [vmem:[#allocation8 + $0x78] sm:$0xff]
    %v1980 = vld [vmem:[#allocation8 + $0x80] sm:$0xff]
    %v1981 = vld [vmem:[#allocation8 + $0x88] sm:$0xff]
    %v1982 = vld [vmem:[#allocation8 + $0x90] sm:$0xff]
    %v1983 = vld [vmem:[#allocation8 + $0x98] sm:$0xff]
    %v1984 = vld [vmem:[#allocation8 + $0xa0] sm:$0xff]
    %v1985 = vld [vmem:[#allocation8 + $0xa8] sm:$0xff]
    %v1986 = vld [vmem:[#allocation8 + $0xb0] sm:$0xff]
    %v1987 = vld [vmem:[#allocation8 + $0xb8] sm:$0xff]
    %v1988 = vld [vmem:[#allocation8 + $0xc0] sm:$0xff]
    %v1989 = vld [vmem:[#allocation8 + $0xc8] sm:$0xff]
    %v1990 = vld [vmem:[#allocation8 + $0xd0] sm:$0xff]
    %v1991 = vld [vmem:[#allocation8 + $0xd8] sm:$0xff]
    %v1992 = vld [vmem:[#allocation8 + $0xe0] sm:$0xff]
    %v1993 = vld [vmem:[#allocation8 + $0xe8] sm:$0xff]
    %v1994 = vld [vmem:[#allocation8 + $0xf0] sm:$0xff]
    %v1995 = vld [vmem:[#allocation8 + $0xf8] sm:$0xff]
    %v1996 = vld [vmem:[#allocation8 + $0x100] sm:$0xff]
    %v1997 = vld [vmem:[#allocation8 + $0x108] sm:$0xff]
    %v1998 = vld [vmem:[#allocation8 + $0x110] sm:$0xff]
    %v1999 = vld [vmem:[#allocation8 + $0x118] sm:$0xff]
    %v2000 = vld [vmem:[#allocation8 + $0x120] sm:$0xff]
    %v2001 = vld [vmem:[#allocation8 + $0x128] sm:$0xff]
    %v2002 = vld [vmem:[#allocation8 + $0x130] sm:$0xff]
    %v2003 = vld [vmem:[#allocation8 + $0x138] sm:$0xff]
    %v2004 = vld [vmem:[#allocation8 + $0x140] sm:$0xff]
    %v2005 = vld [vmem:[#allocation8 + $0x148] sm:$0xff]
    %v2006 = vld [vmem:[#allocation8 + $0x150] sm:$0xff]
    %v2007 = vld [vmem:[#allocation8 + $0x158] sm:$0xff]
    %v2008 = vld [vmem:[#allocation8 + $0x160] sm:$0xff]
    %v2009 = vld [vmem:[#allocation8 + $0x168] sm:$0xff]
    %v2010 = vld [vmem:[#allocation8 + $0x170] sm:$0xff]
    %v2011 = vld [vmem:[#allocation8 + $0x178] sm:$0xff]
    %v2012 = vld [vmem:[#allocation8 + $0x180] sm:$0xff]
    %v2013 = vld [vmem:[#allocation8 + $0x188] sm:$0xff]
    %v2014 = vld [vmem:[#allocation8 + $0x190] sm:$0xff]
    %v2015 = vld [vmem:[#allocation8 + $0x198] sm:$0xff]
    %v2016 = vld [vmem:[#allocation8 + $0x1a0] sm:$0xff]
    %v2017 = vld [vmem:[#allocation8 + $0x1a8] sm:$0xff]
    %v2018 = vld [vmem:[#allocation8 + $0x1b0] sm:$0xff]
    %v2019 = vld [vmem:[#allocation8 + $0x1b8] sm:$0xff]
    %v2020 = vld [vmem:[#allocation8 + $0x1c0] sm:$0xff]
    %v2021 = vld [vmem:[#allocation8 + $0x1c8] sm:$0xff]
    %v2022 = vld [vmem:[#allocation8 + $0x1d0] sm:$0xff]
    %v2023 = vld [vmem:[#allocation8 + $0x1d8] sm:$0xff]
    %v2024 = vld [vmem:[#allocation8 + $0x1e0] sm:$0xff]
    %v2025 = vld [vmem:[#allocation8 + $0x1e8] sm:$0xff]
    %v2026 = vld [vmem:[#allocation8 + $0x1f0] sm:$0xff]
    %v2027 = vld [vmem:[#allocation8 + $0x1f8] sm:$0xff]
    %v2028 = vld [vmem:[#allocation10] sm:$0x3]
    %v2030 = vperm.slane %v2028, 0
    %v2031 = vperm.slane %v2028, 1
    %v2098 = vunpack.c.l.b16 %v1964
    %v2099 = vunpack.c.h.b16 %v1964
    %v2100 = vunpack.c.l.b16 %v1965
    %v2101 = vunpack.c.h.b16 %v1965
    %v2102 = vunpack.c.l.b16 %v1966
    %v2103 = vunpack.c.h.b16 %v1966
    %v2104 = vunpack.c.l.b16 %v1967
    %v2105 = vunpack.c.h.b16 %v1967
    %v2106 = vunpack.c.l.b16 %v1968
    %v2107 = vunpack.c.h.b16 %v1968
    %v2108 = vunpack.c.l.b16 %v1969
    %v2109 = vunpack.c.h.b16 %v1969
    %v2110 = vunpack.c.l.b16 %v1970
    %v2111 = vunpack.c.h.b16 %v1970
    %v2112 = vunpack.c.l.b16 %v1971
    %v2113 = vunpack.c.h.b16 %v1971
    %v2114 = vunpack.c.l.b16 %v1972
    %v2115 = vunpack.c.h.b16 %v1972
    %v2116 = vunpack.c.l.b16 %v1973
    %v2117 = vunpack.c.h.b16 %v1973
    %v2118 = vunpack.c.l.b16 %v1974
    %v2119 = vunpack.c.h.b16 %v1974
    %v2120 = vunpack.c.l.b16 %v1975
    %v2121 = vunpack.c.h.b16 %v1975
    %v2122 = vunpack.c.l.b16 %v1976
    %v2123 = vunpack.c.h.b16 %v1976
    %v2124 = vunpack.c.l.b16 %v1977
    %v2125 = vunpack.c.h.b16 %v1977
    %v2126 = vunpack.c.l.b16 %v1978
    %v2127 = vunpack.c.h.b16 %v1978
    %v2128 = vunpack.c.l.b16 %v1979
    %v2129 = vunpack.c.h.b16 %v1979
    %v2130 = vunpack.c.l.b16 %v1980
    %v2131 = vunpack.c.h.b16 %v1980
    %v2132 = vunpack.c.l.b16 %v1981
    %v2133 = vunpack.c.h.b16 %v1981
    %v2134 = vunpack.c.l.b16 %v1982
    %v2135 = vunpack.c.h.b16 %v1982
    %v2136 = vunpack.c.l.b16 %v1983
    %v2137 = vunpack.c.h.b16 %v1983
    %v2138 = vunpack.c.l.b16 %v1984
    %v2139 = vunpack.c.h.b16 %v1984
    %v2140 = vunpack.c.l.b16 %v1985
    %v2141 = vunpack.c.h.b16 %v1985
    %v2142 = vunpack.c.l.b16 %v1986
    %v2143 = vunpack.c.h.b16 %v1986
    %v2144 = vunpack.c.l.b16 %v1987
    %v2145 = vunpack.c.h.b16 %v1987
    %v2146 = vunpack.c.l.b16 %v1988
    %v2147 = vunpack.c.h.b16 %v1988
    %v2148 = vunpack.c.l.b16 %v1989
    %v2149 = vunpack.c.h.b16 %v1989
    %v2150 = vunpack.c.l.b16 %v1990
    %v2151 = vunpack.c.h.b16 %v1990
    %v2152 = vunpack.c.l.b16 %v1991
    %v2153 = vunpack.c.h.b16 %v1991
    %v2154 = vunpack.c.l.b16 %v1992
    %v2155 = vunpack.c.h.b16 %v1992
    %v2156 = vunpack.c.l.b16 %v1993
    %v2157 = vunpack.c.h.b16 %v1993
    %v2158 = vunpack.c.l.b16 %v1994
    %v2159 = vunpack.c.h.b16 %v1994
    %v2160 = vunpack.c.l.b16 %v1995
    %v2161 = vunpack.c.h.b16 %v1995
    %v2162 = vunpack.c.l.b16 %v1996
    %v2163 = vunpack.c.h.b16 %v1996
    %v2164 = vunpack.c.l.b16 %v1997
    %v2165 = vunpack.c.h.b16 %v1997
    %v2166 = vunpack.c.l.b16 %v1998
    %v2167 = vunpack.c.h.b16 %v1998
    %v2168 = vunpack.c.l.b16 %v1999
    %v2169 = vunpack.c.h.b16 %v1999
    %v2170 = vunpack.c.l.b16 %v2000
    %v2171 = vunpack.c.h.b16 %v2000
    %v2172 = vunpack.c.l.b16 %v2001
    %v2173 = vunpack.c.h.b16 %v2001
    %v2174 = vunpack.c.l.b16 %v2002
    %v2175 = vunpack.c.h.b16 %v2002
    %v2176 = vunpack.c.l.b16 %v2003
    %v2177 = vunpack.c.h.b16 %v2003
    %v2178 = vunpack.c.l.b16 %v2004
    %v2179 = vunpack.c.h.b16 %v2004
    %v2180 = vunpack.c.l.b16 %v2005
    %v2181 = vunpack.c.h.b16 %v2005
    %v2182 = vunpack.c.l.b16 %v2006
    %v2183 = vunpack.c.h.b16 %v2006
    %v2184 = vunpack.c.l.b16 %v2007
    %v2185 = vunpack.c.h.b16 %v2007
    %v2186 = vunpack.c.l.b16 %v2008
    %v2187 = vunpack.c.h.b16 %v2008
    %v2188 = vunpack.c.l.b16 %v2009
    %v2189 = vunpack.c.h.b16 %v2009
    %v2190 = vunpack.c.l.b16 %v2010
    %v2191 = vunpack.c.h.b16 %v2010
    %v2192 = vunpack.c.l.b16 %v2011
    %v2193 = vunpack.c.h.b16 %v2011
    %v2194 = vunpack.c.l.b16 %v2012
    %v2195 = vunpack.c.h.b16 %v2012
    %v2196 = vunpack.c.l.b16 %v2013
    %v2197 = vunpack.c.h.b16 %v2013
    %v2198 = vunpack.c.l.b16 %v2014
    %v2199 = vunpack.c.h.b16 %v2014
    %v2200 = vunpack.c.l.b16 %v2015
    %v2201 = vunpack.c.h.b16 %v2015
    %v2202 = vunpack.c.l.b16 %v2016
    %v2203 = vunpack.c.h.b16 %v2016
    %v2204 = vunpack.c.l.b16 %v2017
    %v2205 = vunpack.c.h.b16 %v2017
    %v2206 = vunpack.c.l.b16 %v2018
    %v2207 = vunpack.c.h.b16 %v2018
    %v2208 = vunpack.c.l.b16 %v2019
    %v2209 = vunpack.c.h.b16 %v2019
    %v2210 = vunpack.c.l.b16 %v2020
    %v2211 = vunpack.c.h.b16 %v2020
    %v2212 = vunpack.c.l.b16 %v2021
    %v2213 = vunpack.c.h.b16 %v2021
    %v2214 = vunpack.c.l.b16 %v2022
    %v2215 = vunpack.c.h.b16 %v2022
    %v2216 = vunpack.c.l.b16 %v2023
    %v2217 = vunpack.c.h.b16 %v2023
    %v2218 = vunpack.c.l.b16 %v2024
    %v2219 = vunpack.c.h.b16 %v2024
    %v2220 = vunpack.c.l.b16 %v2025
    %v2221 = vunpack.c.h.b16 %v2025
    %v2222 = vunpack.c.l.b16 %v2026
    %v2223 = vunpack.c.h.b16 %v2026
    %v2224 = vunpack.c.l.b16 %v2027
    %v2225 = vunpack.c.h.b16 %v2027
    %v2226 = vpack.c.b16 %v2100, %v2098
    %v2227 = vpack.c.b16 %v2101, %v2099
    %v2228 = vpack.c.b16 %v2104, %v2102
    %v2229 = vpack.c.b16 %v2105, %v2103
    %v2230 = vpack.c.b16 %v2108, %v2106
    %v2231 = vpack.c.b16 %v2109, %v2107
    %v2232 = vpack.c.b16 %v2112, %v2110
    %v2233 = vpack.c.b16 %v2113, %v2111
    %v2234 = vpack.c.b16 %v2116, %v2114
    %v2235 = vpack.c.b16 %v2117, %v2115
    %v2236 = vpack.c.b16 %v2120, %v2118
    %v2237 = vpack.c.b16 %v2121, %v2119
    %v2238 = vpack.c.b16 %v2124, %v2122
    %v2239 = vpack.c.b16 %v2125, %v2123
    %v2240 = vpack.c.b16 %v2128, %v2126
    %v2241 = vpack.c.b16 %v2129, %v2127
    %v2242 = vpack.c.b16 %v2132, %v2130
    %v2243 = vpack.c.b16 %v2133, %v2131
    %v2244 = vpack.c.b16 %v2136, %v2134
    %v2245 = vpack.c.b16 %v2137, %v2135
    %v2246 = vpack.c.b16 %v2140, %v2138
    %v2247 = vpack.c.b16 %v2141, %v2139
    %v2248 = vpack.c.b16 %v2144, %v2142
    %v2249 = vpack.c.b16 %v2145, %v2143
    %v2250 = vpack.c.b16 %v2148, %v2146
    %v2251 = vpack.c.b16 %v2149, %v2147
    %v2252 = vpack.c.b16 %v2152, %v2150
    %v2253 = vpack.c.b16 %v2153, %v2151
    %v2254 = vpack.c.b16 %v2156, %v2154
    %v2255 = vpack.c.b16 %v2157, %v2155
    %v2256 = vpack.c.b16 %v2160, %v2158
    %v2257 = vpack.c.b16 %v2161, %v2159
    %v2258 = vpack.c.b16 %v2164, %v2162
    %v2259 = vpack.c.b16 %v2165, %v2163
    %v2260 = vpack.c.b16 %v2168, %v2166
    %v2261 = vpack.c.b16 %v2169, %v2167
    %v2262 = vpack.c.b16 %v2172, %v2170
    %v2263 = vpack.c.b16 %v2173, %v2171
    %v2264 = vpack.c.b16 %v2176, %v2174
    %v2265 = vpack.c.b16 %v2177, %v2175
    %v2266 = vpack.c.b16 %v2180, %v2178
    %v2267 = vpack.c.b16 %v2181, %v2179
    %v2268 = vpack.c.b16 %v2184, %v2182
    %v2269 = vpack.c.b16 %v2185, %v2183
    %v2270 = vpack.c.b16 %v2188, %v2186
    %v2271 = vpack.c.b16 %v2189, %v2187
    %v2272 = vpack.c.b16 %v2192, %v2190
    %v2273 = vpack.c.b16 %v2193, %v2191
    %v2274 = vpack.c.b16 %v2196, %v2194
    %v2275 = vpack.c.b16 %v2197, %v2195
    %v2276 = vpack.c.b16 %v2200, %v2198
    %v2277 = vpack.c.b16 %v2201, %v2199
    %v2278 = vpack.c.b16 %v2204, %v2202
    %v2279 = vpack.c.b16 %v2205, %v2203
    %v2280 = vpack.c.b16 %v2208, %v2206
    %v2281 = vpack.c.b16 %v2209, %v2207
    %v2282 = vpack.c.b16 %v2212, %v2210
    %v2283 = vpack.c.b16 %v2213, %v2211
    %v2284 = vpack.c.b16 %v2216, %v2214
    %v2285 = vpack.c.b16 %v2217, %v2215
    %v2286 = vpack.c.b16 %v2220, %v2218
    %v2287 = vpack.c.b16 %v2221, %v2219
    %v2288 = vpack.c.b16 %v2224, %v2222
    %v2289 = vpack.c.b16 %v2225, %v2223
    %2354 = vmatpush.bf16.msra.mxu0 %v2240
    %2355 = vmatpush.bf16.msra.mxu0 %v2238
    %2356 = vmatpush.bf16.msra.mxu0 %v2236
    %2357 = vmatpush.bf16.msra.mxu0 %v2234
    %2358 = vmatpush.bf16.msra.mxu0 %v2232
    %2359 = vmatpush.bf16.msra.mxu0 %v2230
    %2360 = vmatpush.bf16.msra.mxu0 %v2228
    %2361 = vmatpush.bf16.msra.mxu0 %v2226
    %2362 = vmatmul.bf16.gmra.mxu0 %v1960
    %v2363 = vpop.f32.mrf.mxu0
    %v2364 = vadd.f32 %v2030, %v2363
    %v2365 = vpop.f32.mrf.mxu0
    %2366 = vdwg.mxu0
    %2367 = vmatpush.bf16.msra.mxu0 %v2256
    %2368 = vmatpush.bf16.msra.mxu0 %v2254
    %2369 = vmatpush.bf16.msra.mxu0 %v2252
    %2370 = vmatpush.bf16.msra.mxu0 %v2250
    %2371 = vmatpush.bf16.msra.mxu0 %v2248
    %2372 = vmatpush.bf16.msra.mxu0 %v2246
    %2373 = vmatpush.bf16.msra.mxu0 %v2244
    %2374 = vmatpush.bf16.msra.mxu0 %v2242
    %2375 = vmatmul.bf16.gmra.mxu0 %v1961
    %v2376 = vpop.f32.mrf.mxu0
    %v2377 = vadd.f32 %v2364, %v2376
    %v2378 = vpop.f32.mrf.mxu0
    %2379 = vdwg.mxu0
    %2380 = vmatpush.bf16.msra.mxu0 %v2272
    %2381 = vmatpush.bf16.msra.mxu0 %v2270
    %2382 = vmatpush.bf16.msra.mxu0 %v2268
    %2383 = vmatpush.bf16.msra.mxu0 %v2266
    %2384 = vmatpush.bf16.msra.mxu0 %v2264
    %2385 = vmatpush.bf16.msra.mxu0 %v2262
    %2386 = vmatpush.bf16.msra.mxu0 %v2260
    %2387 = vmatpush.bf16.msra.mxu0 %v2258
    %2388 = vmatmul.bf16.gmra.mxu0 %v1962
    %v2389 = vpop.f32.mrf.mxu0
    %v2390 = vadd.f32 %v2377, %v2389
    %v2391 = vpop.f32.mrf.mxu0
    %2392 = vdwg.mxu0
    %2393 = vmatpush.bf16.msra.mxu0 %v2288
    %2394 = vmatpush.bf16.msra.mxu0 %v2286
    %2395 = vmatpush.bf16.msra.mxu0 %v2284
    %2396 = vmatpush.bf16.msra.mxu0 %v2282
    %2397 = vmatpush.bf16.msra.mxu0 %v2280
    %2398 = vmatpush.bf16.msra.mxu0 %v2278
    %2399 = vmatpush.bf16.msra.mxu0 %v2276
    %2400 = vmatpush.bf16.msra.mxu0 %v2274
    %2401 = vmatmul.bf16.gmra.mxu0 %v1963
    %v2402 = vpop.f32.mrf.mxu0
    %v2403 = vadd.f32 %v2390, %v2402
    %v2404 = vpop.f32.mrf.mxu0
    %2405 = vdwg.mxu0
    %2406 = vmatpush.bf16.msra.mxu0 %v2241
    %2407 = vmatpush.bf16.msra.mxu0 %v2239
    %2408 = vmatpush.bf16.msra.mxu0 %v2237
    %2409 = vmatpush.bf16.msra.mxu0 %v2235
    %2410 = vmatpush.bf16.msra.mxu0 %v2233
    %2411 = vmatpush.bf16.msra.mxu0 %v2231
    %2412 = vmatpush.bf16.msra.mxu0 %v2229
    %2413 = vmatpush.bf16.msra.mxu0 %v2227
    %2414 = vmatmul.bf16.gmra.mxu0 %v1960
    %v2415 = vpop.f32.mrf.mxu0
    %v2416 = vadd.f32 %v2031, %v2415
    %v2417 = vpop.f32.mrf.mxu0
    %2418 = vdwg.mxu0
    %2419 = vmatpush.bf16.msra.mxu0 %v2257
    %2420 = vmatpush.bf16.msra.mxu0 %v2255
    %2421 = vmatpush.bf16.msra.mxu0 %v2253
    %2422 = vmatpush.bf16.msra.mxu0 %v2251
    %2423 = vmatpush.bf16.msra.mxu0 %v2249
    %2424 = vmatpush.bf16.msra.mxu0 %v2247
    %2425 = vmatpush.bf16.msra.mxu0 %v2245
    %2426 = vmatpush.bf16.msra.mxu0 %v2243
    %2427 = vmatmul.bf16.gmra.mxu0 %v1961
    %v2428 = vpop.f32.mrf.mxu0
    %v2429 = vadd.f32 %v2416, %v2428
    %v2430 = vpop.f32.mrf.mxu0
    %2431 = vdwg.mxu0
    %2432 = vmatpush.bf16.msra.mxu0 %v2273
    %2433 = vmatpush.bf16.msra.mxu0 %v2271
    %2434 = vmatpush.bf16.msra.mxu0 %v2269
    %2435 = vmatpush.bf16.msra.mxu0 %v2267
    %2436 = vmatpush.bf16.msra.mxu0 %v2265
    %2437 = vmatpush.bf16.msra.mxu0 %v2263
    %2438 = vmatpush.bf16.msra.mxu0 %v2261
    %2439 = vmatpush.bf16.msra.mxu0 %v2259
    %2440 = vmatmul.bf16.gmra.mxu0 %v1962
    %v2441 = vpop.f32.mrf.mxu0
    %v2442 = vadd.f32 %v2429, %v2441
    %v2443 = vpop.f32.mrf.mxu0
    %2444 = vdwg.mxu0
    %2445 = vmatpush.bf16.msra.mxu0 %v2289
    %2446 = vmatpush.bf16.msra.mxu0 %v2287
    %2447 = vmatpush.bf16.msra.mxu0 %v2285
    %2448 = vmatpush.bf16.msra.mxu0 %v2283
    %2449 = vmatpush.bf16.msra.mxu0 %v2281
    %2450 = vmatpush.bf16.msra.mxu0 %v2279
    %2451 = vmatpush.bf16.msra.mxu0 %v2277
    %2452 = vmatpush.bf16.msra.mxu0 %v2275
    %2453 = vmatmul.bf16.gmra.mxu0 %v1963
    %v2454 = vpop.f32.mrf.mxu0
    %v2455 = vadd.f32 %v2442, %v2454
    %v2456 = vpop.f32.mrf.mxu0
    %2457 = vdwg.mxu0
    %v2458 = vmax.f32 %v2403, 0.0
    %v2459 = vmax.f32 %v2455, 0.0
    %v2460 = vpack.c.bf16 %v2458, %v2458
    %v2461 = vpack.c.bf16 %v2459, %v2459
    %v2462 = vld [vmem:[#allocation11] sm:$0xf]
    %v2463 = vld [vmem:[#allocation11 + $0x4] sm:$0xf]
    %v2464 = vld [vmem:[#allocation11 + $0x8] sm:$0xf]
    %v2465 = vld [vmem:[#allocation11 + $0xc] sm:$0xf]
    %v2466 = vld [vmem:[#allocation11 + $0x10] sm:$0xf]
    %v2467 = vld [vmem:[#allocation11 + $0x14] sm:$0xf]
    %v2468 = vld [vmem:[#allocation11 + $0x18] sm:$0xf]
    %v2469 = vld [vmem:[#allocation11 + $0x1c] sm:$0xf]
    %v2470 = vld [vmem:[#allocation11 + $0x20] sm:$0xf]
    %v2471 = vld [vmem:[#allocation11 + $0x24] sm:$0xf]
    %v2472 = vld [vmem:[#allocation11 + $0x28] sm:$0xf]
    %v2473 = vld [vmem:[#allocation11 + $0x2c] sm:$0xf]
    %v2474 = vld [vmem:[#allocation11 + $0x30] sm:$0xf]
    %v2475 = vld [vmem:[#allocation11 + $0x34] sm:$0xf]
    %v2476 = vld [vmem:[#allocation11 + $0x38] sm:$0xf]
    %v2477 = vld [vmem:[#allocation11 + $0x3c] sm:$0xf]
    %v2478 = vld [vmem:[#allocation11 + $0x40] sm:$0xf]
    %v2479 = vld [vmem:[#allocation11 + $0x44] sm:$0xf]
    %v2480 = vld [vmem:[#allocation11 + $0x48] sm:$0xf]
    %v2481 = vld [vmem:[#allocation11 + $0x4c] sm:$0xf]
    %v2482 = vld [vmem:[#allocation11 + $0x50] sm:$0xf]
    %v2483 = vld [vmem:[#allocation11 + $0x54] sm:$0xf]
    %v2484 = vld [vmem:[#allocation11 + $0x58] sm:$0xf]
    %v2485 = vld [vmem:[#allocation11 + $0x5c] sm:$0xf]
    %v2486 = vld [vmem:[#allocation11 + $0x60] sm:$0xf]
    %v2487 = vld [vmem:[#allocation11 + $0x64] sm:$0xf]
    %v2488 = vld [vmem:[#allocation11 + $0x68] sm:$0xf]
    %v2489 = vld [vmem:[#allocation11 + $0x6c] sm:$0xf]
    %v2490 = vld [vmem:[#allocation11 + $0x70] sm:$0xf]
    %v2491 = vld [vmem:[#allocation11 + $0x74] sm:$0xf]
    %v2492 = vld [vmem:[#allocation11 + $0x78] sm:$0xf]
    %v2493 = vld [vmem:[#allocation11 + $0x7c] sm:$0xf]
    %v2494 = vld [vmem:[#allocation13] sm:$0x1]
    %v2496 = vperm.slane %v2494, 0
    %v2530 = vunpack.c.l.b16 %v2462
    %v2531 = vunpack.c.l.b16 %v2463
    %v2532 = vunpack.c.l.b16 %v2464
    %v2533 = vunpack.c.l.b16 %v2465
    %v2534 = vunpack.c.l.b16 %v2466
    %v2535 = vunpack.c.l.b16 %v2467
    %v2536 = vunpack.c.l.b16 %v2468
    %v2537 = vunpack.c.l.b16 %v2469
    %v2538 = vunpack.c.l.b16 %v2470
    %v2539 = vunpack.c.l.b16 %v2471
    %v2540 = vunpack.c.l.b16 %v2472
    %v2541 = vunpack.c.l.b16 %v2473
    %v2542 = vunpack.c.l.b16 %v2474
    %v2543 = vunpack.c.l.b16 %v2475
    %v2544 = vunpack.c.l.b16 %v2476
    %v2545 = vunpack.c.l.b16 %v2477
    %v2546 = vunpack.c.l.b16 %v2478
    %v2547 = vunpack.c.l.b16 %v2479
    %v2548 = vunpack.c.l.b16 %v2480
    %v2549 = vunpack.c.l.b16 %v2481
    %v2550 = vunpack.c.l.b16 %v2482
    %v2551 = vunpack.c.l.b16 %v2483
    %v2552 = vunpack.c.l.b16 %v2484
    %v2553 = vunpack.c.l.b16 %v2485
    %v2554 = vunpack.c.l.b16 %v2486
    %v2555 = vunpack.c.l.b16 %v2487
    %v2556 = vunpack.c.l.b16 %v2488
    %v2557 = vunpack.c.l.b16 %v2489
    %v2558 = vunpack.c.l.b16 %v2490
    %v2559 = vunpack.c.l.b16 %v2491
    %v2560 = vunpack.c.l.b16 %v2492
    %v2561 = vunpack.c.l.b16 %v2493
    %v2562 = vpack.c.b16 %v2531, %v2530
    %v2563 = vpack.c.b16 %v2533, %v2532
    %v2564 = vpack.c.b16 %v2535, %v2534
    %v2565 = vpack.c.b16 %v2537, %v2536
    %v2566 = vpack.c.b16 %v2539, %v2538
    %v2567 = vpack.c.b16 %v2541, %v2540
    %v2568 = vpack.c.b16 %v2543, %v2542
    %v2569 = vpack.c.b16 %v2545, %v2544
    %v2570 = vpack.c.b16 %v2547, %v2546
    %v2571 = vpack.c.b16 %v2549, %v2548
    %v2572 = vpack.c.b16 %v2551, %v2550
    %v2573 = vpack.c.b16 %v2553, %v2552
    %v2574 = vpack.c.b16 %v2555, %v2554
    %v2575 = vpack.c.b16 %v2557, %v2556
    %v2576 = vpack.c.b16 %v2559, %v2558
    %v2577 = vpack.c.b16 %v2561, %v2560
    %2594 = vmatpush.bf16.msra.mxu0 %v2569
    %2595 = vmatpush.bf16.msra.mxu0 %v2568
    %2596 = vmatpush.bf16.msra.mxu0 %v2567
    %2597 = vmatpush.bf16.msra.mxu0 %v2566
    %2598 = vmatpush.bf16.msra.mxu0 %v2565
    %2599 = vmatpush.bf16.msra.mxu0 %v2564
    %2600 = vmatpush.bf16.msra.mxu0 %v2563
    %2601 = vmatpush.bf16.msra.mxu0 %v2562
    %2602 = vmatmul.bf16.gmra.mxu0 %v2460
    %v2603 = vpop.f32.mrf.mxu0
    %v2604 = vadd.f32 %v2496, %v2603
    %v2605 = vpop.f32.mrf.mxu0
    %2606 = vdwg.mxu0
    %2607 = vmatpush.bf16.msra.mxu0 %v2577
    %2608 = vmatpush.bf16.msra.mxu0 %v2576
    %2609 = vmatpush.bf16.msra.mxu0 %v2575
    %2610 = vmatpush.bf16.msra.mxu0 %v2574
    %2611 = vmatpush.bf16.msra.mxu0 %v2573
    %2612 = vmatpush.bf16.msra.mxu0 %v2572
    %2613 = vmatpush.bf16.msra.mxu0 %v2571
    %2614 = vmatpush.bf16.msra.mxu0 %v2570
    %2615 = vmatmul.bf16.gmra.mxu0 %v2461
    %v2616 = vpop.f32.mrf.mxu0
    %v2617 = vadd.f32 %v2604, %v2616
    %v2618 = vpop.f32.mrf.mxu0
    %2619 = vdwg.mxu0
    %2620 = vst [vmem:[#allocation20] sm:$0xff] %v2617
    %v2621 = vpack.c.bf16 %v2617, %v2617
    %v2622 = vld [vmem:[#allocation14] sm:$0xff]
    %v2623 = vld [vmem:[#allocation14 + $0x8] sm:$0xff]
    %v2624 = vld [vmem:[#allocation14 + $0x10] sm:$0xff]
    %v2625 = vld [vmem:[#allocation14 + $0x18] sm:$0xff]
    %v2626 = vld [vmem:[#allocation14 + $0x20] sm:$0xff]
    %v2627 = vld [vmem:[#allocation14 + $0x28] sm:$0xff]
    %v2628 = vld [vmem:[#allocation14 + $0x30] sm:$0xff]
    %v2629 = vld [vmem:[#allocation14 + $0x38] sm:$0xff]
    %v2630 = vld [vmem:[#allocation14 + $0x40] sm:$0xff]
    %v2631 = vld [vmem:[#allocation14 + $0x48] sm:$0xff]
    %v2632 = vld [vmem:[#allocation14 + $0x50] sm:$0xff]
    %v2633 = vld [vmem:[#allocation14 + $0x58] sm:$0xff]
    %v2634 = vld [vmem:[#allocation14 + $0x60] sm:$0xff]
    %v2635 = vld [vmem:[#allocation14 + $0x68] sm:$0xff]
    %v2636 = vld [vmem:[#allocation14 + $0x70] sm:$0xff]
    %v2637 = vld [vmem:[#allocation14 + $0x78] sm:$0xff]
    %v2638 = vld [vmem:[#allocation16] sm:$0x3]
    %v2640 = vperm.slane %v2638, 0
    %v2641 = vperm.slane %v2638, 1
    %v2660 = vunpack.c.l.b16 %v2622
    %v2661 = vunpack.c.h.b16 %v2622
    %v2662 = vunpack.c.l.b16 %v2623
    %v2663 = vunpack.c.h.b16 %v2623
    %v2664 = vunpack.c.l.b16 %v2624
    %v2665 = vunpack.c.h.b16 %v2624
    %v2666 = vunpack.c.l.b16 %v2625
    %v2667 = vunpack.c.h.b16 %v2625
    %v2668 = vunpack.c.l.b16 %v2626
    %v2669 = vunpack.c.h.b16 %v2626
    %v2670 = vunpack.c.l.b16 %v2627
    %v2671 = vunpack.c.h.b16 %v2627
    %v2672 = vunpack.c.l.b16 %v2628
    %v2673 = vunpack.c.h.b16 %v2628
    %v2674 = vunpack.c.l.b16 %v2629
    %v2675 = vunpack.c.h.b16 %v2629
    %v2676 = vunpack.c.l.b16 %v2630
    %v2677 = vunpack.c.h.b16 %v2630
    %v2678 = vunpack.c.l.b16 %v2631
    %v2679 = vunpack.c.h.b16 %v2631
    %v2680 = vunpack.c.l.b16 %v2632
    %v2681 = vunpack.c.h.b16 %v2632
    %v2682 = vunpack.c.l.b16 %v2633
    %v2683 = vunpack.c.h.b16 %v2633
    %v2684 = vunpack.c.l.b16 %v2634
    %v2685 = vunpack.c.h.b16 %v2634
    %v2686 = vunpack.c.l.b16 %v2635
    %v2687 = vunpack.c.h.b16 %v2635
    %v2688 = vunpack.c.l.b16 %v2636
    %v2689 = vunpack.c.h.b16 %v2636
    %v2690 = vunpack.c.l.b16 %v2637
    %v2691 = vunpack.c.h.b16 %v2637
    %v2692 = vpack.c.b16 %v2662, %v2660
    %v2693 = vpack.c.b16 %v2663, %v2661
    %v2694 = vpack.c.b16 %v2666, %v2664
    %v2695 = vpack.c.b16 %v2667, %v2665
    %v2696 = vpack.c.b16 %v2670, %v2668
    %v2697 = vpack.c.b16 %v2671, %v2669
    %v2698 = vpack.c.b16 %v2674, %v2672
    %v2699 = vpack.c.b16 %v2675, %v2673
    %v2700 = vpack.c.b16 %v2678, %v2676
    %v2701 = vpack.c.b16 %v2679, %v2677
    %v2702 = vpack.c.b16 %v2682, %v2680
    %v2703 = vpack.c.b16 %v2683, %v2681
    %v2704 = vpack.c.b16 %v2686, %v2684
    %v2705 = vpack.c.b16 %v2687, %v2685
    %v2706 = vpack.c.b16 %v2690, %v2688
    %v2707 = vpack.c.b16 %v2691, %v2689
    %2724 = vmatpush.bf16.msra.mxu0 %v2706
    %2725 = vmatpush.bf16.msra.mxu0 %v2704
    %2726 = vmatpush.bf16.msra.mxu0 %v2702
    %2727 = vmatpush.bf16.msra.mxu0 %v2700
    %2728 = vmatpush.bf16.msra.mxu0 %v2698
    %2729 = vmatpush.bf16.msra.mxu0 %v2696
    %2730 = vmatpush.bf16.msra.mxu0 %v2694
    %2731 = vmatpush.bf16.msra.mxu0 %v2692
    %2732 = vmatmul.bf16.gmra.mxu0 %v2621
    %v2733 = vpop.f32.mrf.mxu0
    %v2734 = vadd.f32 %v2640, %v2733
    %v2735 = vpop.f32.mrf.mxu0
    %2736 = vdwg.mxu0
    %2737 = vmatpush.bf16.msra.mxu0 %v2707
    %2738 = vmatpush.bf16.msra.mxu0 %v2705
    %2739 = vmatpush.bf16.msra.mxu0 %v2703
    %2740 = vmatpush.bf16.msra.mxu0 %v2701
    %2741 = vmatpush.bf16.msra.mxu0 %v2699
    %2742 = vmatpush.bf16.msra.mxu0 %v2697
    %2743 = vmatpush.bf16.msra.mxu0 %v2695
    %2744 = vmatpush.bf16.msra.mxu0 %v2693
    %2745 = vmatmul.bf16.gmra.mxu0 %v2621
    %v2746 = vpop.f32.mrf.mxu0
    %v2747 = vadd.f32 %v2641, %v2746
    %v2748 = vpop.f32.mrf.mxu0
    %2749 = vdwg.mxu0
    %v2750 = vmax.f32 %v2734, 0.0
    %v2751 = vmax.f32 %v2747, 0.0
    %v2752 = vpack.c.bf16 %v2750, %v2750
    %v2753 = vpack.c.bf16 %v2751, %v2751
    %v2754 = vld [vmem:[#allocation17] sm:$0xff]
    %v2755 = vld [vmem:[#allocation17 + $0x8] sm:$0xff]
    %v2756 = vld [vmem:[#allocation17 + $0x10] sm:$0xff]
    %v2757 = vld [vmem:[#allocation17 + $0x18] sm:$0xff]
    %v2758 = vld [vmem:[#allocation17 + $0x20] sm:$0xff]
    %v2759 = vld [vmem:[#allocation17 + $0x28] sm:$0xff]
    %v2760 = vld [vmem:[#allocation17 + $0x30] sm:$0xff]
    %v2761 = vld [vmem:[#allocation17 + $0x38] sm:$0xff]
    %v2762 = vld [vmem:[#allocation17 + $0x40] sm:$0xff]
    %v2763 = vld [vmem:[#allocation17 + $0x48] sm:$0xff]
    %v2764 = vld [vmem:[#allocation17 + $0x50] sm:$0xff]
    %v2765 = vld [vmem:[#allocation17 + $0x58] sm:$0xff]
    %v2766 = vld [vmem:[#allocation17 + $0x60] sm:$0xff]
    %v2767 = vld [vmem:[#allocation17 + $0x68] sm:$0xff]
    %v2768 = vld [vmem:[#allocation17 + $0x70] sm:$0xff]
    %v2769 = vld [vmem:[#allocation17 + $0x78] sm:$0xff]
    %v2770 = vld [vmem:[#allocation17 + $0x80] sm:$0xff]
    %v2771 = vld [vmem:[#allocation17 + $0x88] sm:$0xff]
    %v2772 = vld [vmem:[#allocation17 + $0x90] sm:$0xff]
    %v2773 = vld [vmem:[#allocation17 + $0x98] sm:$0xff]
    %v2774 = vld [vmem:[#allocation17 + $0xa0] sm:$0xff]
    %v2775 = vld [vmem:[#allocation17 + $0xa8] sm:$0xff]
    %v2776 = vld [vmem:[#allocation17 + $0xb0] sm:$0xff]
    %v2777 = vld [vmem:[#allocation17 + $0xb8] sm:$0xff]
    %v2778 = vld [vmem:[#allocation17 + $0xc0] sm:$0xff]
    %v2779 = vld [vmem:[#allocation17 + $0xc8] sm:$0xff]
    %v2780 = vld [vmem:[#allocation17 + $0xd0] sm:$0xff]
    %v2781 = vld [vmem:[#allocation17 + $0xd8] sm:$0xff]
    %v2782 = vld [vmem:[#allocation17 + $0xe0] sm:$0xff]
    %v2783 = vld [vmem:[#allocation17 + $0xe8] sm:$0xff]
    %v2784 = vld [vmem:[#allocation17 + $0xf0] sm:$0xff]
    %v2785 = vld [vmem:[#allocation17 + $0xf8] sm:$0xff]
    %v2786 = vld [vmem:[#allocation17 + $0x100] sm:$0xff]
    %v2787 = vld [vmem:[#allocation17 + $0x108] sm:$0xff]
    %v2788 = vld [vmem:[#allocation17 + $0x110] sm:$0xff]
    %v2789 = vld [vmem:[#allocation17 + $0x118] sm:$0xff]
    %v2790 = vld [vmem:[#allocation17 + $0x120] sm:$0xff]
    %v2791 = vld [vmem:[#allocation17 + $0x128] sm:$0xff]
    %v2792 = vld [vmem:[#allocation17 + $0x130] sm:$0xff]
    %v2793 = vld [vmem:[#allocation17 + $0x138] sm:$0xff]
    %v2794 = vld [vmem:[#allocation17 + $0x140] sm:$0xff]
    %v2795 = vld [vmem:[#allocation17 + $0x148] sm:$0xff]
    %v2796 = vld [vmem:[#allocation17 + $0x150] sm:$0xff]
    %v2797 = vld [vmem:[#allocation17 + $0x158] sm:$0xff]
    %v2798 = vld [vmem:[#allocation17 + $0x160] sm:$0xff]
    %v2799 = vld [vmem:[#allocation17 + $0x168] sm:$0xff]
    %v2800 = vld [vmem:[#allocation17 + $0x170] sm:$0xff]
    %v2801 = vld [vmem:[#allocation17 + $0x178] sm:$0xff]
    %v2802 = vld [vmem:[#allocation17 + $0x180] sm:$0xff]
    %v2803 = vld [vmem:[#allocation17 + $0x188] sm:$0xff]
    %v2804 = vld [vmem:[#allocation17 + $0x190] sm:$0xff]
    %v2805 = vld [vmem:[#allocation17 + $0x198] sm:$0xff]
    %v2806 = vld [vmem:[#allocation17 + $0x1a0] sm:$0xff]
    %v2807 = vld [vmem:[#allocation17 + $0x1a8] sm:$0xff]
    %v2808 = vld [vmem:[#allocation17 + $0x1b0] sm:$0xff]
    %v2809 = vld [vmem:[#allocation17 + $0x1b8] sm:$0xff]
    %v2810 = vld [vmem:[#allocation17 + $0x1c0] sm:$0xff]
    %v2811 = vld [vmem:[#allocation17 + $0x1c8] sm:$0xff]
    %v2812 = vld [vmem:[#allocation17 + $0x1d0] sm:$0xff]
    %v2813 = vld [vmem:[#allocation17 + $0x1d8] sm:$0xff]
    %v2814 = vld [vmem:[#allocation17 + $0x1e0] sm:$0xff]
    %v2815 = vld [vmem:[#allocation17 + $0x1e8] sm:$0xff]
    %v2816 = vld [vmem:[#allocation17 + $0x1f0] sm:$0xff]
    %v2817 = vld [vmem:[#allocation17 + $0x1f8] sm:$0xff]
    %v2818 = vld [vmem:[%s10] sm:$0xf]
    %v2820 = vperm.slane %v2818, 0
    %v2821 = vperm.slane %v2818, 1
    %v2822 = vperm.slane %v2818, 2
    %v2823 = vperm.slane %v2818, 3
    %v2892 = vunpack.c.l.b16 %v2754
    %v2893 = vunpack.c.h.b16 %v2754
    %v2894 = vunpack.c.l.b16 %v2755
    %v2895 = vunpack.c.h.b16 %v2755
    %v2896 = vunpack.c.l.b16 %v2756
    %v2897 = vunpack.c.h.b16 %v2756
    %v2898 = vunpack.c.l.b16 %v2757
    %v2899 = vunpack.c.h.b16 %v2757
    %v2900 = vunpack.c.l.b16 %v2758
    %v2901 = vunpack.c.h.b16 %v2758
    %v2902 = vunpack.c.l.b16 %v2759
    %v2903 = vunpack.c.h.b16 %v2759
    %v2904 = vunpack.c.l.b16 %v2760
    %v2905 = vunpack.c.h.b16 %v2760
    %v2906 = vunpack.c.l.b16 %v2761
    %v2907 = vunpack.c.h.b16 %v2761
    %v2908 = vunpack.c.l.b16 %v2762
    %v2909 = vunpack.c.h.b16 %v2762
    %v2910 = vunpack.c.l.b16 %v2763
    %v2911 = vunpack.c.h.b16 %v2763
    %v2912 = vunpack.c.l.b16 %v2764
    %v2913 = vunpack.c.h.b16 %v2764
    %v2914 = vunpack.c.l.b16 %v2765
    %v2915 = vunpack.c.h.b16 %v2765
    %v2916 = vunpack.c.l.b16 %v2766
    %v2917 = vunpack.c.h.b16 %v2766
    %v2918 = vunpack.c.l.b16 %v2767
    %v2919 = vunpack.c.h.b16 %v2767
    %v2920 = vunpack.c.l.b16 %v2768
    %v2921 = vunpack.c.h.b16 %v2768
    %v2922 = vunpack.c.l.b16 %v2769
    %v2923 = vunpack.c.h.b16 %v2769
    %v2924 = vunpack.c.l.b16 %v2770
    %v2925 = vunpack.c.h.b16 %v2770
    %v2926 = vunpack.c.l.b16 %v2771
    %v2927 = vunpack.c.h.b16 %v2771
    %v2928 = vunpack.c.l.b16 %v2772
    %v2929 = vunpack.c.h.b16 %v2772
    %v2930 = vunpack.c.l.b16 %v2773
    %v2931 = vunpack.c.h.b16 %v2773
    %v2932 = vunpack.c.l.b16 %v2774
    %v2933 = vunpack.c.h.b16 %v2774
    %v2934 = vunpack.c.l.b16 %v2775
    %v2935 = vunpack.c.h.b16 %v2775
    %v2936 = vunpack.c.l.b16 %v2776
    %v2937 = vunpack.c.h.b16 %v2776
    %v2938 = vunpack.c.l.b16 %v2777
    %v2939 = vunpack.c.h.b16 %v2777
    %v2940 = vunpack.c.l.b16 %v2778
    %v2941 = vunpack.c.h.b16 %v2778
    %v2942 = vunpack.c.l.b16 %v2779
    %v2943 = vunpack.c.h.b16 %v2779
    %v2944 = vunpack.c.l.b16 %v2780
    %v2945 = vunpack.c.h.b16 %v2780
    %v2946 = vunpack.c.l.b16 %v2781
    %v2947 = vunpack.c.h.b16 %v2781
    %v2948 = vunpack.c.l.b16 %v2782
    %v2949 = vunpack.c.h.b16 %v2782
    %v2950 = vunpack.c.l.b16 %v2783
    %v2951 = vunpack.c.h.b16 %v2783
    %v2952 = vunpack.c.l.b16 %v2784
    %v2953 = vunpack.c.h.b16 %v2784
    %v2954 = vunpack.c.l.b16 %v2785
    %v2955 = vunpack.c.h.b16 %v2785
    %v2956 = vunpack.c.l.b16 %v2786
    %v2957 = vunpack.c.h.b16 %v2786
    %v2958 = vunpack.c.l.b16 %v2787
    %v2959 = vunpack.c.h.b16 %v2787
    %v2960 = vunpack.c.l.b16 %v2788
    %v2961 = vunpack.c.h.b16 %v2788
    %v2962 = vunpack.c.l.b16 %v2789
    %v2963 = vunpack.c.h.b16 %v2789
    %v2964 = vunpack.c.l.b16 %v2790
    %v2965 = vunpack.c.h.b16 %v2790
    %v2966 = vunpack.c.l.b16 %v2791
    %v2967 = vunpack.c.h.b16 %v2791
    %v2968 = vunpack.c.l.b16 %v2792
    %v2969 = vunpack.c.h.b16 %v2792
    %v2970 = vunpack.c.l.b16 %v2793
    %v2971 = vunpack.c.h.b16 %v2793
    %v2972 = vunpack.c.l.b16 %v2794
    %v2973 = vunpack.c.h.b16 %v2794
    %v2974 = vunpack.c.l.b16 %v2795
    %v2975 = vunpack.c.h.b16 %v2795
    %v2976 = vunpack.c.l.b16 %v2796
    %v2977 = vunpack.c.h.b16 %v2796
    %v2978 = vunpack.c.l.b16 %v2797
    %v2979 = vunpack.c.h.b16 %v2797
    %v2980 = vunpack.c.l.b16 %v2798
    %v2981 = vunpack.c.h.b16 %v2798
    %v2982 = vunpack.c.l.b16 %v2799
    %v2983 = vunpack.c.h.b16 %v2799
    %v2984 = vunpack.c.l.b16 %v2800
    %v2985 = vunpack.c.h.b16 %v2800
    %v2986 = vunpack.c.l.b16 %v2801
    %v2987 = vunpack.c.h.b16 %v2801
    %v2988 = vunpack.c.l.b16 %v2802
    %v2989 = vunpack.c.h.b16 %v2802
    %v2990 = vunpack.c.l.b16 %v2803
    %v2991 = vunpack.c.h.b16 %v2803
    %v2992 = vunpack.c.l.b16 %v2804
    %v2993 = vunpack.c.h.b16 %v2804
    %v2994 = vunpack.c.l.b16 %v2805
    %v2995 = vunpack.c.h.b16 %v2805
    %v2996 = vunpack.c.l.b16 %v2806
    %v2997 = vunpack.c.h.b16 %v2806
    %v2998 = vunpack.c.l.b16 %v2807
    %v2999 = vunpack.c.h.b16 %v2807
    %v3000 = vunpack.c.l.b16 %v2808
    %v3001 = vunpack.c.h.b16 %v2808
    %v3002 = vunpack.c.l.b16 %v2809
    %v3003 = vunpack.c.h.b16 %v2809
    %v3004 = vunpack.c.l.b16 %v2810
    %v3005 = vunpack.c.h.b16 %v2810
    %v3006 = vunpack.c.l.b16 %v2811
    %v3007 = vunpack.c.h.b16 %v2811
    %v3008 = vunpack.c.l.b16 %v2812
    %v3009 = vunpack.c.h.b16 %v2812
    %v3010 = vunpack.c.l.b16 %v2813
    %v3011 = vunpack.c.h.b16 %v2813
    %v3012 = vunpack.c.l.b16 %v2814
    %v3013 = vunpack.c.h.b16 %v2814
    %v3014 = vunpack.c.l.b16 %v2815
    %v3015 = vunpack.c.h.b16 %v2815
    %v3016 = vunpack.c.l.b16 %v2816
    %v3017 = vunpack.c.h.b16 %v2816
    %v3018 = vunpack.c.l.b16 %v2817
    %v3019 = vunpack.c.h.b16 %v2817
    %v3020 = vpack.c.b16 %v2896, %v2892
    %v3021 = vpack.c.b16 %v2897, %v2893
    %v3022 = vpack.c.b16 %v2898, %v2894
    %v3023 = vpack.c.b16 %v2899, %v2895
    %v3024 = vpack.c.b16 %v2904, %v2900
    %v3025 = vpack.c.b16 %v2905, %v2901
    %v3026 = vpack.c.b16 %v2906, %v2902
    %v3027 = vpack.c.b16 %v2907, %v2903
    %v3028 = vpack.c.b16 %v2912, %v2908
    %v3029 = vpack.c.b16 %v2913, %v2909
    %v3030 = vpack.c.b16 %v2914, %v2910
    %v3031 = vpack.c.b16 %v2915, %v2911
    %v3032 = vpack.c.b16 %v2920, %v2916
    %v3033 = vpack.c.b16 %v2921, %v2917
    %v3034 = vpack.c.b16 %v2922, %v2918
    %v3035 = vpack.c.b16 %v2923, %v2919
    %v3036 = vpack.c.b16 %v2928, %v2924
    %v3037 = vpack.c.b16 %v2929, %v2925
    %v3038 = vpack.c.b16 %v2930, %v2926
    %v3039 = vpack.c.b16 %v2931, %v2927
    %v3040 = vpack.c.b16 %v2936, %v2932
    %v3041 = vpack.c.b16 %v2937, %v2933
    %v3042 = vpack.c.b16 %v2938, %v2934
    %v3043 = vpack.c.b16 %v2939, %v2935
    %v3044 = vpack.c.b16 %v2944, %v2940
    %v3045 = vpack.c.b16 %v2945, %v2941
    %v3046 = vpack.c.b16 %v2946, %v2942
    %v3047 = vpack.c.b16 %v2947, %v2943
    %v3048 = vpack.c.b16 %v2952, %v2948
    %v3049 = vpack.c.b16 %v2953, %v2949
    %v3050 = vpack.c.b16 %v2954, %v2950
    %v3051 = vpack.c.b16 %v2955, %v2951
    %v3052 = vpack.c.b16 %v2960, %v2956
    %v3053 = vpack.c.b16 %v2961, %v2957
    %v3054 = vpack.c.b16 %v2962, %v2958
    %v3055 = vpack.c.b16 %v2963, %v2959
    %v3056 = vpack.c.b16 %v2968, %v2964
    %v3057 = vpack.c.b16 %v2969, %v2965
    %v3058 = vpack.c.b16 %v2970, %v2966
    %v3059 = vpack.c.b16 %v2971, %v2967
    %v3060 = vpack.c.b16 %v2976, %v2972
    %v3061 = vpack.c.b16 %v2977, %v2973
    %v3062 = vpack.c.b16 %v2978, %v2974
    %v3063 = vpack.c.b16 %v2979, %v2975
    %v3064 = vpack.c.b16 %v2984, %v2980
    %v3065 = vpack.c.b16 %v2985, %v2981
    %v3066 = vpack.c.b16 %v2986, %v2982
    %v3067 = vpack.c.b16 %v2987, %v2983
    %v3068 = vpack.c.b16 %v2992, %v2988
    %v3069 = vpack.c.b16 %v2993, %v2989
    %v3070 = vpack.c.b16 %v2994, %v2990
    %v3071 = vpack.c.b16 %v2995, %v2991
    %v3072 = vpack.c.b16 %v3000, %v2996
    %v3073 = vpack.c.b16 %v3001, %v2997
    %v3074 = vpack.c.b16 %v3002, %v2998
    %v3075 = vpack.c.b16 %v3003, %v2999
    %v3076 = vpack.c.b16 %v3008, %v3004
    %v3077 = vpack.c.b16 %v3009, %v3005
    %v3078 = vpack.c.b16 %v3010, %v3006
    %v3079 = vpack.c.b16 %v3011, %v3007
    %v3080 = vpack.c.b16 %v3016, %v3012
    %v3081 = vpack.c.b16 %v3017, %v3013
    %v3082 = vpack.c.b16 %v3018, %v3014
    %v3083 = vpack.c.b16 %v3019, %v3015
    %3148 = vmatpush.bf16.msra.mxu0 %v3048
    %3149 = vmatpush.bf16.msra.mxu0 %v3044
    %3150 = vmatpush.bf16.msra.mxu0 %v3040
    %3151 = vmatpush.bf16.msra.mxu0 %v3036
    %3152 = vmatpush.bf16.msra.mxu0 %v3032
    %3153 = vmatpush.bf16.msra.mxu0 %v3028
    %3154 = vmatpush.bf16.msra.mxu0 %v3024
    %3155 = vmatpush.bf16.msra.mxu0 %v3020
    %3156 = vmatmul.bf16.gmra.mxu0 %v2752
    %v3157 = vpop.f32.mrf.mxu0
    %v3158 = vadd.f32 %v2820, %v3157
    %v3159 = vpop.f32.mrf.mxu0
    %3160 = vdwg.mxu0
    %3161 = vmatpush.bf16.msra.mxu0 %v3080
    %3162 = vmatpush.bf16.msra.mxu0 %v3076
    %3163 = vmatpush.bf16.msra.mxu0 %v3072
    %3164 = vmatpush.bf16.msra.mxu0 %v3068
    %3165 = vmatpush.bf16.msra.mxu0 %v3064
    %3166 = vmatpush.bf16.msra.mxu0 %v3060
    %3167 = vmatpush.bf16.msra.mxu0 %v3056
    %3168 = vmatpush.bf16.msra.mxu0 %v3052
    %3169 = vmatmul.bf16.gmra.mxu0 %v2753
    %v3170 = vpop.f32.mrf.mxu0
    %v3171 = vadd.f32 %v3158, %v3170
    %v3172 = vpop.f32.mrf.mxu0
    %3173 = vdwg.mxu0
    %3174 = vmatpush.bf16.msra.mxu0 %v3049
    %3175 = vmatpush.bf16.msra.mxu0 %v3045
    %3176 = vmatpush.bf16.msra.mxu0 %v3041
    %3177 = vmatpush.bf16.msra.mxu0 %v3037
    %3178 = vmatpush.bf16.msra.mxu0 %v3033
    %3179 = vmatpush.bf16.msra.mxu0 %v3029
    %3180 = vmatpush.bf16.msra.mxu0 %v3025
    %3181 = vmatpush.bf16.msra.mxu0 %v3021
    %3182 = vmatmul.bf16.gmra.mxu0 %v2752
    %v3183 = vpop.f32.mrf.mxu0
    %v3184 = vadd.f32 %v2821, %v3183
    %v3185 = vpop.f32.mrf.mxu0
    %3186 = vdwg.mxu0
    %3187 = vmatpush.bf16.msra.mxu0 %v3081
    %3188 = vmatpush.bf16.msra.mxu0 %v3077
    %3189 = vmatpush.bf16.msra.mxu0 %v3073
    %3190 = vmatpush.bf16.msra.mxu0 %v3069
    %3191 = vmatpush.bf16.msra.mxu0 %v3065
    %3192 = vmatpush.bf16.msra.mxu0 %v3061
    %3193 = vmatpush.bf16.msra.mxu0 %v3057
    %3194 = vmatpush.bf16.msra.mxu0 %v3053
    %3195 = vmatmul.bf16.gmra.mxu0 %v2753
    %v3196 = vpop.f32.mrf.mxu0
    %v3197 = vadd.f32 %v3184, %v3196
    %v3198 = vpop.f32.mrf.mxu0
    %3199 = vdwg.mxu0
    %3200 = vmatpush.bf16.msra.mxu0 %v3050
    %3201 = vmatpush.bf16.msra.mxu0 %v3046
    %3202 = vmatpush.bf16.msra.mxu0 %v3042
    %3203 = vmatpush.bf16.msra.mxu0 %v3038
    %3204 = vmatpush.bf16.msra.mxu0 %v3034
    %3205 = vmatpush.bf16.msra.mxu0 %v3030
    %3206 = vmatpush.bf16.msra.mxu0 %v3026
    %3207 = vmatpush.bf16.msra.mxu0 %v3022
    %3208 = vmatmul.bf16.gmra.mxu0 %v2752
    %v3209 = vpop.f32.mrf.mxu0
    %v3210 = vadd.f32 %v2822, %v3209
    %v3211 = vpop.f32.mrf.mxu0
    %3212 = vdwg.mxu0
    %3213 = vmatpush.bf16.msra.mxu0 %v3082
    %3214 = vmatpush.bf16.msra.mxu0 %v3078
    %3215 = vmatpush.bf16.msra.mxu0 %v3074
    %3216 = vmatpush.bf16.msra.mxu0 %v3070
    %3217 = vmatpush.bf16.msra.mxu0 %v3066
    %3218 = vmatpush.bf16.msra.mxu0 %v3062
    %3219 = vmatpush.bf16.msra.mxu0 %v3058
    %3220 = vmatpush.bf16.msra.mxu0 %v3054
    %3221 = vmatmul.bf16.gmra.mxu0 %v2753
    %v3222 = vpop.f32.mrf.mxu0
    %v3223 = vadd.f32 %v3210, %v3222
    %v3224 = vpop.f32.mrf.mxu0
    %3225 = vdwg.mxu0
    %3226 = vmatpush.bf16.msra.mxu0 %v3051
    %3227 = vmatpush.bf16.msra.mxu0 %v3047
    %3228 = vmatpush.bf16.msra.mxu0 %v3043
    %3229 = vmatpush.bf16.msra.mxu0 %v3039
    %3230 = vmatpush.bf16.msra.mxu0 %v3035
    %3231 = vmatpush.bf16.msra.mxu0 %v3031
    %3232 = vmatpush.bf16.msra.mxu0 %v3027
    %3233 = vmatpush.bf16.msra.mxu0 %v3023
    %3234 = vmatmul.bf16.gmra.mxu0 %v2752
    %v3235 = vpop.f32.mrf.mxu0
    %v3236 = vadd.f32 %v2823, %v3235
    %v3237 = vpop.f32.mrf.mxu0
    %3238 = vdwg.mxu0
    %3239 = vmatpush.bf16.msra.mxu0 %v3083
    %3240 = vmatpush.bf16.msra.mxu0 %v3079
    %3241 = vmatpush.bf16.msra.mxu0 %v3075
    %3242 = vmatpush.bf16.msra.mxu0 %v3071
    %3243 = vmatpush.bf16.msra.mxu0 %v3067
    %3244 = vmatpush.bf16.msra.mxu0 %v3063
    %3245 = vmatpush.bf16.msra.mxu0 %v3059
    %3246 = vmatpush.bf16.msra.mxu0 %v3055
    %3247 = vmatmul.bf16.gmra.mxu0 %v2753
    %v3248 = vpop.f32.mrf.mxu0
    %v3249 = vadd.f32 %v3236, %v3248
    %v3250 = vpop.f32.mrf.mxu0
    %3251 = vdwg.mxu0
    %v3252 = vmax.f32 %v3171, 0.0
    %v3253 = vmax.f32 %v3197, 0.0
    %v3254 = vmax.f32 %v3223, 0.0
    %v3255 = vmax.f32 %v3249, 0.0
    %v3256 = vpack.c.bf16 %v3252, %v3252
    %v3257 = vpack.c.bf16 %v3253, %v3253
    %v3258 = vpack.c.bf16 %v3254, %v3254
    %v3259 = vpack.c.bf16 %v3255, %v3255
    %v3260 = vld [vmem:[#allocation19] sm:$0xff]
    %v3261 = vld [vmem:[#allocation19 + $0x8] sm:$0xff]
    %v3262 = vld [vmem:[#allocation19 + $0x10] sm:$0xff]
    %v3263 = vld [vmem:[#allocation19 + $0x18] sm:$0xf]
    %v3264 = vld [vmem:[#allocation19 + $0x1c] sm:$0xff]
    %v3265 = vld [vmem:[#allocation19 + $0x24] sm:$0xff]
    %v3266 = vld [vmem:[#allocation19 + $0x2c] sm:$0xff]
    %v3267 = vld [vmem:[#allocation19 + $0x34] sm:$0xf]
    %v3268 = vld [vmem:[#allocation19 + $0x38] sm:$0xff]
    %v3269 = vld [vmem:[#allocation19 + $0x40] sm:$0xff]
    %v3270 = vld [vmem:[#allocation19 + $0x48] sm:$0xff]
    %v3271 = vld [vmem:[#allocation19 + $0x50] sm:$0xf]
    %v3272 = vld [vmem:[#allocation19 + $0x54] sm:$0xff]
    %v3273 = vld [vmem:[#allocation19 + $0x5c] sm:$0xff]
    %v3274 = vld [vmem:[#allocation19 + $0x64] sm:$0xff]
    %v3275 = vld [vmem:[#allocation19 + $0x6c] sm:$0xf]
    %v3276 = vld [vmem:[#allocation19 + $0x70] sm:$0xff]
    %v3277 = vld [vmem:[#allocation19 + $0x78] sm:$0xff]
    %v3278 = vld [vmem:[#allocation19 + $0x80] sm:$0xff]
    %v3279 = vld [vmem:[#allocation19 + $0x88] sm:$0xf]
    %v3280 = vld [vmem:[#allocation19 + $0x8c] sm:$0xff]
    %v3281 = vld [vmem:[#allocation19 + $0x94] sm:$0xff]
    %v3282 = vld [vmem:[#allocation19 + $0x9c] sm:$0xff]
    %v3283 = vld [vmem:[#allocation19 + $0xa4] sm:$0xf]
    %v3284 = vld [vmem:[#allocation19 + $0xa8] sm:$0xff]
    %v3285 = vld [vmem:[#allocation19 + $0xb0] sm:$0xff]
    %v3286 = vld [vmem:[#allocation19 + $0xb8] sm:$0xff]
    %v3287 = vld [vmem:[#allocation19 + $0xc0] sm:$0xf]
    %v3288 = vld [vmem:[#allocation19 + $0xc4] sm:$0xff]
    %v3289 = vld [vmem:[#allocation19 + $0xcc] sm:$0xff]
    %v3290 = vld [vmem:[#allocation19 + $0xd4] sm:$0xff]
    %v3291 = vld [vmem:[#allocation19 + $0xdc] sm:$0xf]
    %v3292 = vld [vmem:[#allocation19 + $0xe0] sm:$0xff]
    %v3293 = vld [vmem:[#allocation19 + $0xe8] sm:$0xff]
    %v3294 = vld [vmem:[#allocation19 + $0xf0] sm:$0xff]
    %v3295 = vld [vmem:[#allocation19 + $0xf8] sm:$0xf]
    %v3296 = vld [vmem:[#allocation19 + $0xfc] sm:$0xff]
    %v3297 = vld [vmem:[#allocation19 + $0x104] sm:$0xff]
    %v3298 = vld [vmem:[#allocation19 + $0x10c] sm:$0xff]
    %v3299 = vld [vmem:[#allocation19 + $0x114] sm:$0xf]
    %v3300 = vld [vmem:[#allocation19 + $0x118] sm:$0xff]
    %v3301 = vld [vmem:[#allocation19 + $0x120] sm:$0xff]
    %v3302 = vld [vmem:[#allocation19 + $0x128] sm:$0xff]
    %v3303 = vld [vmem:[#allocation19 + $0x130] sm:$0xf]
    %v3304 = vld [vmem:[#allocation19 + $0x134] sm:$0xff]
    %v3305 = vld [vmem:[#allocation19 + $0x13c] sm:$0xff]
    %v3306 = vld [vmem:[#allocation19 + $0x144] sm:$0xff]
    %v3307 = vld [vmem:[#allocation19 + $0x14c] sm:$0xf]
    %v3308 = vld [vmem:[#allocation19 + $0x150] sm:$0xff]
    %v3309 = vld [vmem:[#allocation19 + $0x158] sm:$0xff]
    %v3310 = vld [vmem:[#allocation19 + $0x160] sm:$0xff]
    %v3311 = vld [vmem:[#allocation19 + $0x168] sm:$0xf]
    %v3312 = vld [vmem:[#allocation19 + $0x16c] sm:$0xff]
    %v3313 = vld [vmem:[#allocation19 + $0x174] sm:$0xff]
    %v3314 = vld [vmem:[#allocation19 + $0x17c] sm:$0xff]
    %v3315 = vld [vmem:[#allocation19 + $0x184] sm:$0xf]
    %v3316 = vld [vmem:[#allocation19 + $0x188] sm:$0xff]
    %v3317 = vld [vmem:[#allocation19 + $0x190] sm:$0xff]
    %v3318 = vld [vmem:[#allocation19 + $0x198] sm:$0xff]
    %v3319 = vld [vmem:[#allocation19 + $0x1a0] sm:$0xf]
    %v3320 = vld [vmem:[#allocation19 + $0x1a4] sm:$0xff]
    %v3321 = vld [vmem:[#allocation19 + $0x1ac] sm:$0xff]
    %v3322 = vld [vmem:[#allocation19 + $0x1b4] sm:$0xff]
    %v3323 = vld [vmem:[#allocation19 + $0x1bc] sm:$0xf]
    %v3324 = vld [vmem:[#allocation19 + $0x1c0] sm:$0xff]
    %v3325 = vld [vmem:[#allocation19 + $0x1c8] sm:$0xff]
    %v3326 = vld [vmem:[#allocation19 + $0x1d0] sm:$0xff]
    %v3327 = vld [vmem:[#allocation19 + $0x1d8] sm:$0xf]
    %v3328 = vld [vmem:[#allocation19 + $0x1dc] sm:$0xff]
    %v3329 = vld [vmem:[#allocation19 + $0x1e4] sm:$0xff]
    %v3330 = vld [vmem:[#allocation19 + $0x1ec] sm:$0xff]
    %v3331 = vld [vmem:[#allocation19 + $0x1f4] sm:$0xf]
    %v3332 = vld [vmem:[#allocation19 + $0x1f8] sm:$0xff]
    %v3333 = vld [vmem:[#allocation19 + $0x200] sm:$0xff]
    %v3334 = vld [vmem:[#allocation19 + $0x208] sm:$0xff]
    %v3335 = vld [vmem:[#allocation19 + $0x210] sm:$0xf]
    %v3336 = vld [vmem:[#allocation19 + $0x214] sm:$0xff]
    %v3337 = vld [vmem:[#allocation19 + $0x21c] sm:$0xff]
    %v3338 = vld [vmem:[#allocation19 + $0x224] sm:$0xff]
    %v3339 = vld [vmem:[#allocation19 + $0x22c] sm:$0xf]
    %v3340 = vld [vmem:[#allocation19 + $0x230] sm:$0xff]
    %v3341 = vld [vmem:[#allocation19 + $0x238] sm:$0xff]
    %v3342 = vld [vmem:[#allocation19 + $0x240] sm:$0xff]
    %v3343 = vld [vmem:[#allocation19 + $0x248] sm:$0xf]
    %v3344 = vld [vmem:[#allocation19 + $0x24c] sm:$0xff]
    %v3345 = vld [vmem:[#allocation19 + $0x254] sm:$0xff]
    %v3346 = vld [vmem:[#allocation19 + $0x25c] sm:$0xff]
    %v3347 = vld [vmem:[#allocation19 + $0x264] sm:$0xf]
    %v3348 = vld [vmem:[#allocation19 + $0x268] sm:$0xff]
    %v3349 = vld [vmem:[#allocation19 + $0x270] sm:$0xff]
    %v3350 = vld [vmem:[#allocation19 + $0x278] sm:$0xff]
    %v3351 = vld [vmem:[#allocation19 + $0x280] sm:$0xf]
    %v3352 = vld [vmem:[#allocation19 + $0x284] sm:$0xff]
    %v3353 = vld [vmem:[#allocation19 + $0x28c] sm:$0xff]
    %v3354 = vld [vmem:[#allocation19 + $0x294] sm:$0xff]
    %v3355 = vld [vmem:[#allocation19 + $0x29c] sm:$0xf]
    %v3356 = vld [vmem:[#allocation19 + $0x2a0] sm:$0xff]
    %v3357 = vld [vmem:[#allocation19 + $0x2a8] sm:$0xff]
    %v3358 = vld [vmem:[#allocation19 + $0x2b0] sm:$0xff]
    %v3359 = vld [vmem:[#allocation19 + $0x2b8] sm:$0xf]
    %v3360 = vld [vmem:[#allocation19 + $0x2bc] sm:$0xff]
    %v3361 = vld [vmem:[#allocation19 + $0x2c4] sm:$0xff]
    %v3362 = vld [vmem:[#allocation19 + $0x2cc] sm:$0xff]
    %v3363 = vld [vmem:[#allocation19 + $0x2d4] sm:$0xf]
    %v3364 = vld [vmem:[#allocation19 + $0x2d8] sm:$0xff]
    %v3365 = vld [vmem:[#allocation19 + $0x2e0] sm:$0xff]
    %v3366 = vld [vmem:[#allocation19 + $0x2e8] sm:$0xff]
    %v3367 = vld [vmem:[#allocation19 + $0x2f0] sm:$0xf]
    %v3368 = vld [vmem:[#allocation19 + $0x2f4] sm:$0xff]
    %v3369 = vld [vmem:[#allocation19 + $0x2fc] sm:$0xff]
    %v3370 = vld [vmem:[#allocation19 + $0x304] sm:$0xff]
    %v3371 = vld [vmem:[#allocation19 + $0x30c] sm:$0xf]
    %v3372 = vld [vmem:[#allocation19 + $0x310] sm:$0xff]
    %v3373 = vld [vmem:[#allocation19 + $0x318] sm:$0xff]
    %v3374 = vld [vmem:[#allocation19 + $0x320] sm:$0xff]
    %v3375 = vld [vmem:[#allocation19 + $0x328] sm:$0xf]
    %v3376 = vld [vmem:[#allocation19 + $0x32c] sm:$0xff]
    %v3377 = vld [vmem:[#allocation19 + $0x334] sm:$0xff]
    %v3378 = vld [vmem:[#allocation19 + $0x33c] sm:$0xff]
    %v3379 = vld [vmem:[#allocation19 + $0x344] sm:$0xf]
    %v3380 = vld [vmem:[#allocation19 + $0x348] sm:$0xff]
    %v3381 = vld [vmem:[#allocation19 + $0x350] sm:$0xff]
    %v3382 = vld [vmem:[#allocation19 + $0x358] sm:$0xff]
    %v3383 = vld [vmem:[#allocation19 + $0x360] sm:$0xf]
    %v3384 = vld [vmem:[#allocation19 + $0x364] sm:$0xff]
    %v3385 = vld [vmem:[#allocation19 + $0x36c] sm:$0xff]
    %v3386 = vld [vmem:[#allocation19 + $0x374] sm:$0xff]
    %v3387 = vld [vmem:[#allocation19 + $0x37c] sm:$0xf]
    %v3388 = vld [vmem:[#allocation19 + $0x380] sm:$0xff]
    %v3389 = vld [vmem:[#allocation19 + $0x388] sm:$0xff]
    %v3390 = vld [vmem:[#allocation19 + $0x390] sm:$0xff]
    %v3391 = vld [vmem:[#allocation19 + $0x398] sm:$0xf]
    %v3392 = vld [vmem:[#allocation19 + $0x39c] sm:$0xff]
    %v3393 = vld [vmem:[#allocation19 + $0x3a4] sm:$0xff]
    %v3394 = vld [vmem:[#allocation19 + $0x3ac] sm:$0xff]
    %v3395 = vld [vmem:[#allocation19 + $0x3b4] sm:$0xf]
    %v3396 = vld [vmem:[#allocation19 + $0x3b8] sm:$0xff]
    %v3397 = vld [vmem:[#allocation19 + $0x3c0] sm:$0xff]
    %v3398 = vld [vmem:[#allocation19 + $0x3c8] sm:$0xff]
    %v3399 = vld [vmem:[#allocation19 + $0x3d0] sm:$0xf]
    %v3400 = vld [vmem:[#allocation19 + $0x3d4] sm:$0xff]
    %v3401 = vld [vmem:[#allocation19 + $0x3dc] sm:$0xff]
    %v3402 = vld [vmem:[#allocation19 + $0x3e4] sm:$0xff]
    %v3403 = vld [vmem:[#allocation19 + $0x3ec] sm:$0xf]
    %v3404 = vld [vmem:[#allocation19 + $0x3f0] sm:$0xff]
    %v3405 = vld [vmem:[#allocation19 + $0x3f8] sm:$0xff]
    %v3406 = vld [vmem:[#allocation19 + $0x400] sm:$0xff]
    %v3407 = vld [vmem:[#allocation19 + $0x408] sm:$0xf]
    %v3408 = vld [vmem:[#allocation19 + $0x40c] sm:$0xff]
    %v3409 = vld [vmem:[#allocation19 + $0x414] sm:$0xff]
    %v3410 = vld [vmem:[#allocation19 + $0x41c] sm:$0xff]
    %v3411 = vld [vmem:[#allocation19 + $0x424] sm:$0xf]
    %v3412 = vld [vmem:[#allocation19 + $0x428] sm:$0xff]
    %v3413 = vld [vmem:[#allocation19 + $0x430] sm:$0xff]
    %v3414 = vld [vmem:[#allocation19 + $0x438] sm:$0xff]
    %v3415 = vld [vmem:[#allocation19 + $0x440] sm:$0xf]
    %v3416 = vld [vmem:[#allocation19 + $0x444] sm:$0xff]
    %v3417 = vld [vmem:[#allocation19 + $0x44c] sm:$0xff]
    %v3418 = vld [vmem:[#allocation19 + $0x454] sm:$0xff]
    %v3419 = vld [vmem:[#allocation19 + $0x45c] sm:$0xf]
    %v3420 = vld [vmem:[#allocation19 + $0x460] sm:$0xff]
    %v3421 = vld [vmem:[#allocation19 + $0x468] sm:$0xff]
    %v3422 = vld [vmem:[#allocation19 + $0x470] sm:$0xff]
    %v3423 = vld [vmem:[#allocation19 + $0x478] sm:$0xf]
    %v3424 = vld [vmem:[#allocation19 + $0x47c] sm:$0xff]
    %v3425 = vld [vmem:[#allocation19 + $0x484] sm:$0xff]
    %v3426 = vld [vmem:[#allocation19 + $0x48c] sm:$0xff]
    %v3427 = vld [vmem:[#allocation19 + $0x494] sm:$0xf]
    %v3428 = vld [vmem:[#allocation19 + $0x498] sm:$0xff]
    %v3429 = vld [vmem:[#allocation19 + $0x4a0] sm:$0xff]
    %v3430 = vld [vmem:[#allocation19 + $0x4a8] sm:$0xff]
    %v3431 = vld [vmem:[#allocation19 + $0x4b0] sm:$0xf]
    %v3432 = vld [vmem:[#allocation19 + $0x4b4] sm:$0xff]
    %v3433 = vld [vmem:[#allocation19 + $0x4bc] sm:$0xff]
    %v3434 = vld [vmem:[#allocation19 + $0x4c4] sm:$0xff]
    %v3435 = vld [vmem:[#allocation19 + $0x4cc] sm:$0xf]
    %v3436 = vld [vmem:[#allocation19 + $0x4d0] sm:$0xff]
    %v3437 = vld [vmem:[#allocation19 + $0x4d8] sm:$0xff]
    %v3438 = vld [vmem:[#allocation19 + $0x4e0] sm:$0xff]
    %v3439 = vld [vmem:[#allocation19 + $0x4e8] sm:$0xf]
    %v3440 = vld [vmem:[#allocation19 + $0x4ec] sm:$0xff]
    %v3441 = vld [vmem:[#allocation19 + $0x4f4] sm:$0xff]
    %v3442 = vld [vmem:[#allocation19 + $0x4fc] sm:$0xff]
    %v3443 = vld [vmem:[#allocation19 + $0x504] sm:$0xf]
    %v3444 = vld [vmem:[#allocation19 + $0x508] sm:$0xff]
    %v3445 = vld [vmem:[#allocation19 + $0x510] sm:$0xff]
    %v3446 = vld [vmem:[#allocation19 + $0x518] sm:$0xff]
    %v3447 = vld [vmem:[#allocation19 + $0x520] sm:$0xf]
    %v3448 = vld [vmem:[#allocation19 + $0x524] sm:$0xff]
    %v3449 = vld [vmem:[#allocation19 + $0x52c] sm:$0xff]
    %v3450 = vld [vmem:[#allocation19 + $0x534] sm:$0xff]
    %v3451 = vld [vmem:[#allocation19 + $0x53c] sm:$0xf]
    %v3452 = vld [vmem:[#allocation19 + $0x540] sm:$0xff]
    %v3453 = vld [vmem:[#allocation19 + $0x548] sm:$0xff]
    %v3454 = vld [vmem:[#allocation19 + $0x550] sm:$0xff]
    %v3455 = vld [vmem:[#allocation19 + $0x558] sm:$0xf]
    %v3456 = vld [vmem:[#allocation19 + $0x55c] sm:$0xff]
    %v3457 = vld [vmem:[#allocation19 + $0x564] sm:$0xff]
    %v3458 = vld [vmem:[#allocation19 + $0x56c] sm:$0xff]
    %v3459 = vld [vmem:[#allocation19 + $0x574] sm:$0xf]
    %v3460 = vld [vmem:[#allocation19 + $0x578] sm:$0xff]
    %v3461 = vld [vmem:[#allocation19 + $0x580] sm:$0xff]
    %v3462 = vld [vmem:[#allocation19 + $0x588] sm:$0xff]
    %v3463 = vld [vmem:[#allocation19 + $0x590] sm:$0xf]
    %v3464 = vld [vmem:[#allocation19 + $0x594] sm:$0xff]
    %v3465 = vld [vmem:[#allocation19 + $0x59c] sm:$0xff]
    %v3466 = vld [vmem:[#allocation19 + $0x5a4] sm:$0xff]
    %v3467 = vld [vmem:[#allocation19 + $0x5ac] sm:$0xf]
    %v3468 = vld [vmem:[#allocation19 + $0x5b0] sm:$0xff]
    %v3469 = vld [vmem:[#allocation19 + $0x5b8] sm:$0xff]
    %v3470 = vld [vmem:[#allocation19 + $0x5c0] sm:$0xff]
    %v3471 = vld [vmem:[#allocation19 + $0x5c8] sm:$0xf]
    %v3472 = vld [vmem:[#allocation19 + $0x5cc] sm:$0xff]
    %v3473 = vld [vmem:[#allocation19 + $0x5d4] sm:$0xff]
    %v3474 = vld [vmem:[#allocation19 + $0x5dc] sm:$0xff]
    %v3475 = vld [vmem:[#allocation19 + $0x5e4] sm:$0xf]
    %v3476 = vld [vmem:[#allocation19 + $0x5e8] sm:$0xff]
    %v3477 = vld [vmem:[#allocation19 + $0x5f0] sm:$0xff]
    %v3478 = vld [vmem:[#allocation19 + $0x5f8] sm:$0xff]
    %v3479 = vld [vmem:[#allocation19 + $0x600] sm:$0xf]
    %v3480 = vld [vmem:[#allocation19 + $0x604] sm:$0xff]
    %v3481 = vld [vmem:[#allocation19 + $0x60c] sm:$0xff]
    %v3482 = vld [vmem:[#allocation19 + $0x614] sm:$0xff]
    %v3483 = vld [vmem:[#allocation19 + $0x61c] sm:$0xf]
    %v3484 = vld [vmem:[#allocation19 + $0x620] sm:$0xff]
    %v3485 = vld [vmem:[#allocation19 + $0x628] sm:$0xff]
    %v3486 = vld [vmem:[#allocation19 + $0x630] sm:$0xff]
    %v3487 = vld [vmem:[#allocation19 + $0x638] sm:$0xf]
    %v3488 = vld [vmem:[#allocation19 + $0x63c] sm:$0xff]
    %v3489 = vld [vmem:[#allocation19 + $0x644] sm:$0xff]
    %v3490 = vld [vmem:[#allocation19 + $0x64c] sm:$0xff]
    %v3491 = vld [vmem:[#allocation19 + $0x654] sm:$0xf]
    %v3492 = vld [vmem:[#allocation19 + $0x658] sm:$0xff]
    %v3493 = vld [vmem:[#allocation19 + $0x660] sm:$0xff]
    %v3494 = vld [vmem:[#allocation19 + $0x668] sm:$0xff]
    %v3495 = vld [vmem:[#allocation19 + $0x670] sm:$0xf]
    %v3496 = vld [vmem:[#allocation19 + $0x674] sm:$0xff]
    %v3497 = vld [vmem:[#allocation19 + $0x67c] sm:$0xff]
    %v3498 = vld [vmem:[#allocation19 + $0x684] sm:$0xff]
    %v3499 = vld [vmem:[#allocation19 + $0x68c] sm:$0xf]
    %v3500 = vld [vmem:[#allocation19 + $0x690] sm:$0xff]
    %v3501 = vld [vmem:[#allocation19 + $0x698] sm:$0xff]
    %v3502 = vld [vmem:[#allocation19 + $0x6a0] sm:$0xff]
    %v3503 = vld [vmem:[#allocation19 + $0x6a8] sm:$0xf]
    %v3504 = vld [vmem:[#allocation19 + $0x6ac] sm:$0xff]
    %v3505 = vld [vmem:[#allocation19 + $0x6b4] sm:$0xff]
    %v3506 = vld [vmem:[#allocation19 + $0x6bc] sm:$0xff]
    %v3507 = vld [vmem:[#allocation19 + $0x6c4] sm:$0xf]
    %v3508 = vld [vmem:[#allocation19 + $0x6c8] sm:$0xff]
    %v3509 = vld [vmem:[#allocation19 + $0x6d0] sm:$0xff]
    %v3510 = vld [vmem:[#allocation19 + $0x6d8] sm:$0xff]
    %v3511 = vld [vmem:[#allocation19 + $0x6e0] sm:$0xf]
    %v3512 = vld [vmem:[#allocation19 + $0x6e4] sm:$0xff]
    %v3513 = vld [vmem:[#allocation19 + $0x6ec] sm:$0xff]
    %v3514 = vld [vmem:[#allocation19 + $0x6f4] sm:$0xff]
    %v3515 = vld [vmem:[#allocation19 + $0x6fc] sm:$0xf]
    %v3516 = vld [vmem:[%s12] sm:$0xff]
    %v3518 = vperm.slane %v3516, 0
    %v3519 = vperm.slane %v3516, 1
    %v3520 = vperm.slane %v3516, 2
    %v3521 = vperm.slane %v3516, 3
    %v3522 = vperm.slane %v3516, 4
    %v3523 = vperm.slane %v3516, 5
    %v3524 = vperm.slane %v3516, 6
    %v3788 = vunpack.c.l.b16 %v3260
    %v3789 = vunpack.c.h.b16 %v3260
    %v3790 = vunpack.c.l.b16 %v3261
    %v3791 = vunpack.c.h.b16 %v3261
    %v3792 = vunpack.c.l.b16 %v3262
    %v3793 = vunpack.c.h.b16 %v3262
    %v3794 = vunpack.c.l.b16 %v3263
    %v3795 = vunpack.c.l.b16 %v3264
    %v3796 = vunpack.c.h.b16 %v3264
    %v3797 = vunpack.c.l.b16 %v3265
    %v3798 = vunpack.c.h.b16 %v3265
    %v3799 = vunpack.c.l.b16 %v3266
    %v3800 = vunpack.c.h.b16 %v3266
    %v3801 = vunpack.c.l.b16 %v3267
    %v3802 = vunpack.c.l.b16 %v3268
    %v3803 = vunpack.c.h.b16 %v3268
    %v3804 = vunpack.c.l.b16 %v3269
    %v3805 = vunpack.c.h.b16 %v3269
    %v3806 = vunpack.c.l.b16 %v3270
    %v3807 = vunpack.c.h.b16 %v3270
    %v3808 = vunpack.c.l.b16 %v3271
    %v3809 = vunpack.c.l.b16 %v3272
    %v3810 = vunpack.c.h.b16 %v3272
    %v3811 = vunpack.c.l.b16 %v3273
    %v3812 = vunpack.c.h.b16 %v3273
    %v3813 = vunpack.c.l.b16 %v3274
    %v3814 = vunpack.c.h.b16 %v3274
    %v3815 = vunpack.c.l.b16 %v3275
    %v3816 = vunpack.c.l.b16 %v3276
    %v3817 = vunpack.c.h.b16 %v3276
    %v3818 = vunpack.c.l.b16 %v3277
    %v3819 = vunpack.c.h.b16 %v3277
    %v3820 = vunpack.c.l.b16 %v3278
    %v3821 = vunpack.c.h.b16 %v3278
    %v3822 = vunpack.c.l.b16 %v3279
    %v3823 = vunpack.c.l.b16 %v3280
    %v3824 = vunpack.c.h.b16 %v3280
    %v3825 = vunpack.c.l.b16 %v3281
    %v3826 = vunpack.c.h.b16 %v3281
    %v3827 = vunpack.c.l.b16 %v3282
    %v3828 = vunpack.c.h.b16 %v3282
    %v3829 = vunpack.c.l.b16 %v3283
    %v3830 = vunpack.c.l.b16 %v3284
    %v3831 = vunpack.c.h.b16 %v3284
    %v3832 = vunpack.c.l.b16 %v3285
    %v3833 = vunpack.c.h.b16 %v3285
    %v3834 = vunpack.c.l.b16 %v3286
    %v3835 = vunpack.c.h.b16 %v3286
    %v3836 = vunpack.c.l.b16 %v3287
    %v3837 = vunpack.c.l.b16 %v3288
    %v3838 = vunpack.c.h.b16 %v3288
    %v3839 = vunpack.c.l.b16 %v3289
    %v3840 = vunpack.c.h.b16 %v3289
    %v3841 = vunpack.c.l.b16 %v3290
    %v3842 = vunpack.c.h.b16 %v3290
    %v3843 = vunpack.c.l.b16 %v3291
    %v3844 = vunpack.c.l.b16 %v3292
    %v3845 = vunpack.c.h.b16 %v3292
    %v3846 = vunpack.c.l.b16 %v3293
    %v3847 = vunpack.c.h.b16 %v3293
    %v3848 = vunpack.c.l.b16 %v3294
    %v3849 = vunpack.c.h.b16 %v3294
    %v3850 = vunpack.c.l.b16 %v3295
    %v3851 = vunpack.c.l.b16 %v3296
    %v3852 = vunpack.c.h.b16 %v3296
    %v3853 = vunpack.c.l.b16 %v3297
    %v3854 = vunpack.c.h.b16 %v3297
    %v3855 = vunpack.c.l.b16 %v3298
    %v3856 = vunpack.c.h.b16 %v3298
    %v3857 = vunpack.c.l.b16 %v3299
    %v3858 = vunpack.c.l.b16 %v3300
    %v3859 = vunpack.c.h.b16 %v3300
    %v3860 = vunpack.c.l.b16 %v3301
    %v3861 = vunpack.c.h.b16 %v3301
    %v3862 = vunpack.c.l.b16 %v3302
    %v3863 = vunpack.c.h.b16 %v3302
    %v3864 = vunpack.c.l.b16 %v3303
    %v3865 = vunpack.c.l.b16 %v3304
    %v3866 = vunpack.c.h.b16 %v3304
    %v3867 = vunpack.c.l.b16 %v3305
    %v3868 = vunpack.c.h.b16 %v3305
    %v3869 = vunpack.c.l.b16 %v3306
    %v3870 = vunpack.c.h.b16 %v3306
    %v3871 = vunpack.c.l.b16 %v3307
    %v3872 = vunpack.c.l.b16 %v3308
    %v3873 = vunpack.c.h.b16 %v3308
    %v3874 = vunpack.c.l.b16 %v3309
    %v3875 = vunpack.c.h.b16 %v3309
    %v3876 = vunpack.c.l.b16 %v3310
    %v3877 = vunpack.c.h.b16 %v3310
    %v3878 = vunpack.c.l.b16 %v3311
    %v3879 = vunpack.c.l.b16 %v3312
    %v3880 = vunpack.c.h.b16 %v3312
    %v3881 = vunpack.c.l.b16 %v3313
    %v3882 = vunpack.c.h.b16 %v3313
    %v3883 = vunpack.c.l.b16 %v3314
    %v3884 = vunpack.c.h.b16 %v3314
    %v3885 = vunpack.c.l.b16 %v3315
    %v3886 = vunpack.c.l.b16 %v3316
    %v3887 = vunpack.c.h.b16 %v3316
    %v3888 = vunpack.c.l.b16 %v3317
    %v3889 = vunpack.c.h.b16 %v3317
    %v3890 = vunpack.c.l.b16 %v3318
    %v3891 = vunpack.c.h.b16 %v3318
    %v3892 = vunpack.c.l.b16 %v3319
    %v3893 = vunpack.c.l.b16 %v3320
    %v3894 = vunpack.c.h.b16 %v3320
    %v3895 = vunpack.c.l.b16 %v3321
    %v3896 = vunpack.c.h.b16 %v3321
    %v3897 = vunpack.c.l.b16 %v3322
    %v3898 = vunpack.c.h.b16 %v3322
    %v3899 = vunpack.c.l.b16 %v3323
    %v3900 = vunpack.c.l.b16 %v3324
    %v3901 = vunpack.c.h.b16 %v3324
    %v3902 = vunpack.c.l.b16 %v3325
    %v3903 = vunpack.c.h.b16 %v3325
    %v3904 = vunpack.c.l.b16 %v3326
    %v3905 = vunpack.c.h.b16 %v3326
    %v3906 = vunpack.c.l.b16 %v3327
    %v3907 = vunpack.c.l.b16 %v3328
    %v3908 = vunpack.c.h.b16 %v3328
    %v3909 = vunpack.c.l.b16 %v3329
    %v3910 = vunpack.c.h.b16 %v3329
    %v3911 = vunpack.c.l.b16 %v3330
    %v3912 = vunpack.c.h.b16 %v3330
    %v3913 = vunpack.c.l.b16 %v3331
    %v3914 = vunpack.c.l.b16 %v3332
    %v3915 = vunpack.c.h.b16 %v3332
    %v3916 = vunpack.c.l.b16 %v3333
    %v3917 = vunpack.c.h.b16 %v3333
    %v3918 = vunpack.c.l.b16 %v3334
    %v3919 = vunpack.c.h.b16 %v3334
    %v3920 = vunpack.c.l.b16 %v3335
    %v3921 = vunpack.c.l.b16 %v3336
    %v3922 = vunpack.c.h.b16 %v3336
    %v3923 = vunpack.c.l.b16 %v3337
    %v3924 = vunpack.c.h.b16 %v3337
    %v3925 = vunpack.c.l.b16 %v3338
    %v3926 = vunpack.c.h.b16 %v3338
    %v3927 = vunpack.c.l.b16 %v3339
    %v3928 = vunpack.c.l.b16 %v3340
    %v3929 = vunpack.c.h.b16 %v3340
    %v3930 = vunpack.c.l.b16 %v3341
    %v3931 = vunpack.c.h.b16 %v3341
    %v3932 = vunpack.c.l.b16 %v3342
    %v3933 = vunpack.c.h.b16 %v3342
    %v3934 = vunpack.c.l.b16 %v3343
    %v3935 = vunpack.c.l.b16 %v3344
    %v3936 = vunpack.c.h.b16 %v3344
    %v3937 = vunpack.c.l.b16 %v3345
    %v3938 = vunpack.c.h.b16 %v3345
    %v3939 = vunpack.c.l.b16 %v3346
    %v3940 = vunpack.c.h.b16 %v3346
    %v3941 = vunpack.c.l.b16 %v3347
    %v3942 = vunpack.c.l.b16 %v3348
    %v3943 = vunpack.c.h.b16 %v3348
    %v3944 = vunpack.c.l.b16 %v3349
    %v3945 = vunpack.c.h.b16 %v3349
    %v3946 = vunpack.c.l.b16 %v3350
    %v3947 = vunpack.c.h.b16 %v3350
    %v3948 = vunpack.c.l.b16 %v3351
    %v3949 = vunpack.c.l.b16 %v3352
    %v3950 = vunpack.c.h.b16 %v3352
    %v3951 = vunpack.c.l.b16 %v3353
    %v3952 = vunpack.c.h.b16 %v3353
    %v3953 = vunpack.c.l.b16 %v3354
    %v3954 = vunpack.c.h.b16 %v3354
    %v3955 = vunpack.c.l.b16 %v3355
    %v3956 = vunpack.c.l.b16 %v3356
    %v3957 = vunpack.c.h.b16 %v3356
    %v3958 = vunpack.c.l.b16 %v3357
    %v3959 = vunpack.c.h.b16 %v3357
    %v3960 = vunpack.c.l.b16 %v3358
    %v3961 = vunpack.c.h.b16 %v3358
    %v3962 = vunpack.c.l.b16 %v3359
    %v3963 = vunpack.c.l.b16 %v3360
    %v3964 = vunpack.c.h.b16 %v3360
    %v3965 = vunpack.c.l.b16 %v3361
    %v3966 = vunpack.c.h.b16 %v3361
    %v3967 = vunpack.c.l.b16 %v3362
    %v3968 = vunpack.c.h.b16 %v3362
    %v3969 = vunpack.c.l.b16 %v3363
    %v3970 = vunpack.c.l.b16 %v3364
    %v3971 = vunpack.c.h.b16 %v3364
    %v3972 = vunpack.c.l.b16 %v3365
    %v3973 = vunpack.c.h.b16 %v3365
    %v3974 = vunpack.c.l.b16 %v3366
    %v3975 = vunpack.c.h.b16 %v3366
    %v3976 = vunpack.c.l.b16 %v3367
    %v3977 = vunpack.c.l.b16 %v3368
    %v3978 = vunpack.c.h.b16 %v3368
    %v3979 = vunpack.c.l.b16 %v3369
    %v3980 = vunpack.c.h.b16 %v3369
    %v3981 = vunpack.c.l.b16 %v3370
    %v3982 = vunpack.c.h.b16 %v3370
    %v3983 = vunpack.c.l.b16 %v3371
    %v3984 = vunpack.c.l.b16 %v3372
    %v3985 = vunpack.c.h.b16 %v3372
    %v3986 = vunpack.c.l.b16 %v3373
    %v3987 = vunpack.c.h.b16 %v3373
    %v3988 = vunpack.c.l.b16 %v3374
    %v3989 = vunpack.c.h.b16 %v3374
    %v3990 = vunpack.c.l.b16 %v3375
    %v3991 = vunpack.c.l.b16 %v3376
    %v3992 = vunpack.c.h.b16 %v3376
    %v3993 = vunpack.c.l.b16 %v3377
    %v3994 = vunpack.c.h.b16 %v3377
    %v3995 = vunpack.c.l.b16 %v3378
    %v3996 = vunpack.c.h.b16 %v3378
    %v3997 = vunpack.c.l.b16 %v3379
    %v3998 = vunpack.c.l.b16 %v3380
    %v3999 = vunpack.c.h.b16 %v3380
    %v4000 = vunpack.c.l.b16 %v3381
    %v4001 = vunpack.c.h.b16 %v3381
    %v4002 = vunpack.c.l.b16 %v3382
    %v4003 = vunpack.c.h.b16 %v3382
    %v4004 = vunpack.c.l.b16 %v3383
    %v4005 = vunpack.c.l.b16 %v3384
    %v4006 = vunpack.c.h.b16 %v3384
    %v4007 = vunpack.c.l.b16 %v3385
    %v4008 = vunpack.c.h.b16 %v3385
    %v4009 = vunpack.c.l.b16 %v3386
    %v4010 = vunpack.c.h.b16 %v3386
    %v4011 = vunpack.c.l.b16 %v3387
    %v4012 = vunpack.c.l.b16 %v3388
    %v4013 = vunpack.c.h.b16 %v3388
    %v4014 = vunpack.c.l.b16 %v3389
    %v4015 = vunpack.c.h.b16 %v3389
    %v4016 = vunpack.c.l.b16 %v3390
    %v4017 = vunpack.c.h.b16 %v3390
    %v4018 = vunpack.c.l.b16 %v3391
    %v4019 = vunpack.c.l.b16 %v3392
    %v4020 = vunpack.c.h.b16 %v3392
    %v4021 = vunpack.c.l.b16 %v3393
    %v4022 = vunpack.c.h.b16 %v3393
    %v4023 = vunpack.c.l.b16 %v3394
    %v4024 = vunpack.c.h.b16 %v3394
    %v4025 = vunpack.c.l.b16 %v3395
    %v4026 = vunpack.c.l.b16 %v3396
    %v4027 = vunpack.c.h.b16 %v3396
    %v4028 = vunpack.c.l.b16 %v3397
    %v4029 = vunpack.c.h.b16 %v3397
    %v4030 = vunpack.c.l.b16 %v3398
    %v4031 = vunpack.c.h.b16 %v3398
    %v4032 = vunpack.c.l.b16 %v3399
    %v4033 = vunpack.c.l.b16 %v3400
    %v4034 = vunpack.c.h.b16 %v3400
    %v4035 = vunpack.c.l.b16 %v3401
    %v4036 = vunpack.c.h.b16 %v3401
    %v4037 = vunpack.c.l.b16 %v3402
    %v4038 = vunpack.c.h.b16 %v3402
    %v4039 = vunpack.c.l.b16 %v3403
    %v4040 = vunpack.c.l.b16 %v3404
    %v4041 = vunpack.c.h.b16 %v3404
    %v4042 = vunpack.c.l.b16 %v3405
    %v4043 = vunpack.c.h.b16 %v3405
    %v4044 = vunpack.c.l.b16 %v3406
    %v4045 = vunpack.c.h.b16 %v3406
    %v4046 = vunpack.c.l.b16 %v3407
    %v4047 = vunpack.c.l.b16 %v3408
    %v4048 = vunpack.c.h.b16 %v3408
    %v4049 = vunpack.c.l.b16 %v3409
    %v4050 = vunpack.c.h.b16 %v3409
    %v4051 = vunpack.c.l.b16 %v3410
    %v4052 = vunpack.c.h.b16 %v3410
    %v4053 = vunpack.c.l.b16 %v3411
    %v4054 = vunpack.c.l.b16 %v3412
    %v4055 = vunpack.c.h.b16 %v3412
    %v4056 = vunpack.c.l.b16 %v3413
    %v4057 = vunpack.c.h.b16 %v3413
    %v4058 = vunpack.c.l.b16 %v3414
    %v4059 = vunpack.c.h.b16 %v3414
    %v4060 = vunpack.c.l.b16 %v3415
    %v4061 = vunpack.c.l.b16 %v3416
    %v4062 = vunpack.c.h.b16 %v3416
    %v4063 = vunpack.c.l.b16 %v3417
    %v4064 = vunpack.c.h.b16 %v3417
    %v4065 = vunpack.c.l.b16 %v3418
    %v4066 = vunpack.c.h.b16 %v3418
    %v4067 = vunpack.c.l.b16 %v3419
    %v4068 = vunpack.c.l.b16 %v3420
    %v4069 = vunpack.c.h.b16 %v3420
    %v4070 = vunpack.c.l.b16 %v3421
    %v4071 = vunpack.c.h.b16 %v3421
    %v4072 = vunpack.c.l.b16 %v3422
    %v4073 = vunpack.c.h.b16 %v3422
    %v4074 = vunpack.c.l.b16 %v3423
    %v4075 = vunpack.c.l.b16 %v3424
    %v4076 = vunpack.c.h.b16 %v3424
    %v4077 = vunpack.c.l.b16 %v3425
    %v4078 = vunpack.c.h.b16 %v3425
    %v4079 = vunpack.c.l.b16 %v3426
    %v4080 = vunpack.c.h.b16 %v3426
    %v4081 = vunpack.c.l.b16 %v3427
    %v4082 = vunpack.c.l.b16 %v3428
    %v4083 = vunpack.c.h.b16 %v3428
    %v4084 = vunpack.c.l.b16 %v3429
    %v4085 = vunpack.c.h.b16 %v3429
    %v4086 = vunpack.c.l.b16 %v3430
    %v4087 = vunpack.c.h.b16 %v3430
    %v4088 = vunpack.c.l.b16 %v3431
    %v4089 = vunpack.c.l.b16 %v3432
    %v4090 = vunpack.c.h.b16 %v3432
    %v4091 = vunpack.c.l.b16 %v3433
    %v4092 = vunpack.c.h.b16 %v3433
    %v4093 = vunpack.c.l.b16 %v3434
    %v4094 = vunpack.c.h.b16 %v3434
    %v4095 = vunpack.c.l.b16 %v3435
    %v4096 = vunpack.c.l.b16 %v3436
    %v4097 = vunpack.c.h.b16 %v3436
    %v4098 = vunpack.c.l.b16 %v3437
    %v4099 = vunpack.c.h.b16 %v3437
    %v4100 = vunpack.c.l.b16 %v3438
    %v4101 = vunpack.c.h.b16 %v3438
    %v4102 = vunpack.c.l.b16 %v3439
    %v4103 = vunpack.c.l.b16 %v3440
    %v4104 = vunpack.c.h.b16 %v3440
    %v4105 = vunpack.c.l.b16 %v3441
    %v4106 = vunpack.c.h.b16 %v3441
    %v4107 = vunpack.c.l.b16 %v3442
    %v4108 = vunpack.c.h.b16 %v3442
    %v4109 = vunpack.c.l.b16 %v3443
    %v4110 = vunpack.c.l.b16 %v3444
    %v4111 = vunpack.c.h.b16 %v3444
    %v4112 = vunpack.c.l.b16 %v3445
    %v4113 = vunpack.c.h.b16 %v3445
    %v4114 = vunpack.c.l.b16 %v3446
    %v4115 = vunpack.c.h.b16 %v3446
    %v4116 = vunpack.c.l.b16 %v3447
    %v4117 = vunpack.c.l.b16 %v3448
    %v4118 = vunpack.c.h.b16 %v3448
    %v4119 = vunpack.c.l.b16 %v3449
    %v4120 = vunpack.c.h.b16 %v3449
    %v4121 = vunpack.c.l.b16 %v3450
    %v4122 = vunpack.c.h.b16 %v3450
    %v4123 = vunpack.c.l.b16 %v3451
    %v4124 = vunpack.c.l.b16 %v3452
    %v4125 = vunpack.c.h.b16 %v3452
    %v4126 = vunpack.c.l.b16 %v3453
    %v4127 = vunpack.c.h.b16 %v3453
    %v4128 = vunpack.c.l.b16 %v3454
    %v4129 = vunpack.c.h.b16 %v3454
    %v4130 = vunpack.c.l.b16 %v3455
    %v4131 = vunpack.c.l.b16 %v3456
    %v4132 = vunpack.c.h.b16 %v3456
    %v4133 = vunpack.c.l.b16 %v3457
    %v4134 = vunpack.c.h.b16 %v3457
    %v4135 = vunpack.c.l.b16 %v3458
    %v4136 = vunpack.c.h.b16 %v3458
    %v4137 = vunpack.c.l.b16 %v3459
    %v4138 = vunpack.c.l.b16 %v3460
    %v4139 = vunpack.c.h.b16 %v3460
    %v4140 = vunpack.c.l.b16 %v3461
    %v4141 = vunpack.c.h.b16 %v3461
    %v4142 = vunpack.c.l.b16 %v3462
    %v4143 = vunpack.c.h.b16 %v3462
    %v4144 = vunpack.c.l.b16 %v3463
    %v4145 = vunpack.c.l.b16 %v3464
    %v4146 = vunpack.c.h.b16 %v3464
    %v4147 = vunpack.c.l.b16 %v3465
    %v4148 = vunpack.c.h.b16 %v3465
    %v4149 = vunpack.c.l.b16 %v3466
    %v4150 = vunpack.c.h.b16 %v3466
    %v4151 = vunpack.c.l.b16 %v3467
    %v4152 = vunpack.c.l.b16 %v3468
    %v4153 = vunpack.c.h.b16 %v3468
    %v4154 = vunpack.c.l.b16 %v3469
    %v4155 = vunpack.c.h.b16 %v3469
    %v4156 = vunpack.c.l.b16 %v3470
    %v4157 = vunpack.c.h.b16 %v3470
    %v4158 = vunpack.c.l.b16 %v3471
    %v4159 = vunpack.c.l.b16 %v3472
    %v4160 = vunpack.c.h.b16 %v3472
    %v4161 = vunpack.c.l.b16 %v3473
    %v4162 = vunpack.c.h.b16 %v3473
    %v4163 = vunpack.c.l.b16 %v3474
    %v4164 = vunpack.c.h.b16 %v3474
    %v4165 = vunpack.c.l.b16 %v3475
    %v4166 = vunpack.c.l.b16 %v3476
    %v4167 = vunpack.c.h.b16 %v3476
    %v4168 = vunpack.c.l.b16 %v3477
    %v4169 = vunpack.c.h.b16 %v3477
    %v4170 = vunpack.c.l.b16 %v3478
    %v4171 = vunpack.c.h.b16 %v3478
    %v4172 = vunpack.c.l.b16 %v3479
    %v4173 = vunpack.c.l.b16 %v3480
    %v4174 = vunpack.c.h.b16 %v3480
    %v4175 = vunpack.c.l.b16 %v3481
    %v4176 = vunpack.c.h.b16 %v3481
    %v4177 = vunpack.c.l.b16 %v3482
    %v4178 = vunpack.c.h.b16 %v3482
    %v4179 = vunpack.c.l.b16 %v3483
    %v4180 = vunpack.c.l.b16 %v3484
    %v4181 = vunpack.c.h.b16 %v3484
    %v4182 = vunpack.c.l.b16 %v3485
    %v4183 = vunpack.c.h.b16 %v3485
    %v4184 = vunpack.c.l.b16 %v3486
    %v4185 = vunpack.c.h.b16 %v3486
    %v4186 = vunpack.c.l.b16 %v3487
    %v4187 = vunpack.c.l.b16 %v3488
    %v4188 = vunpack.c.h.b16 %v3488
    %v4189 = vunpack.c.l.b16 %v3489
    %v4190 = vunpack.c.h.b16 %v3489
    %v4191 = vunpack.c.l.b16 %v3490
    %v4192 = vunpack.c.h.b16 %v3490
    %v4193 = vunpack.c.l.b16 %v3491
    %v4194 = vunpack.c.l.b16 %v3492
    %v4195 = vunpack.c.h.b16 %v3492
    %v4196 = vunpack.c.l.b16 %v3493
    %v4197 = vunpack.c.h.b16 %v3493
    %v4198 = vunpack.c.l.b16 %v3494
    %v4199 = vunpack.c.h.b16 %v3494
    %v4200 = vunpack.c.l.b16 %v3495
    %v4201 = vunpack.c.l.b16 %v3496
    %v4202 = vunpack.c.h.b16 %v3496
    %v4203 = vunpack.c.l.b16 %v3497
    %v4204 = vunpack.c.h.b16 %v3497
    %v4205 = vunpack.c.l.b16 %v3498
    %v4206 = vunpack.c.h.b16 %v3498
    %v4207 = vunpack.c.l.b16 %v3499
    %v4208 = vunpack.c.l.b16 %v3500
    %v4209 = vunpack.c.h.b16 %v3500
    %v4210 = vunpack.c.l.b16 %v3501
    %v4211 = vunpack.c.h.b16 %v3501
    %v4212 = vunpack.c.l.b16 %v3502
    %v4213 = vunpack.c.h.b16 %v3502
    %v4214 = vunpack.c.l.b16 %v3503
    %v4215 = vunpack.c.l.b16 %v3504
    %v4216 = vunpack.c.h.b16 %v3504
    %v4217 = vunpack.c.l.b16 %v3505
    %v4218 = vunpack.c.h.b16 %v3505
    %v4219 = vunpack.c.l.b16 %v3506
    %v4220 = vunpack.c.h.b16 %v3506
    %v4221 = vunpack.c.l.b16 %v3507
    %v4222 = vunpack.c.l.b16 %v3508
    %v4223 = vunpack.c.h.b16 %v3508
    %v4224 = vunpack.c.l.b16 %v3509
    %v4225 = vunpack.c.h.b16 %v3509
    %v4226 = vunpack.c.l.b16 %v3510
    %v4227 = vunpack.c.h.b16 %v3510
    %v4228 = vunpack.c.l.b16 %v3511
    %v4229 = vunpack.c.l.b16 %v3512
    %v4230 = vunpack.c.h.b16 %v3512
    %v4231 = vunpack.c.l.b16 %v3513
    %v4232 = vunpack.c.h.b16 %v3513
    %v4233 = vunpack.c.l.b16 %v3514
    %v4234 = vunpack.c.h.b16 %v3514
    %v4235 = vunpack.c.l.b16 %v3515
    %v4236 = vpack.c.b16 %v3795, %v3788
    %v4237 = vpack.c.b16 %v3796, %v3789
    %v4238 = vpack.c.b16 %v3797, %v3790
    %v4239 = vpack.c.b16 %v3798, %v3791
    %v4240 = vpack.c.b16 %v3799, %v3792
    %v4241 = vpack.c.b16 %v3800, %v3793
    %v4242 = vpack.c.b16 %v3801, %v3794
    %v4243 = vpack.c.b16 %v3809, %v3802
    %v4244 = vpack.c.b16 %v3810, %v3803
    %v4245 = vpack.c.b16 %v3811, %v3804
    %v4246 = vpack.c.b16 %v3812, %v3805
    %v4247 = vpack.c.b16 %v3813, %v3806
    %v4248 = vpack.c.b16 %v3814, %v3807
    %v4249 = vpack.c.b16 %v3815, %v3808
    %v4250 = vpack.c.b16 %v3823, %v3816
    %v4251 = vpack.c.b16 %v3824, %v3817
    %v4252 = vpack.c.b16 %v3825, %v3818
    %v4253 = vpack.c.b16 %v3826, %v3819
    %v4254 = vpack.c.b16 %v3827, %v3820
    %v4255 = vpack.c.b16 %v3828, %v3821
    %v4256 = vpack.c.b16 %v3829, %v3822
    %v4257 = vpack.c.b16 %v3837, %v3830
    %v4258 = vpack.c.b16 %v3838, %v3831
    %v4259 = vpack.c.b16 %v3839, %v3832
    %v4260 = vpack.c.b16 %v3840, %v3833
    %v4261 = vpack.c.b16 %v3841, %v3834
    %v4262 = vpack.c.b16 %v3842, %v3835
    %v4263 = vpack.c.b16 %v3843, %v3836
    %v4264 = vpack.c.b16 %v3851, %v3844
    %v4265 = vpack.c.b16 %v3852, %v3845
    %v4266 = vpack.c.b16 %v3853, %v3846
    %v4267 = vpack.c.b16 %v3854, %v3847
    %v4268 = vpack.c.b16 %v3855, %v3848
    %v4269 = vpack.c.b16 %v3856, %v3849
    %v4270 = vpack.c.b16 %v3857, %v3850
    %v4271 = vpack.c.b16 %v3865, %v3858
    %v4272 = vpack.c.b16 %v3866, %v3859
    %v4273 = vpack.c.b16 %v3867, %v3860
    %v4274 = vpack.c.b16 %v3868, %v3861
    %v4275 = vpack.c.b16 %v3869, %v3862
    %v4276 = vpack.c.b16 %v3870, %v3863
    %v4277 = vpack.c.b16 %v3871, %v3864
    %v4278 = vpack.c.b16 %v3879, %v3872
    %v4279 = vpack.c.b16 %v3880, %v3873
    %v4280 = vpack.c.b16 %v3881, %v3874
    %v4281 = vpack.c.b16 %v3882, %v3875
    %v4282 = vpack.c.b16 %v3883, %v3876
    %v4283 = vpack.c.b16 %v3884, %v3877
    %v4284 = vpack.c.b16 %v3885, %v3878
    %v4285 = vpack.c.b16 %v3893, %v3886
    %v4286 = vpack.c.b16 %v3894, %v3887
    %v4287 = vpack.c.b16 %v3895, %v3888
    %v4288 = vpack.c.b16 %v3896, %v3889
    %v4289 = vpack.c.b16 %v3897, %v3890
    %v4290 = vpack.c.b16 %v3898, %v3891
    %v4291 = vpack.c.b16 %v3899, %v3892
    %v4292 = vpack.c.b16 %v3907, %v3900
    %v4293 = vpack.c.b16 %v3908, %v3901
    %v4294 = vpack.c.b16 %v3909, %v3902
    %v4295 = vpack.c.b16 %v3910, %v3903
    %v4296 = vpack.c.b16 %v3911, %v3904
    %v4297 = vpack.c.b16 %v3912, %v3905
    %v4298 = vpack.c.b16 %v3913, %v3906
    %v4299 = vpack.c.b16 %v3921, %v3914
    %v4300 = vpack.c.b16 %v3922, %v3915
    %v4301 = vpack.c.b16 %v3923, %v3916
    %v4302 = vpack.c.b16 %v3924, %v3917
    %v4303 = vpack.c.b16 %v3925, %v3918
    %v4304 = vpack.c.b16 %v3926, %v3919
    %v4305 = vpack.c.b16 %v3927, %v3920
    %v4306 = vpack.c.b16 %v3935, %v3928
    %v4307 = vpack.c.b16 %v3936, %v3929
    %v4308 = vpack.c.b16 %v3937, %v3930
    %v4309 = vpack.c.b16 %v3938, %v3931
    %v4310 = vpack.c.b16 %v3939, %v3932
    %v4311 = vpack.c.b16 %v3940, %v3933
    %v4312 = vpack.c.b16 %v3941, %v3934
    %v4313 = vpack.c.b16 %v3949, %v3942
    %v4314 = vpack.c.b16 %v3950, %v3943
    %v4315 = vpack.c.b16 %v3951, %v3944
    %v4316 = vpack.c.b16 %v3952, %v3945
    %v4317 = vpack.c.b16 %v3953, %v3946
    %v4318 = vpack.c.b16 %v3954, %v3947
    %v4319 = vpack.c.b16 %v3955, %v3948
    %v4320 = vpack.c.b16 %v3963, %v3956
    %v4321 = vpack.c.b16 %v3964, %v3957
    %v4322 = vpack.c.b16 %v3965, %v3958
    %v4323 = vpack.c.b16 %v3966, %v3959
    %v4324 = vpack.c.b16 %v3967, %v3960
    %v4325 = vpack.c.b16 %v3968, %v3961
    %v4326 = vpack.c.b16 %v3969, %v3962
    %v4327 = vpack.c.b16 %v3977, %v3970
    %v4328 = vpack.c.b16 %v3978, %v3971
    %v4329 = vpack.c.b16 %v3979, %v3972
    %v4330 = vpack.c.b16 %v3980, %v3973
    %v4331 = vpack.c.b16 %v3981, %v3974
    %v4332 = vpack.c.b16 %v3982, %v3975
    %v4333 = vpack.c.b16 %v3983, %v3976
    %v4334 = vpack.c.b16 %v3991, %v3984
    %v4335 = vpack.c.b16 %v3992, %v3985
    %v4336 = vpack.c.b16 %v3993, %v3986
    %v4337 = vpack.c.b16 %v3994, %v3987
    %v4338 = vpack.c.b16 %v3995, %v3988
    %v4339 = vpack.c.b16 %v3996, %v3989
    %v4340 = vpack.c.b16 %v3997, %v3990
    %v4341 = vpack.c.b16 %v4005, %v3998
    %v4342 = vpack.c.b16 %v4006, %v3999
    %v4343 = vpack.c.b16 %v4007, %v4000
    %v4344 = vpack.c.b16 %v4008, %v4001
    %v4345 = vpack.c.b16 %v4009, %v4002
    %v4346 = vpack.c.b16 %v4010, %v4003
    %v4347 = vpack.c.b16 %v4011, %v4004
    %v4348 = vpack.c.b16 %v4019, %v4012
    %v4349 = vpack.c.b16 %v4020, %v4013
    %v4350 = vpack.c.b16 %v4021, %v4014
    %v4351 = vpack.c.b16 %v4022, %v4015
    %v4352 = vpack.c.b16 %v4023, %v4016
    %v4353 = vpack.c.b16 %v4024, %v4017
    %v4354 = vpack.c.b16 %v4025, %v4018
    %v4355 = vpack.c.b16 %v4033, %v4026
    %v4356 = vpack.c.b16 %v4034, %v4027
    %v4357 = vpack.c.b16 %v4035, %v4028
    %v4358 = vpack.c.b16 %v4036, %v4029
    %v4359 = vpack.c.b16 %v4037, %v4030
    %v4360 = vpack.c.b16 %v4038, %v4031
    %v4361 = vpack.c.b16 %v4039, %v4032
    %v4362 = vpack.c.b16 %v4047, %v4040
    %v4363 = vpack.c.b16 %v4048, %v4041
    %v4364 = vpack.c.b16 %v4049, %v4042
    %v4365 = vpack.c.b16 %v4050, %v4043
    %v4366 = vpack.c.b16 %v4051, %v4044
    %v4367 = vpack.c.b16 %v4052, %v4045
    %v4368 = vpack.c.b16 %v4053, %v4046
    %v4369 = vpack.c.b16 %v4061, %v4054
    %v4370 = vpack.c.b16 %v4062, %v4055
    %v4371 = vpack.c.b16 %v4063, %v4056
    %v4372 = vpack.c.b16 %v4064, %v4057
    %v4373 = vpack.c.b16 %v4065, %v4058
    %v4374 = vpack.c.b16 %v4066, %v4059
    %v4375 = vpack.c.b16 %v4067, %v4060
    %v4376 = vpack.c.b16 %v4075, %v4068
    %v4377 = vpack.c.b16 %v4076, %v4069
    %v4378 = vpack.c.b16 %v4077, %v4070
    %v4379 = vpack.c.b16 %v4078, %v4071
    %v4380 = vpack.c.b16 %v4079, %v4072
    %v4381 = vpack.c.b16 %v4080, %v4073
    %v4382 = vpack.c.b16 %v4081, %v4074
    %v4383 = vpack.c.b16 %v4089, %v4082
    %v4384 = vpack.c.b16 %v4090, %v4083
    %v4385 = vpack.c.b16 %v4091, %v4084
    %v4386 = vpack.c.b16 %v4092, %v4085
    %v4387 = vpack.c.b16 %v4093, %v4086
    %v4388 = vpack.c.b16 %v4094, %v4087
    %v4389 = vpack.c.b16 %v4095, %v4088
    %v4390 = vpack.c.b16 %v4103, %v4096
    %v4391 = vpack.c.b16 %v4104, %v4097
    %v4392 = vpack.c.b16 %v4105, %v4098
    %v4393 = vpack.c.b16 %v4106, %v4099
    %v4394 = vpack.c.b16 %v4107, %v4100
    %v4395 = vpack.c.b16 %v4108, %v4101
    %v4396 = vpack.c.b16 %v4109, %v4102
    %v4397 = vpack.c.b16 %v4117, %v4110
    %v4398 = vpack.c.b16 %v4118, %v4111
    %v4399 = vpack.c.b16 %v4119, %v4112
    %v4400 = vpack.c.b16 %v4120, %v4113
    %v4401 = vpack.c.b16 %v4121, %v4114
    %v4402 = vpack.c.b16 %v4122, %v4115
    %v4403 = vpack.c.b16 %v4123, %v4116
    %v4404 = vpack.c.b16 %v4131, %v4124
    %v4405 = vpack.c.b16 %v4132, %v4125
    %v4406 = vpack.c.b16 %v4133, %v4126
    %v4407 = vpack.c.b16 %v4134, %v4127
    %v4408 = vpack.c.b16 %v4135, %v4128
    %v4409 = vpack.c.b16 %v4136, %v4129
    %v4410 = vpack.c.b16 %v4137, %v4130
    %v4411 = vpack.c.b16 %v4145, %v4138
    %v4412 = vpack.c.b16 %v4146, %v4139
    %v4413 = vpack.c.b16 %v4147, %v4140
    %v4414 = vpack.c.b16 %v4148, %v4141
    %v4415 = vpack.c.b16 %v4149, %v4142
    %v4416 = vpack.c.b16 %v4150, %v4143
    %v4417 = vpack.c.b16 %v4151, %v4144
    %v4418 = vpack.c.b16 %v4159, %v4152
    %v4419 = vpack.c.b16 %v4160, %v4153
    %v4420 = vpack.c.b16 %v4161, %v4154
    %v4421 = vpack.c.b16 %v4162, %v4155
    %v4422 = vpack.c.b16 %v4163, %v4156
    %v4423 = vpack.c.b16 %v4164, %v4157
    %v4424 = vpack.c.b16 %v4165, %v4158
    %v4425 = vpack.c.b16 %v4173, %v4166
    %v4426 = vpack.c.b16 %v4174, %v4167
    %v4427 = vpack.c.b16 %v4175, %v4168
    %v4428 = vpack.c.b16 %v4176, %v4169
    %v4429 = vpack.c.b16 %v4177, %v4170
    %v4430 = vpack.c.b16 %v4178, %v4171
    %v4431 = vpack.c.b16 %v4179, %v4172
    %v4432 = vpack.c.b16 %v4187, %v4180
    %v4433 = vpack.c.b16 %v4188, %v4181
    %v4434 = vpack.c.b16 %v4189, %v4182
    %v4435 = vpack.c.b16 %v4190, %v4183
    %v4436 = vpack.c.b16 %v4191, %v4184
    %v4437 = vpack.c.b16 %v4192, %v4185
    %v4438 = vpack.c.b16 %v4193, %v4186
    %v4439 = vpack.c.b16 %v4201, %v4194
    %v4440 = vpack.c.b16 %v4202, %v4195
    %v4441 = vpack.c.b16 %v4203, %v4196
    %v4442 = vpack.c.b16 %v4204, %v4197
    %v4443 = vpack.c.b16 %v4205, %v4198
    %v4444 = vpack.c.b16 %v4206, %v4199
    %v4445 = vpack.c.b16 %v4207, %v4200
    %v4446 = vpack.c.b16 %v4215, %v4208
    %v4447 = vpack.c.b16 %v4216, %v4209
    %v4448 = vpack.c.b16 %v4217, %v4210
    %v4449 = vpack.c.b16 %v4218, %v4211
    %v4450 = vpack.c.b16 %v4219, %v4212
    %v4451 = vpack.c.b16 %v4220, %v4213
    %v4452 = vpack.c.b16 %v4221, %v4214
    %v4453 = vpack.c.b16 %v4229, %v4222
    %v4454 = vpack.c.b16 %v4230, %v4223
    %v4455 = vpack.c.b16 %v4231, %v4224
    %v4456 = vpack.c.b16 %v4232, %v4225
    %v4457 = vpack.c.b16 %v4233, %v4226
    %v4458 = vpack.c.b16 %v4234, %v4227
    %v4459 = vpack.c.b16 %v4235, %v4228
    %4684 = vmatpush.bf16.msra.mxu0 %v4285
    %4685 = vmatpush.bf16.msra.mxu0 %v4278
    %4686 = vmatpush.bf16.msra.mxu0 %v4271
    %4687 = vmatpush.bf16.msra.mxu0 %v4264
    %4688 = vmatpush.bf16.msra.mxu0 %v4257
    %4689 = vmatpush.bf16.msra.mxu0 %v4250
    %4690 = vmatpush.bf16.msra.mxu0 %v4243
    %4691 = vmatpush.bf16.msra.mxu0 %v4236
    %4692 = vmatmul.bf16.gmra.mxu0 %v3256
    %v4693 = vpop.f32.mrf.mxu0
    %v4694 = vadd.f32 %v3518, %v4693
    %v4695 = vpop.f32.mrf.mxu0
    %4696 = vdwg.mxu0
    %4697 = vmatpush.bf16.msra.mxu0 %v4341
    %4698 = vmatpush.bf16.msra.mxu0 %v4334
    %4699 = vmatpush.bf16.msra.mxu0 %v4327
    %4700 = vmatpush.bf16.msra.mxu0 %v4320
    %4701 = vmatpush.bf16.msra.mxu0 %v4313
    %4702 = vmatpush.bf16.msra.mxu0 %v4306
    %4703 = vmatpush.bf16.msra.mxu0 %v4299
    %4704 = vmatpush.bf16.msra.mxu0 %v4292
    %4705 = vmatmul.bf16.gmra.mxu0 %v3257
    %v4706 = vpop.f32.mrf.mxu0
    %v4707 = vadd.f32 %v4694, %v4706
    %v4708 = vpop.f32.mrf.mxu0
    %4709 = vdwg.mxu0
    %4710 = vmatpush.bf16.msra.mxu0 %v4397
    %4711 = vmatpush.bf16.msra.mxu0 %v4390
    %4712 = vmatpush.bf16.msra.mxu0 %v4383
    %4713 = vmatpush.bf16.msra.mxu0 %v4376
    %4714 = vmatpush.bf16.msra.mxu0 %v4369
    %4715 = vmatpush.bf16.msra.mxu0 %v4362
    %4716 = vmatpush.bf16.msra.mxu0 %v4355
    %4717 = vmatpush.bf16.msra.mxu0 %v4348
    %4718 = vmatmul.bf16.gmra.mxu0 %v3258
    %v4719 = vpop.f32.mrf.mxu0
    %v4720 = vadd.f32 %v4707, %v4719
    %v4721 = vpop.f32.mrf.mxu0
    %4722 = vdwg.mxu0
    %4723 = vmatpush.bf16.msra.mxu0 %v4453
    %4724 = vmatpush.bf16.msra.mxu0 %v4446
    %4725 = vmatpush.bf16.msra.mxu0 %v4439
    %4726 = vmatpush.bf16.msra.mxu0 %v4432
    %4727 = vmatpush.bf16.msra.mxu0 %v4425
    %4728 = vmatpush.bf16.msra.mxu0 %v4418
    %4729 = vmatpush.bf16.msra.mxu0 %v4411
    %4730 = vmatpush.bf16.msra.mxu0 %v4404
    %4731 = vmatmul.bf16.gmra.mxu0 %v3259
    %v4732 = vpop.f32.mrf.mxu0
    %v4733 = vadd.f32 %v4720, %v4732
    %v4734 = vpop.f32.mrf.mxu0
    %4735 = vdwg.mxu0
    %4736 = vmatpush.bf16.msra.mxu0 %v4286
    %4737 = vmatpush.bf16.msra.mxu0 %v4279
    %4738 = vmatpush.bf16.msra.mxu0 %v4272
    %4739 = vmatpush.bf16.msra.mxu0 %v4265
    %4740 = vmatpush.bf16.msra.mxu0 %v4258
    %4741 = vmatpush.bf16.msra.mxu0 %v4251
    %4742 = vmatpush.bf16.msra.mxu0 %v4244
    %4743 = vmatpush.bf16.msra.mxu0 %v4237
    %4744 = vmatmul.bf16.gmra.mxu0 %v3256
    %v4745 = vpop.f32.mrf.mxu0
    %v4746 = vadd.f32 %v3519, %v4745
    %v4747 = vpop.f32.mrf.mxu0
    %4748 = vdwg.mxu0
    %4749 = vmatpush.bf16.msra.mxu0 %v4342
    %4750 = vmatpush.bf16.msra.mxu0 %v4335
    %4751 = vmatpush.bf16.msra.mxu0 %v4328
    %4752 = vmatpush.bf16.msra.mxu0 %v4321
    %4753 = vmatpush.bf16.msra.mxu0 %v4314
    %4754 = vmatpush.bf16.msra.mxu0 %v4307
    %4755 = vmatpush.bf16.msra.mxu0 %v4300
    %4756 = vmatpush.bf16.msra.mxu0 %v4293
    %4757 = vmatmul.bf16.gmra.mxu0 %v3257
    %v4758 = vpop.f32.mrf.mxu0
    %v4759 = vadd.f32 %v4746, %v4758
    %v4760 = vpop.f32.mrf.mxu0
    %4761 = vdwg.mxu0
    %4762 = vmatpush.bf16.msra.mxu0 %v4398
    %4763 = vmatpush.bf16.msra.mxu0 %v4391
    %4764 = vmatpush.bf16.msra.mxu0 %v4384
    %4765 = vmatpush.bf16.msra.mxu0 %v4377
    %4766 = vmatpush.bf16.msra.mxu0 %v4370
    %4767 = vmatpush.bf16.msra.mxu0 %v4363
    %4768 = vmatpush.bf16.msra.mxu0 %v4356
    %4769 = vmatpush.bf16.msra.mxu0 %v4349
    %4770 = vmatmul.bf16.gmra.mxu0 %v3258
    %v4771 = vpop.f32.mrf.mxu0
    %v4772 = vadd.f32 %v4759, %v4771
    %v4773 = vpop.f32.mrf.mxu0
    %4774 = vdwg.mxu0
    %4775 = vmatpush.bf16.msra.mxu0 %v4454
    %4776 = vmatpush.bf16.msra.mxu0 %v4447
    %4777 = vmatpush.bf16.msra.mxu0 %v4440
    %4778 = vmatpush.bf16.msra.mxu0 %v4433
    %4779 = vmatpush.bf16.msra.mxu0 %v4426
    %4780 = vmatpush.bf16.msra.mxu0 %v4419
    %4781 = vmatpush.bf16.msra.mxu0 %v4412
    %4782 = vmatpush.bf16.msra.mxu0 %v4405
    %4783 = vmatmul.bf16.gmra.mxu0 %v3259
    %v4784 = vpop.f32.mrf.mxu0
    %v4785 = vadd.f32 %v4772, %v4784
    %v4786 = vpop.f32.mrf.mxu0
    %4787 = vdwg.mxu0
    %4788 = vmatpush.bf16.msra.mxu0 %v4287
    %4789 = vmatpush.bf16.msra.mxu0 %v4280
    %4790 = vmatpush.bf16.msra.mxu0 %v4273
    %4791 = vmatpush.bf16.msra.mxu0 %v4266
    %4792 = vmatpush.bf16.msra.mxu0 %v4259
    %4793 = vmatpush.bf16.msra.mxu0 %v4252
    %4794 = vmatpush.bf16.msra.mxu0 %v4245
    %4795 = vmatpush.bf16.msra.mxu0 %v4238
    %4796 = vmatmul.bf16.gmra.mxu0 %v3256
    %v4797 = vpop.f32.mrf.mxu0
    %v4798 = vadd.f32 %v3520, %v4797
    %v4799 = vpop.f32.mrf.mxu0
    %4800 = vdwg.mxu0
    %4801 = vmatpush.bf16.msra.mxu0 %v4343
    %4802 = vmatpush.bf16.msra.mxu0 %v4336
    %4803 = vmatpush.bf16.msra.mxu0 %v4329
    %4804 = vmatpush.bf16.msra.mxu0 %v4322
    %4805 = vmatpush.bf16.msra.mxu0 %v4315
    %4806 = vmatpush.bf16.msra.mxu0 %v4308
    %4807 = vmatpush.bf16.msra.mxu0 %v4301
    %4808 = vmatpush.bf16.msra.mxu0 %v4294
    %4809 = vmatmul.bf16.gmra.mxu0 %v3257
    %v4810 = vpop.f32.mrf.mxu0
    %v4811 = vadd.f32 %v4798, %v4810
    %v4812 = vpop.f32.mrf.mxu0
    %4813 = vdwg.mxu0
    %4814 = vmatpush.bf16.msra.mxu0 %v4399
    %4815 = vmatpush.bf16.msra.mxu0 %v4392
    %4816 = vmatpush.bf16.msra.mxu0 %v4385
    %4817 = vmatpush.bf16.msra.mxu0 %v4378
    %4818 = vmatpush.bf16.msra.mxu0 %v4371
    %4819 = vmatpush.bf16.msra.mxu0 %v4364
    %4820 = vmatpush.bf16.msra.mxu0 %v4357
    %4821 = vmatpush.bf16.msra.mxu0 %v4350
    %4822 = vmatmul.bf16.gmra.mxu0 %v3258
    %v4823 = vpop.f32.mrf.mxu0
    %v4824 = vadd.f32 %v4811, %v4823
    %v4825 = vpop.f32.mrf.mxu0
    %4826 = vdwg.mxu0
    %4827 = vmatpush.bf16.msra.mxu0 %v4455
    %4828 = vmatpush.bf16.msra.mxu0 %v4448
    %4829 = vmatpush.bf16.msra.mxu0 %v4441
    %4830 = vmatpush.bf16.msra.mxu0 %v4434
    %4831 = vmatpush.bf16.msra.mxu0 %v4427
    %4832 = vmatpush.bf16.msra.mxu0 %v4420
    %4833 = vmatpush.bf16.msra.mxu0 %v4413
    %4834 = vmatpush.bf16.msra.mxu0 %v4406
    %4835 = vmatmul.bf16.gmra.mxu0 %v3259
    %v4836 = vpop.f32.mrf.mxu0
    %v4837 = vadd.f32 %v4824, %v4836
    %v4838 = vpop.f32.mrf.mxu0
    %4839 = vdwg.mxu0
    %4840 = vmatpush.bf16.msra.mxu0 %v4288
    %4841 = vmatpush.bf16.msra.mxu0 %v4281
    %4842 = vmatpush.bf16.msra.mxu0 %v4274
    %4843 = vmatpush.bf16.msra.mxu0 %v4267
    %4844 = vmatpush.bf16.msra.mxu0 %v4260
    %4845 = vmatpush.bf16.msra.mxu0 %v4253
    %4846 = vmatpush.bf16.msra.mxu0 %v4246
    %4847 = vmatpush.bf16.msra.mxu0 %v4239
    %4848 = vmatmul.bf16.gmra.mxu0 %v3256
    %v4849 = vpop.f32.mrf.mxu0
    %v4850 = vadd.f32 %v3521, %v4849
    %v4851 = vpop.f32.mrf.mxu0
    %4852 = vdwg.mxu0
    %4853 = vmatpush.bf16.msra.mxu0 %v4344
    %4854 = vmatpush.bf16.msra.mxu0 %v4337
    %4855 = vmatpush.bf16.msra.mxu0 %v4330
    %4856 = vmatpush.bf16.msra.mxu0 %v4323
    %4857 = vmatpush.bf16.msra.mxu0 %v4316
    %4858 = vmatpush.bf16.msra.mxu0 %v4309
    %4859 = vmatpush.bf16.msra.mxu0 %v4302
    %4860 = vmatpush.bf16.msra.mxu0 %v4295
    %4861 = vmatmul.bf16.gmra.mxu0 %v3257
    %v4862 = vpop.f32.mrf.mxu0
    %v4863 = vadd.f32 %v4850, %v4862
    %v4864 = vpop.f32.mrf.mxu0
    %4865 = vdwg.mxu0
    %4866 = vmatpush.bf16.msra.mxu0 %v4400
    %4867 = vmatpush.bf16.msra.mxu0 %v4393
    %4868 = vmatpush.bf16.msra.mxu0 %v4386
    %4869 = vmatpush.bf16.msra.mxu0 %v4379
    %4870 = vmatpush.bf16.msra.mxu0 %v4372
    %4871 = vmatpush.bf16.msra.mxu0 %v4365
    %4872 = vmatpush.bf16.msra.mxu0 %v4358
    %4873 = vmatpush.bf16.msra.mxu0 %v4351
    %4874 = vmatmul.bf16.gmra.mxu0 %v3258
    %v4875 = vpop.f32.mrf.mxu0
    %v4876 = vadd.f32 %v4863, %v4875
    %v4877 = vpop.f32.mrf.mxu0
    %4878 = vdwg.mxu0
    %4879 = vmatpush.bf16.msra.mxu0 %v4456
    %4880 = vmatpush.bf16.msra.mxu0 %v4449
    %4881 = vmatpush.bf16.msra.mxu0 %v4442
    %4882 = vmatpush.bf16.msra.mxu0 %v4435
    %4883 = vmatpush.bf16.msra.mxu0 %v4428
    %4884 = vmatpush.bf16.msra.mxu0 %v4421
    %4885 = vmatpush.bf16.msra.mxu0 %v4414
    %4886 = vmatpush.bf16.msra.mxu0 %v4407
    %4887 = vmatmul.bf16.gmra.mxu0 %v3259
    %v4888 = vpop.f32.mrf.mxu0
    %v4889 = vadd.f32 %v4876, %v4888
    %v4890 = vpop.f32.mrf.mxu0
    %4891 = vdwg.mxu0
    %4892 = vmatpush.bf16.msra.mxu0 %v4289
    %4893 = vmatpush.bf16.msra.mxu0 %v4282
    %4894 = vmatpush.bf16.msra.mxu0 %v4275
    %4895 = vmatpush.bf16.msra.mxu0 %v4268
    %4896 = vmatpush.bf16.msra.mxu0 %v4261
    %4897 = vmatpush.bf16.msra.mxu0 %v4254
    %4898 = vmatpush.bf16.msra.mxu0 %v4247
    %4899 = vmatpush.bf16.msra.mxu0 %v4240
    %4900 = vmatmul.bf16.gmra.mxu0 %v3256
    %v4901 = vpop.f32.mrf.mxu0
    %v4902 = vadd.f32 %v3522, %v4901
    %v4903 = vpop.f32.mrf.mxu0
    %4904 = vdwg.mxu0
    %4905 = vmatpush.bf16.msra.mxu0 %v4345
    %4906 = vmatpush.bf16.msra.mxu0 %v4338
    %4907 = vmatpush.bf16.msra.mxu0 %v4331
    %4908 = vmatpush.bf16.msra.mxu0 %v4324
    %4909 = vmatpush.bf16.msra.mxu0 %v4317
    %4910 = vmatpush.bf16.msra.mxu0 %v4310
    %4911 = vmatpush.bf16.msra.mxu0 %v4303
    %4912 = vmatpush.bf16.msra.mxu0 %v4296
    %4913 = vmatmul.bf16.gmra.mxu0 %v3257
    %v4914 = vpop.f32.mrf.mxu0
    %v4915 = vadd.f32 %v4902, %v4914
    %v4916 = vpop.f32.mrf.mxu0
    %4917 = vdwg.mxu0
    %4918 = vmatpush.bf16.msra.mxu0 %v4401
    %4919 = vmatpush.bf16.msra.mxu0 %v4394
    %4920 = vmatpush.bf16.msra.mxu0 %v4387
    %4921 = vmatpush.bf16.msra.mxu0 %v4380
    %4922 = vmatpush.bf16.msra.mxu0 %v4373
    %4923 = vmatpush.bf16.msra.mxu0 %v4366
    %4924 = vmatpush.bf16.msra.mxu0 %v4359
    %4925 = vmatpush.bf16.msra.mxu0 %v4352
    %4926 = vmatmul.bf16.gmra.mxu0 %v3258
    %v4927 = vpop.f32.mrf.mxu0
    %v4928 = vadd.f32 %v4915, %v4927
    %v4929 = vpop.f32.mrf.mxu0
    %4930 = vdwg.mxu0
    %4931 = vmatpush.bf16.msra.mxu0 %v4457
    %4932 = vmatpush.bf16.msra.mxu0 %v4450
    %4933 = vmatpush.bf16.msra.mxu0 %v4443
    %4934 = vmatpush.bf16.msra.mxu0 %v4436
    %4935 = vmatpush.bf16.msra.mxu0 %v4429
    %4936 = vmatpush.bf16.msra.mxu0 %v4422
    %4937 = vmatpush.bf16.msra.mxu0 %v4415
    %4938 = vmatpush.bf16.msra.mxu0 %v4408
    %4939 = vmatmul.bf16.gmra.mxu0 %v3259
    %v4940 = vpop.f32.mrf.mxu0
    %v4941 = vadd.f32 %v4928, %v4940
    %v4942 = vpop.f32.mrf.mxu0
    %4943 = vdwg.mxu0
    %4944 = vmatpush.bf16.msra.mxu0 %v4290
    %4945 = vmatpush.bf16.msra.mxu0 %v4283
    %4946 = vmatpush.bf16.msra.mxu0 %v4276
    %4947 = vmatpush.bf16.msra.mxu0 %v4269
    %4948 = vmatpush.bf16.msra.mxu0 %v4262
    %4949 = vmatpush.bf16.msra.mxu0 %v4255
    %4950 = vmatpush.bf16.msra.mxu0 %v4248
    %4951 = vmatpush.bf16.msra.mxu0 %v4241
    %4952 = vmatmul.bf16.gmra.mxu0 %v3256
    %v4953 = vpop.f32.mrf.mxu0
    %v4954 = vadd.f32 %v3523, %v4953
    %v4955 = vpop.f32.mrf.mxu0
    %4956 = vdwg.mxu0
    %4957 = vmatpush.bf16.msra.mxu0 %v4346
    %4958 = vmatpush.bf16.msra.mxu0 %v4339
    %4959 = vmatpush.bf16.msra.mxu0 %v4332
    %4960 = vmatpush.bf16.msra.mxu0 %v4325
    %4961 = vmatpush.bf16.msra.mxu0 %v4318
    %4962 = vmatpush.bf16.msra.mxu0 %v4311
    %4963 = vmatpush.bf16.msra.mxu0 %v4304
    %4964 = vmatpush.bf16.msra.mxu0 %v4297
    %4965 = vmatmul.bf16.gmra.mxu0 %v3257
    %v4966 = vpop.f32.mrf.mxu0
    %v4967 = vadd.f32 %v4954, %v4966
    %v4968 = vpop.f32.mrf.mxu0
    %4969 = vdwg.mxu0
    %4970 = vmatpush.bf16.msra.mxu0 %v4402
    %4971 = vmatpush.bf16.msra.mxu0 %v4395
    %4972 = vmatpush.bf16.msra.mxu0 %v4388
    %4973 = vmatpush.bf16.msra.mxu0 %v4381
    %4974 = vmatpush.bf16.msra.mxu0 %v4374
    %4975 = vmatpush.bf16.msra.mxu0 %v4367
    %4976 = vmatpush.bf16.msra.mxu0 %v4360
    %4977 = vmatpush.bf16.msra.mxu0 %v4353
    %4978 = vmatmul.bf16.gmra.mxu0 %v3258
    %v4979 = vpop.f32.mrf.mxu0
    %v4980 = vadd.f32 %v4967, %v4979
    %v4981 = vpop.f32.mrf.mxu0
    %4982 = vdwg.mxu0
    %4983 = vmatpush.bf16.msra.mxu0 %v4458
    %4984 = vmatpush.bf16.msra.mxu0 %v4451
    %4985 = vmatpush.bf16.msra.mxu0 %v4444
    %4986 = vmatpush.bf16.msra.mxu0 %v4437
    %4987 = vmatpush.bf16.msra.mxu0 %v4430
    %4988 = vmatpush.bf16.msra.mxu0 %v4423
    %4989 = vmatpush.bf16.msra.mxu0 %v4416
    %4990 = vmatpush.bf16.msra.mxu0 %v4409
    %4991 = vmatmul.bf16.gmra.mxu0 %v3259
    %v4992 = vpop.f32.mrf.mxu0
    %v4993 = vadd.f32 %v4980, %v4992
    %v4994 = vpop.f32.mrf.mxu0
    %4995 = vdwg.mxu0
    %4996 = vmatpush.bf16.msra.mxu0 %v4291
    %4997 = vmatpush.bf16.msra.mxu0 %v4284
    %4998 = vmatpush.bf16.msra.mxu0 %v4277
    %4999 = vmatpush.bf16.msra.mxu0 %v4270
    %5000 = vmatpush.bf16.msra.mxu0 %v4263
    %5001 = vmatpush.bf16.msra.mxu0 %v4256
    %5002 = vmatpush.bf16.msra.mxu0 %v4249
    %5003 = vmatpush.bf16.msra.mxu0 %v4242
    %5004 = vmatmul.bf16.gmra.mxu0 %v3256
    %v5005 = vpop.f32.mrf.mxu0
    %v5006 = vadd.f32 %v3524, %v5005
    %v5007 = vpop.f32.mrf.mxu0
    %5008 = vdwg.mxu0
    %5009 = vmatpush.bf16.msra.mxu0 %v4347
    %5010 = vmatpush.bf16.msra.mxu0 %v4340
    %5011 = vmatpush.bf16.msra.mxu0 %v4333
    %5012 = vmatpush.bf16.msra.mxu0 %v4326
    %5013 = vmatpush.bf16.msra.mxu0 %v4319
    %5014 = vmatpush.bf16.msra.mxu0 %v4312
    %5015 = vmatpush.bf16.msra.mxu0 %v4305
    %5016 = vmatpush.bf16.msra.mxu0 %v4298
    %5017 = vmatmul.bf16.gmra.mxu0 %v3257
    %v5018 = vpop.f32.mrf.mxu0
    %v5019 = vadd.f32 %v5006, %v5018
    %v5020 = vpop.f32.mrf.mxu0
    %5021 = vdwg.mxu0
    %5022 = vmatpush.bf16.msra.mxu0 %v4403
    %5023 = vmatpush.bf16.msra.mxu0 %v4396
    %5024 = vmatpush.bf16.msra.mxu0 %v4389
    %5025 = vmatpush.bf16.msra.mxu0 %v4382
    %5026 = vmatpush.bf16.msra.mxu0 %v4375
    %5027 = vmatpush.bf16.msra.mxu0 %v4368
    %5028 = vmatpush.bf16.msra.mxu0 %v4361
    %5029 = vmatpush.bf16.msra.mxu0 %v4354
    %5030 = vmatmul.bf16.gmra.mxu0 %v3258
    %v5031 = vpop.f32.mrf.mxu0
    %v5032 = vadd.f32 %v5019, %v5031
    %v5033 = vpop.f32.mrf.mxu0
    %5034 = vdwg.mxu0
    %5035 = vmatpush.bf16.msra.mxu0 %v4459
    %5036 = vmatpush.bf16.msra.mxu0 %v4452
    %5037 = vmatpush.bf16.msra.mxu0 %v4445
    %5038 = vmatpush.bf16.msra.mxu0 %v4438
    %5039 = vmatpush.bf16.msra.mxu0 %v4431
    %5040 = vmatpush.bf16.msra.mxu0 %v4424
    %5041 = vmatpush.bf16.msra.mxu0 %v4417
    %5042 = vmatpush.bf16.msra.mxu0 %v4410
    %5043 = vmatmul.bf16.gmra.mxu0 %v3259
    %v5044 = vpop.f32.mrf.mxu0
    %v5045 = vadd.f32 %v5032, %v5044
    %v5046 = vpop.f32.mrf.mxu0
    %5047 = vdwg.mxu0
    %5048 = vst [vmem:[#allocation21] sm:$0xff] %v4733
    %5049 = vst [vmem:[#allocation21 + $0x8] sm:$0xff] %v4785
    %5050 = vst [vmem:[#allocation21 + $0x10] sm:$0xff] %v4837
    %5051 = vst [vmem:[#allocation21 + $0x18] sm:$0xff] %v4889
    %5052 = vst [vmem:[#allocation21 + $0x20] sm:$0xff] %v4941
    %5053 = vst [vmem:[#allocation21 + $0x28] sm:$0xff] %v4993
    %5054 = vst [vmem:[#allocation21 + $0x30] sm:$0xff] %v5045
    // Predicated region
    $region98: #{tpu_custom_call.1} parent=1 // pred_check
      _
    $region99: #{tpu_custom_call.1} parent=1 // pred_check_branch
      %5056 = sbr.rel (0) target = $region101
    $region100: #{tpu_custom_call.1} parent=1 // pred_region
      %5058 = vsyncadd [#allocation4], 0
      %s5060 = sshll.u32 [#allocation20], 4
      %s5061 = int_to_ptr.vmem [resolvable:$true] %s5060
      %s5062 = sshll.u32 %s13, 4
      %s5063 = int_to_ptr.hbm [resolvable:$true] %s5062
      %5065 = dma.vmem_to_hbm [thread:$0]  %s5061, 128, %s5063, [#allocation4]
    $region101: #{tpu_custom_call.1} parent=1 // pred_fallthru
      _
    // Predicated region
    $region102: #{tpu_custom_call.1} parent=1 // pred_check
      _
    $region103: #{tpu_custom_call.1} parent=1 // pred_check_branch
      %5067 = sbr.rel (0) target = $region105
    $region104: #{tpu_custom_call.1} parent=1 // pred_region
      %5069 = vsyncadd [#allocation22], 0
      %s5071 = sshll.u32 [#allocation21], 4
      %s5072 = int_to_ptr.vmem [resolvable:$true] %s5071
      %s5073 = sshll.u32 %s14, 4
      %s5074 = int_to_ptr.hbm [resolvable:$true] %s5073
      %5076 = dma.vmem_to_hbm [thread:$0]  %s5072, 896, %s5074, [#allocation22]
    $region105: #{tpu_custom_call.1} parent=1 // pred_fallthru
      _
    // Predicated region
    $region106: #{tpu_custom_call.1} parent=1 // pred_check
      _
    $region107: #{tpu_custom_call.1} parent=1 // pred_check_branch
      %5078 = sbr.rel (0) target = $region109
    $region108: #{tpu_custom_call.1} parent=1 // pred_region
      %5080 = dma.done [#allocation4], 128
    $region109: #{tpu_custom_call.1} parent=1 // pred_fallthru
      _
    // Predicated region
    $region110: #{tpu_custom_call.1} parent=1 // pred_check
      _
    $region111: #{tpu_custom_call.1} parent=1 // pred_check_branch
      %5082 = sbr.rel (0) target = $region113
    $region112: #{tpu_custom_call.1} parent=1 // pred_region
      %5084 = dma.done [#allocation22], 896
    $region113: #{tpu_custom_call.1} parent=1 // pred_fallthru
      _
    %5085 = vsyncpa [#allocation3], 1
    %5086 = vsyncpa [#allocation6], 1
    %5087 = vsyncpa [#allocation9], 1
    %5088 = vsyncpa [#allocation12], 1
    %5089 = vsyncpa [#allocation15], 1
    %5090 = vsyncpa [#allocation18], 1
    %5091 = vsyncpa [#allocation4], 1
    %5092 = vsyncpa [#allocation22], 1

</llo_original>
